<compile_context>
chip_gen: v6e
topology: v6e:2x2x1
jax: 0.10.0
libtpu: 0.0.40
codegen_flags: <defaults>
</compile_context>

<pallas_src>
import functools

import jax
import jax.numpy as jnp
from jax.experimental import pallas as pl
from jax.experimental.pallas import tpu as pltpu


HEAD_BLK = 16          # packed per-pixel RPN head width: A + 4A = 15 -> pad to 16
BBOX_XFORM_CLIP = 4.135166556742356  # log(1000/16), standard dw/dh clamp


# -----------------------------------------------------------------------------
# Pallas kernel: fused backbone (conv1->conv2) + RPN (conv3 -> cls|bbox head)
# -----------------------------------------------------------------------------
def _fused_backbone_rpn_kernel(x_ref, w1_ref, b1_ref, w2_ref, b2_ref,
                               w3_ref, b3_ref, wh_ref, bh_ref,
                               feat_ref, head_ref, pad_ref,
                               *, H, W, C, Cin):
    """One image per grid step.  All activations stay in (H, W*C) lane-dense
    layout; 3x3 convs are 3 banded matmuls each (dy taps), dx taps + channel
    contraction are folded into the precomputed banded weights.

    x_ref   : (1, H, W*Cin)            image, channels packed per x
    w*_ref  : (3, W*cin, W*C)          banded conv weights (one slab per dy)
    b*_ref  : (1, W*C)                 conv bias tiled per x
    wh_ref  : (W*C, W*HEAD_BLK)        block-diagonal RPN cls+bbox head weight
    bh_ref  : (1, W*HEAD_BLK)          head bias tiled per x
    feat_ref: (1, H, W*C)              backbone features (lane-dense)
    head_ref: (1, H, W*HEAD_BLK)       RPN head output (lane-dense)
    pad_ref : VMEM (H+2, W*C)          row-halo scratch (rows 0 and H+1 zero)
    """
    # Scratch persists across grid steps, so the zero row-halo must be valid
    # every step.  NOTE: a @pl.when(program_id(0) == 0) "zero once" guard is
    # unsafe with the "parallel" batch axis (core 1 never runs pid 0 on a
    # 2-TC chip); in this layout the full clear is only a few unmasked vreg
    # stores, so we just do it every step.
    pad_ref[...] = jnp.zeros_like(pad_ref)

    def conv3x3_relu(kin, w_ref_, b_ref_):
        # 3 banded matmuls (dy = -1, 0, +1).  No im2col patch, no lane
        # concatenation, no per-tap slicing: only 3 sublane-shifted loads.
        acc = jnp.dot(pad_ref[0:H, 0:kin], w_ref_[0],
                      preferred_element_type=jnp.float32)
        acc = acc + jnp.dot(pad_ref[1:H + 1, 0:kin], w_ref_[1],
                            preferred_element_type=jnp.float32)
        acc = acc + jnp.dot(pad_ref[2:H + 2, 0:kin], w_ref_[2],
                            preferred_element_type=jnp.float32)
        return jnp.maximum(acc + b_ref_[0], 0.0)           # (H, W*C)

    # backbone conv1 (Cin input channels packed in the first W*Cin lanes)
    pad_ref[1:H + 1, 0:W * Cin] = x_ref[0]
    f1 = conv3x3_relu(W * Cin, w1_ref, b1_ref)
    # backbone conv2
    pad_ref[1:H + 1, :] = f1
    f2 = conv3x3_relu(W * C, w2_ref, b2_ref)
    feat_ref[0] = f2.astype(feat_ref.dtype)                 # lane-dense store
    # rpn conv
    pad_ref[1:H + 1, :] = f2
    f3 = conv3x3_relu(W * C, w3_ref, b3_ref)

    # RPN objectness + bbox-delta head: per-pixel block-diagonal matmul so the
    # output stays in the same (H, W*HEAD_BLK) lane-dense layout.
    head = jnp.dot(f3, wh_ref[...],
                   preferred_element_type=jnp.float32) + bh_ref[0]
    head_ref[0] = head.astype(head_ref.dtype)


def fused_backbone_rpn(x_flat, pk, *, H, W, C, Cin):
    B = x_flat.shape[0]
    kernel = functools.partial(_fused_backbone_rpn_kernel,
                               H=H, W=W, C=C, Cin=Cin)
    feat, head = pl.pallas_call(
        kernel,
        out_shape=(
            jax.ShapeDtypeStruct((B, H, W * C), jnp.float32),
            jax.ShapeDtypeStruct((B, H, W * HEAD_BLK), jnp.float32),
        ),
        grid_spec=pltpu.PrefetchScalarGridSpec(
            num_scalar_prefetch=0,
            grid=(B,),
            in_specs=[
                # NOTE: last-two block dims equal the full array dims, so the
                # (8,128) divisibility constraint does not apply here.
                pl.BlockSpec((1, H, W * Cin), lambda b: (b, 0, 0)),
                pl.BlockSpec(pk["bb_w1"].shape, lambda b: (0, 0, 0)),
                pl.BlockSpec(pk["bb_b1"].shape, lambda b: (0, 0)),
                pl.BlockSpec(pk["bb_w2"].shape, lambda b: (0, 0, 0)),
                pl.BlockSpec(pk["bb_b2"].shape, lambda b: (0, 0)),
                pl.BlockSpec(pk["rpn_conv_w"].shape, lambda b: (0, 0, 0)),
                pl.BlockSpec(pk["rpn_conv_b"].shape, lambda b: (0, 0)),
                pl.BlockSpec(pk["rpn_head_w"].shape, lambda b: (0, 0)),
                pl.BlockSpec(pk["rpn_head_b"].shape, lambda b: (0, 0)),
            ],
            out_specs=[
                pl.BlockSpec((1, H, W * C), lambda b: (b, 0, 0)),
                pl.BlockSpec((1, H, W * HEAD_BLK), lambda b: (b, 0, 0)),
            ],
            scratch_shapes=[pltpu.VMEM((H + 2, W * C), jnp.float32)],
        ),
        compiler_params=pltpu.CompilerParams(
            dimension_semantics=("parallel",),     # batch across 2 TCs on v7x
            vmem_limit_bytes=32 * 1024 * 1024),
    )(x_flat, pk["bb_w1"], pk["bb_b1"], pk["bb_w2"], pk["bb_b2"],
      pk["rpn_conv_w"], pk["rpn_conv_b"], pk["rpn_head_w"], pk["rpn_head_b"])
    return feat, head


# -----------------------------------------------------------------------------
# Parameters (deterministic synthetic) + packing into kernel-friendly layouts
# -----------------------------------------------------------------------------
def init_params(key, in_ch=3, out_ch=16, hidden=32, num_anchors=3,
                num_classes=8, num_rel=5):
    ks = jax.random.split(key, 16)
    n = lambda k, shape: (0.1 * jax.random.normal(k, shape)).astype(jnp.float32)
    z = lambda shape: jnp.zeros(shape, jnp.float32)
    return {
        # backbone (two conv3x3 + relu), HWIO weights
        "bb_w1": n(ks[0], (3, 3, in_ch, out_ch)), "bb_b1": z((out_ch,)),
        "bb_w2": n(ks[1], (3, 3, out_ch, out_ch)), "bb_b2": z((out_ch,)),
        # rpn head
        "rpn_conv_w": n(ks[2], (3, 3, out_ch, out_ch)), "rpn_conv_b": z((out_ch,)),
        "rpn_cls_w": n(ks[3], (out_ch, num_anchors)), "rpn_cls_b": z((num_anchors,)),
        "rpn_bbox_w": n(ks[4], (out_ch, 4 * num_anchors)),
        "rpn_bbox_b": z((4 * num_anchors,)),
        # roi box head
        "fc1_w": n(ks[5], (out_ch, hidden)), "fc1_b": z((hidden,)),
        "fc2_w": n(ks[6], (hidden, hidden)), "fc2_b": z((hidden,)),
        "cls_w": n(ks[7], (hidden, num_classes)), "cls_b": z((num_classes,)),
        "reg_w": n(ks[8], (hidden, 4 * num_classes)), "reg_b": z((4 * num_classes,)),
        # relation head (per-proposal; pairwise relation context omitted)
        "rel_w": n(ks[9], (hidden, num_rel)), "rel_b": z((num_rel,)),
    }


def band_conv_weight(w, W):
    """(3, 3, cin, cout) HWIO conv weight -> (3, W*cin, W*cout) banded weights.

    band[dy][xin*cin + ci, x*cout + co] = w[dy, dx, ci, co] where
    xin = x + dx - 1 (out-of-range dx contributions simply dropped -> no
    column halo needed in the kernel's padded scratch)."""
    kh, kw, cin, cout = w.shape
    assert kh == 3 and kw == 3
    slabs = []
    for dy in range(kh):
        m = jnp.zeros((W * cin, W * cout), jnp.float32)
        for dx in range(kw):
            shift = jnp.eye(W, W, k=1 - dx, dtype=jnp.float32)  # [xin, x]
            m = m + jnp.kron(shift, w[dy, dx])
        slabs.append(m)
    return jnp.stack(slabs)


def pack_params(p, *, W, out_ch, num_anchors):
    """Build banded / block-diagonal weights once for the fused kernel."""
    A = num_anchors
    assert 5 * A <= HEAD_BLK, "HEAD_BLK must hold A obj + 4A bbox columns"

    def tiled_bias(b):
        return jnp.tile(b, W).reshape(1, W * b.shape[0])

    # Concatenated + padded per-pixel RPN head: [obj(A) | bbox(4A) | pad]
    hw = jnp.concatenate([p["rpn_cls_w"], p["rpn_bbox_w"]], axis=1)   # (C, 5A)
    hb = jnp.concatenate([p["rpn_cls_b"], p["rpn_bbox_b"]])           # (5A,)
    hw = jnp.pad(hw, ((0, 0), (0, HEAD_BLK - hw.shape[1])))
    hb = jnp.pad(hb, (0, HEAD_BLK - hb.shape[0]))

    return {
        "bb_w1": band_conv_weight(p["bb_w1"], W), "bb_b1": tiled_bias(p["bb_b1"]),
        "bb_w2": band_conv_weight(p["bb_w2"], W), "bb_b2": tiled_bias(p["bb_b2"]),
        "rpn_conv_w": band_conv_weight(p["rpn_conv_w"], W),
        "rpn_conv_b": tiled_bias(p["rpn_conv_b"]),
        "rpn_head_w": jnp.kron(jnp.eye(W, dtype=jnp.float32), hw),    # block-diag
        "rpn_head_b": tiled_bias(hb),
    }


# -----------------------------------------------------------------------------
# Model (backbone + rpn + roi_heads)
# -----------------------------------------------------------------------------
class GeneralizedRCNNDengPallas:
    """JAX/Pallas re-implementation of GeneralizedRCNN_deng.forward (eval path)."""

    def __init__(self, params, *, image_size=(16, 16), in_ch=3, out_ch=16,
                 hidden=32, num_anchors=3, num_proposals=8, num_classes=8,
                 num_rel=5, if_parent_model=False, relation_on=True):
        self.H, self.W = image_size
        self.Cin, self.C = in_ch, out_ch
        self.p = params
        self.pk = pack_params(params, W=self.W, out_ch=out_ch,
                              num_anchors=num_anchors)
        self.A = num_anchors
        self.K = num_proposals
        self.num_classes = num_classes
        self.num_rel = num_rel
        self.if_parent_model = if_parent_model
        self.relation_on = relation_on
        self.training = False
        self.anchor_sizes = jnp.array([4.0, 8.0, 16.0], jnp.float32)

    # ---- forward ------------------------------------------------------------
    def forward(self, images_nchw, targets=None):
        if self.training and targets is None:
            raise ValueError("In training mode, targets should be passed")
        B = images_nchw.shape[0]
        H, W, Cin, C, A, K = self.H, self.W, self.Cin, self.C, self.A, self.K

        # NCHW -> NHWC -> (B, H, W*Cin): channel-within-x lane packing matches
        # the banded conv-weight layout used by the fused kernel.
        x = jnp.transpose(images_nchw, (0, 2, 3, 1)).reshape(B, H, W * Cin)

        # backbone + rpn head: ONE fused pallas_call, lane-dense outputs
        feat_flat, head_flat = fused_backbone_rpn(x, self.pk,
                                                  H=H, W=W, C=C, Cin=Cin)
        features = feat_flat.reshape(B, H, W, C)
        head = head_flat.reshape(B, H, W, HEAD_BLK)
        obj = head[..., :A]
        # NOTE: assumes anchor-major (A, 4) column packing of the bbox head
        # (consistent with the synthetic rpn_bbox_w; real checkpoints may
        # use (4, A) ordering).
        deltas = head[..., A:5 * A].reshape(B, H, W, A, 4)

        sizes = self.anchor_sizes

        def per_image(score_map, delta_map, feat_map):
            scores_flat = score_map.reshape(-1)                  # (H*W*A,)
            top_scores, top_idx = jax.lax.top_k(scores_flat, K)
            ys = top_idx // (W * A)
            rem = top_idx % (W * A)
            xs = rem // A
            aa = rem % A
            d = delta_map.reshape(-1, 4)[top_idx]                # (K, 4)
            sz = sizes[aa]
            dw = jnp.minimum(d[:, 2], BBOX_XFORM_CLIP)           # standard clamp
            dh = jnp.minimum(d[:, 3], BBOX_XFORM_CLIP)
            cx = xs.astype(jnp.float32) + 0.5 + d[:, 0] * sz
            cy = ys.astype(jnp.float32) + 0.5 + d[:, 1] * sz
            bw = sz * jnp.exp(dw)
            bh = sz * jnp.exp(dh)
            boxes = jnp.stack(
                [cx - bw / 2, cy - bh / 2, cx + bw / 2, cy + bh / 2], axis=-1)
            # TODO(synk): simplified 1x1 ROI pooling (feature at box center)
            # instead of ROIAlign; NMS on proposals is omitted.
            roi_feats = feat_map[ys, xs]                         # (K, C)
            return boxes, top_scores, roi_feats

        boxes, obj_scores, roi_feats = jax.vmap(per_image)(obj, deltas, features)
        # TODO(synk): RPN objectness/box losses require `targets`; not computed.
        proposal_losses = {}

        # roi heads MLP in plain jnp (per perf review: at N=B*K=16, hidden=32
        # a separate pallas_call is pure launch/DMA latency; XLA fuses this
        # with the top-k / gather glue instead).
        p = self.p
        roi_flat = roi_feats.reshape(B * K, C)
        h = jnp.maximum(roi_flat @ p["fc1_w"] + p["fc1_b"], 0.0)
        h = jnp.maximum(h @ p["fc2_w"] + p["fc2_b"], 0.0)
        cls_logits = h @ p["cls_w"] + p["cls_b"]
        bbox_pred = h @ p["reg_w"] + p["reg_b"]
        # TODO(synk): relation logits are per object-pair in the original SGG
        # roi_heads; modeled here as a per-proposal linear head.
        rel_logits = h @ p["rel_w"] + p["rel_b"]
        detector_losses = {}  # TODO(synk): losses / distillation (fisher_matrix,
        #                       delta_theta, importance_scores) need targets.

        ncls, nrel = self.num_classes, self.num_rel
        passdown_refine_obj_logits = cls_logits.reshape(B, K, ncls)
        passdown_relation_logits = rel_logits.reshape(B, K, nrel)
        if self.if_parent_model:
            return passdown_refine_obj_logits, passdown_relation_logits

        if self.training:
            losses = {}
            losses.update(detector_losses)
            if not self.relation_on:
                losses.update(proposal_losses)
            return losses

        probs = jax.nn.softmax(passdown_refine_obj_logits, axis=-1)
        result = {
            "boxes": boxes,                                      # (B, K, 4)
            "objectness": obj_scores,                            # (B, K)
            "class_logits": passdown_refine_obj_logits,          # (B, K, Ncls)
            "scores": probs.max(axis=-1),                        # (B, K)
            "labels": jnp.argmax(probs, axis=-1),                # (B, K)
            "bbox_pred": bbox_pred.reshape(B, K, -1),            # (B, K, 4*Ncls)
            "relation_logits": passdown_relation_logits,         # (B, K, Nrel)
        }
        return result

    __call__ = forward


# -----------------------------------------------------------------------------
# main
# -----------------------------------------------------------------------------
if __name__ == "__main__":
    key = jax.random.PRNGKey(0)
    k_img, k_par = jax.random.split(key)

    B, Cin, H, W = 2, 3, 16, 16
    images = jax.random.normal(k_img, (B, Cin, H, W), jnp.float32)  # NCHW input

    params = init_params(k_par, in_ch=Cin, out_ch=16, hidden=32,
                         num_anchors=3, num_classes=8, num_rel=5)
    model = GeneralizedRCNNDengPallas(params, image_size=(H, W), in_ch=Cin,
                                      out_ch=16, hidden=32, num_anchors=3,
                                      num_proposals=8, num_classes=8,
                                      num_rel=5, if_parent_model=False)

    fwd = jax.jit(model.forward)
    result = fwd(images)
    jax.block_until_ready(result)

    assert result["boxes"].shape == (B, 8, 4)
    assert result["class_logits"].shape == (B, 8, 8)
    assert result["relation_logits"].shape == (B, 8, 5)
    print("KERNEL_OK")
</pallas_src>

<mosaic_0001>
module attributes {stable_mosaic.version = 11 : i64} {
  func.func @_fused_backbone_rpn_kernel(%arg0: i32, %arg1: memref<1x16x48xf32, #tpu.memory_space<vmem>>, %arg2: memref<3x48x256xf32, #tpu.memory_space<vmem>>, %arg3: memref<1x256xf32, #tpu.memory_space<vmem>>, %arg4: memref<3x256x256xf32, #tpu.memory_space<vmem>>, %arg5: memref<1x256xf32, #tpu.memory_space<vmem>>, %arg6: memref<3x256x256xf32, #tpu.memory_space<vmem>>, %arg7: memref<1x256xf32, #tpu.memory_space<vmem>>, %arg8: memref<256x256xf32, #tpu.memory_space<vmem>>, %arg9: memref<1x256xf32, #tpu.memory_space<vmem>>, %arg10: memref<1x16x256xf32, #tpu.memory_space<vmem>>, %arg11: memref<1x16x256xf32, #tpu.memory_space<vmem>>, %arg12: memref<18x256xf32, #tpu.memory_space<vmem>>) attributes {dimension_semantics = [#tpu.dimension_semantics<parallel>], iteration_bounds = array<i64: 2>, scalar_prefetch = 0 : i64, scratch_operands = 1 : i64, tpu.core_type = #tpu.core_type<tc>, window_params = [{transform_indices = @transform_0, window_bounds = array<i64: 1, 16, 48>}, {pipeline_mode = #tpu.pipeline_mode<synchronous>, transform_indices = @transform_1, window_bounds = array<i64: 3, 48, 256>}, {pipeline_mode = #tpu.pipeline_mode<synchronous>, transform_indices = @transform_2, window_bounds = array<i64: 1, 256>}, {pipeline_mode = #tpu.pipeline_mode<synchronous>, transform_indices = @transform_3, window_bounds = array<i64: 3, 256, 256>}, {pipeline_mode = #tpu.pipeline_mode<synchronous>, transform_indices = @transform_4, window_bounds = array<i64: 1, 256>}, {pipeline_mode = #tpu.pipeline_mode<synchronous>, transform_indices = @transform_5, window_bounds = array<i64: 3, 256, 256>}, {pipeline_mode = #tpu.pipeline_mode<synchronous>, transform_indices = @transform_6, window_bounds = array<i64: 1, 256>}, {pipeline_mode = #tpu.pipeline_mode<synchronous>, transform_indices = @transform_7, window_bounds = array<i64: 256, 256>}, {pipeline_mode = #tpu.pipeline_mode<synchronous>, transform_indices = @transform_8, window_bounds = array<i64: 1, 256>}, {transform_indices = @transform_9, window_bounds = array<i64: 1, 16, 256>}, {transform_indices = @transform_10, window_bounds = array<i64: 1, 16, 256>}]} {
    %cst = arith.constant 0.000000e+00 : f32
    %0 = vector.broadcast %cst : f32 to vector<18x256xf32>
    %c0 = arith.constant 0 : index
    %c0_0 = arith.constant 0 : index
    %1 = vector.load %arg12[%c0, %c0_0] : memref<18x256xf32, #tpu.memory_space<vmem>>, vector<18x256xf32>
    tpu.vector_store %arg12[%c0, %c0_0], %0 {strides = array<i32>} : memref<18x256xf32, #tpu.memory_space<vmem>>, vector<18x256xf32>,
    %c0_1 = arith.constant 0 : index
    %c0_2 = arith.constant 0 : index
    %c0_3 = arith.constant 0 : index
    %2 = vector.load %arg1[%c0_1, %c0_2, %c0_3] : memref<1x16x48xf32, #tpu.memory_space<vmem>>, vector<1x16x48xf32>
    %3 = vector.shape_cast %2 : vector<1x16x48xf32> to vector<16x48xf32>
    %c1 = arith.constant 1 : index
    %c0_4 = arith.constant 0 : index
    %4 = vector.load %arg12[%c1, %c0_4] : memref<18x256xf32, #tpu.memory_space<vmem>>, vector<16x48xf32>
    tpu.vector_store %arg12[%c1, %c0_4], %3 {strides = array<i32>} : memref<18x256xf32, #tpu.memory_space<vmem>>, vector<16x48xf32>,
    %c0_5 = arith.constant 0 : index
    %c0_6 = arith.constant 0 : index
    %5 = vector.load %arg12[%c0_5, %c0_6] : memref<18x256xf32, #tpu.memory_space<vmem>>, vector<16x48xf32>
    %c0_7 = arith.constant 0 : index
    %c0_8 = arith.constant 0 : index
    %c0_9 = arith.constant 0 : index
    %6 = vector.load %arg2[%c0_7, %c0_8, %c0_9] : memref<3x48x256xf32, #tpu.memory_space<vmem>>, vector<1x48x256xf32>
    %7 = vector.shape_cast %6 : vector<1x48x256xf32> to vector<48x256xf32>
    %cst_10 = arith.constant dense<0.000000e+00> : vector<16x256xf32>
    %8 = tpu.matmul %5, %7, %cst_10 {dimension_numbers = #tpu.dot_dimension_numbers<[1], [0], [0], [1], [0, 0, 1, 1], [], []>} : vector<16x48xf32>, vector<48x256xf32>, vector<16x256xf32> -> vector<16x256xf32>
    %c1_11 = arith.constant 1 : index
    %c0_12 = arith.constant 0 : index
    %9 = vector.load %arg12[%c1_11, %c0_12] : memref<18x256xf32, #tpu.memory_space<vmem>>, vector<16x48xf32>
    %c1_13 = arith.constant 1 : index
    %c0_14 = arith.constant 0 : index
    %c0_15 = arith.constant 0 : index
    %10 = vector.load %arg2[%c1_13, %c0_14, %c0_15] : memref<3x48x256xf32, #tpu.memory_space<vmem>>, vector<1x48x256xf32>
    %11 = vector.shape_cast %10 : vector<1x48x256xf32> to vector<48x256xf32>
    %cst_16 = arith.constant dense<0.000000e+00> : vector<16x256xf32>
    %12 = tpu.matmul %9, %11, %cst_16 {dimension_numbers = #tpu.dot_dimension_numbers<[1], [0], [0], [1], [0, 0, 1, 1], [], []>} : vector<16x48xf32>, vector<48x256xf32>, vector<16x256xf32> -> vector<16x256xf32>
    %13 = arith.addf %8, %12 : vector<16x256xf32>
    %c2 = arith.constant 2 : index
    %c0_17 = arith.constant 0 : index
    %14 = vector.load %arg12[%c2, %c0_17] : memref<18x256xf32, #tpu.memory_space<vmem>>, vector<16x48xf32>
    %c2_18 = arith.constant 2 : index
    %c0_19 = arith.constant 0 : index
    %c0_20 = arith.constant 0 : index
    %15 = vector.load %arg2[%c2_18, %c0_19, %c0_20] : memref<3x48x256xf32, #tpu.memory_space<vmem>>, vector<1x48x256xf32>
    %16 = vector.shape_cast %15 : vector<1x48x256xf32> to vector<48x256xf32>
    %cst_21 = arith.constant dense<0.000000e+00> : vector<16x256xf32>
    %17 = tpu.matmul %14, %16, %cst_21 {dimension_numbers = #tpu.dot_dimension_numbers<[1], [0], [0], [1], [0, 0, 1, 1], [], []>} : vector<16x48xf32>, vector<48x256xf32>, vector<16x256xf32> -> vector<16x256xf32>
    %18 = arith.addf %13, %17 : vector<16x256xf32>
    %c0_22 = arith.constant 0 : index
    %c0_23 = arith.constant 0 : index
    %19 = vector.load %arg3[%c0_22, %c0_23] : memref<1x256xf32, #tpu.memory_space<vmem>>, vector<1x256xf32>
    %20 = vector.shape_cast %19 : vector<1x256xf32> to vector<256xf32>
    %21 = vector.shape_cast %20 : vector<256xf32> to vector<1x256xf32>
    %22 = vector.broadcast %21 : vector<1x256xf32> to vector<16x256xf32>
    %23 = arith.addf %18, %22 : vector<16x256xf32>
    %cst_24 = arith.constant 0.000000e+00 : f32
    %24 = vector.broadcast %cst_24 : f32 to vector<16x256xf32>
    %25 = arith.maximumf %23, %24 : vector<16x256xf32>
    %c1_25 = arith.constant 1 : index
    %c0_26 = arith.constant 0 : index
    %26 = vector.load %arg12[%c1_25, %c0_26] : memref<18x256xf32, #tpu.memory_space<vmem>>, vector<16x256xf32>
    tpu.vector_store %arg12[%c1_25, %c0_26], %25 {strides = array<i32>} : memref<18x256xf32, #tpu.memory_space<vmem>>, vector<16x256xf32>,
    %c0_27 = arith.constant 0 : index
    %c0_28 = arith.constant 0 : index
    %27 = vector.load %arg12[%c0_27, %c0_28] : memref<18x256xf32, #tpu.memory_space<vmem>>, vector<16x256xf32>
    %c0_29 = arith.constant 0 : index
    %c0_30 = arith.constant 0 : index
    %c0_31 = arith.constant 0 : index
    %28 = vector.load %arg4[%c0_29, %c0_30, %c0_31] : memref<3x256x256xf32, #tpu.memory_space<vmem>>, vector<1x256x256xf32>
    %29 = vector.shape_cast %28 : vector<1x256x256xf32> to vector<256x256xf32>
    %cst_32 = arith.constant dense<0.000000e+00> : vector<16x256xf32>
    %30 = tpu.matmul %27, %29, %cst_32 {dimension_numbers = #tpu.dot_dimension_numbers<[1], [0], [0], [1], [0, 0, 1, 1], [], []>} : vector<16x256xf32>, vector<256x256xf32>, vector<16x256xf32> -> vector<16x256xf32>
    %c1_33 = arith.constant 1 : index
    %c0_34 = arith.constant 0 : index
    %31 = vector.load %arg12[%c1_33, %c0_34] : memref<18x256xf32, #tpu.memory_space<vmem>>, vector<16x256xf32>
    %c1_35 = arith.constant 1 : index
    %c0_36 = arith.constant 0 : index
    %c0_37 = arith.constant 0 : index
    %32 = vector.load %arg4[%c1_35, %c0_36, %c0_37] : memref<3x256x256xf32, #tpu.memory_space<vmem>>, vector<1x256x256xf32>
    %33 = vector.shape_cast %32 : vector<1x256x256xf32> to vector<256x256xf32>
    %cst_38 = arith.constant dense<0.000000e+00> : vector<16x256xf32>
    %34 = tpu.matmul %31, %33, %cst_38 {dimension_numbers = #tpu.dot_dimension_numbers<[1], [0], [0], [1], [0, 0, 1, 1], [], []>} : vector<16x256xf32>, vector<256x256xf32>, vector<16x256xf32> -> vector<16x256xf32>
    %35 = arith.addf %30, %34 : vector<16x256xf32>
    %c2_39 = arith.constant 2 : index
    %c0_40 = arith.constant 0 : index
    %36 = vector.load %arg12[%c2_39, %c0_40] : memref<18x256xf32, #tpu.memory_space<vmem>>, vector<16x256xf32>
    %c2_41 = arith.constant 2 : index
    %c0_42 = arith.constant 0 : index
    %c0_43 = arith.constant 0 : index
    %37 = vector.load %arg4[%c2_41, %c0_42, %c0_43] : memref<3x256x256xf32, #tpu.memory_space<vmem>>, vector<1x256x256xf32>
    %38 = vector.shape_cast %37 : vector<1x256x256xf32> to vector<256x256xf32>
    %cst_44 = arith.constant dense<0.000000e+00> : vector<16x256xf32>
    %39 = tpu.matmul %36, %38, %cst_44 {dimension_numbers = #tpu.dot_dimension_numbers<[1], [0], [0], [1], [0, 0, 1, 1], [], []>} : vector<16x256xf32>, vector<256x256xf32>, vector<16x256xf32> -> vector<16x256xf32>
    %40 = arith.addf %35, %39 : vector<16x256xf32>
    %c0_45 = arith.constant 0 : index
    %c0_46 = arith.constant 0 : index
    %41 = vector.load %arg5[%c0_45, %c0_46] : memref<1x256xf32, #tpu.memory_space<vmem>>, vector<1x256xf32>
    %42 = vector.shape_cast %41 : vector<1x256xf32> to vector<256xf32>
    %43 = vector.shape_cast %42 : vector<256xf32> to vector<1x256xf32>
    %44 = vector.broadcast %43 : vector<1x256xf32> to vector<16x256xf32>
    %45 = arith.addf %40, %44 : vector<16x256xf32>
    %cst_47 = arith.constant 0.000000e+00 : f32
    %46 = vector.broadcast %cst_47 : f32 to vector<16x256xf32>
    %47 = arith.maximumf %45, %46 : vector<16x256xf32>
    %c0_48 = arith.constant 0 : index
    %c0_49 = arith.constant 0 : index
    %c0_50 = arith.constant 0 : index
    %48 = vector.load %arg10[%c0_48, %c0_49, %c0_50] : memref<1x16x256xf32, #tpu.memory_space<vmem>>, vector<1x16x256xf32>
    %49 = vector.shape_cast %48 : vector<1x16x256xf32> to vector<16x256xf32>
    %50 = vector.shape_cast %47 : vector<16x256xf32> to vector<1x16x256xf32>
    tpu.vector_store %arg10[%c0_48, %c0_49, %c0_50], %50 {strides = array<i32>} : memref<1x16x256xf32, #tpu.memory_space<vmem>>, vector<1x16x256xf32>,
    %c1_51 = arith.constant 1 : index
    %c0_52 = arith.constant 0 : index
    %51 = vector.load %arg12[%c1_51, %c0_52] : memref<18x256xf32, #tpu.memory_space<vmem>>, vector<16x256xf32>
    tpu.vector_store %arg12[%c1_51, %c0_52], %47 {strides = array<i32>} : memref<18x256xf32, #tpu.memory_space<vmem>>, vector<16x256xf32>,
    %c0_53 = arith.constant 0 : index
    %c0_54 = arith.constant 0 : index
    %52 = vector.load %arg12[%c0_53, %c0_54] : memref<18x256xf32, #tpu.memory_space<vmem>>, vector<16x256xf32>
    %c0_55 = arith.constant 0 : index
    %c0_56 = arith.constant 0 : index
    %c0_57 = arith.constant 0 : index
    %53 = vector.load %arg6[%c0_55, %c0_56, %c0_57] : memref<3x256x256xf32, #tpu.memory_space<vmem>>, vector<1x256x256xf32>
    %54 = vector.shape_cast %53 : vector<1x256x256xf32> to vector<256x256xf32>
    %cst_58 = arith.constant dense<0.000000e+00> : vector<16x256xf32>
    %55 = tpu.matmul %52, %54, %cst_58 {dimension_numbers = #tpu.dot_dimension_numbers<[1], [0], [0], [1], [0, 0, 1, 1], [], []>} : vector<16x256xf32>, vector<256x256xf32>, vector<16x256xf32> -> vector<16x256xf32>
    %c1_59 = arith.constant 1 : index
    %c0_60 = arith.constant 0 : index
    %56 = vector.load %arg12[%c1_59, %c0_60] : memref<18x256xf32, #tpu.memory_space<vmem>>, vector<16x256xf32>
    %c1_61 = arith.constant 1 : index
    %c0_62 = arith.constant 0 : index
    %c0_63 = arith.constant 0 : index
    %57 = vector.load %arg6[%c1_61, %c0_62, %c0_63] : memref<3x256x256xf32, #tpu.memory_space<vmem>>, vector<1x256x256xf32>
    %58 = vector.shape_cast %57 : vector<1x256x256xf32> to vector<256x256xf32>
    %cst_64 = arith.constant dense<0.000000e+00> : vector<16x256xf32>
    %59 = tpu.matmul %56, %58, %cst_64 {dimension_numbers = #tpu.dot_dimension_numbers<[1], [0], [0], [1], [0, 0, 1, 1], [], []>} : vector<16x256xf32>, vector<256x256xf32>, vector<16x256xf32> -> vector<16x256xf32>
    %60 = arith.addf %55, %59 : vector<16x256xf32>
    %c2_65 = arith.constant 2 : index
    %c0_66 = arith.constant 0 : index
    %61 = vector.load %arg12[%c2_65, %c0_66] : memref<18x256xf32, #tpu.memory_space<vmem>>, vector<16x256xf32>
    %c2_67 = arith.constant 2 : index
    %c0_68 = arith.constant 0 : index
    %c0_69 = arith.constant 0 : index
    %62 = vector.load %arg6[%c2_67, %c0_68, %c0_69] : memref<3x256x256xf32, #tpu.memory_space<vmem>>, vector<1x256x256xf32>
    %63 = vector.shape_cast %62 : vector<1x256x256xf32> to vector<256x256xf32>
    %cst_70 = arith.constant dense<0.000000e+00> : vector<16x256xf32>
    %64 = tpu.matmul %61, %63, %cst_70 {dimension_numbers = #tpu.dot_dimension_numbers<[1], [0], [0], [1], [0, 0, 1, 1], [], []>} : vector<16x256xf32>, vector<256x256xf32>, vector<16x256xf32> -> vector<16x256xf32>
    %65 = arith.addf %60, %64 : vector<16x256xf32>
    %c0_71 = arith.constant 0 : index
    %c0_72 = arith.constant 0 : index
    %66 = vector.load %arg7[%c0_71, %c0_72] : memref<1x256xf32, #tpu.memory_space<vmem>>, vector<1x256xf32>
    %67 = vector.shape_cast %66 : vector<1x256xf32> to vector<256xf32>
    %68 = vector.shape_cast %67 : vector<256xf32> to vector<1x256xf32>
    %69 = vector.broadcast %68 : vector<1x256xf32> to vector<16x256xf32>
    %70 = arith.addf %65, %69 : vector<16x256xf32>
    %cst_73 = arith.constant 0.000000e+00 : f32
    %71 = vector.broadcast %cst_73 : f32 to vector<16x256xf32>
    %72 = arith.maximumf %70, %71 : vector<16x256xf32>
    %c0_74 = arith.constant 0 : index
    %c0_75 = arith.constant 0 : index
    %73 = vector.load %arg8[%c0_74, %c0_75] : memref<256x256xf32, #tpu.memory_space<vmem>>, vector<256x256xf32>
    %cst_76 = arith.constant dense<0.000000e+00> : vector<16x256xf32>
    %74 = tpu.matmul %72, %73, %cst_76 {dimension_numbers = #tpu.dot_dimension_numbers<[1], [0], [0], [1], [0, 0, 1, 1], [], []>} : vector<16x256xf32>, vector<256x256xf32>, vector<16x256xf32> -> vector<16x256xf32>
    %c0_77 = arith.constant 0 : index
    %c0_78 = arith.constant 0 : index
    %75 = vector.load %arg9[%c0_77, %c0_78] : memref<1x256xf32, #tpu.memory_space<vmem>>, vector<1x256xf32>
    %76 = vector.shape_cast %75 : vector<1x256xf32> to vector<256xf32>
    %77 = vector.shape_cast %76 : vector<256xf32> to vector<1x256xf32>
    %78 = vector.broadcast %77 : vector<1x256xf32> to vector<16x256xf32>
    %79 = arith.addf %74, %78 : vector<16x256xf32>
    %c0_79 = arith.constant 0 : index
    %c0_80 = arith.constant 0 : index
    %c0_81 = arith.constant 0 : index
    %80 = vector.load %arg11[%c0_79, %c0_80, %c0_81] : memref<1x16x256xf32, #tpu.memory_space<vmem>>, vector<1x16x256xf32>
    %81 = vector.shape_cast %80 : vector<1x16x256xf32> to vector<16x256xf32>
    %82 = vector.shape_cast %79 : vector<16x256xf32> to vector<1x16x256xf32>
    tpu.vector_store %arg11[%c0_79, %c0_80, %c0_81], %82 {strides = array<i32>} : memref<1x16x256xf32, #tpu.memory_space<vmem>>, vector<1x16x256xf32>,
    return
  }
  func.func @transform_0(%arg0: i32) -> (i32, i32, i32) {
    %c0_i32 = arith.constant 0 : i32
    %c0_i32_0 = arith.constant 0 : i32
    %c0_i32_1 = arith.constant 0 : i32
    return %arg0, %c0_i32, %c0_i32_0 : i32, i32, i32
  }
  func.func @transform_1(%arg0: i32) -> (i32, i32, i32) {
    %c0_i32 = arith.constant 0 : i32
    %c0_i32_0 = arith.constant 0 : i32
    %c0_i32_1 = arith.constant 0 : i32
    %c0_i32_2 = arith.constant 0 : i32
    return %c0_i32, %c0_i32_0, %c0_i32_1 : i32, i32, i32
  }
  func.func @transform_2(%arg0: i32) -> (i32, i32) {
    %c0_i32 = arith.constant 0 : i32
    %c0_i32_0 = arith.constant 0 : i32
    %c0_i32_1 = arith.constant 0 : i32
    return %c0_i32, %c0_i32_0 : i32, i32
  }
  func.func @transform_3(%arg0: i32) -> (i32, i32, i32) {
    %c0_i32 = arith.constant 0 : i32
    %c0_i32_0 = arith.constant 0 : i32
    %c0_i32_1 = arith.constant 0 : i32
    %c0_i32_2 = arith.constant 0 : i32
    return %c0_i32, %c0_i32_0, %c0_i32_1 : i32, i32, i32
  }
  func.func @transform_4(%arg0: i32) -> (i32, i32) {
    %c0_i32 = arith.constant 0 : i32
    %c0_i32_0 = arith.constant 0 : i32
    %c0_i32_1 = arith.constant 0 : i32
    return %c0_i32, %c0_i32_0 : i32, i32
  }
  func.func @transform_5(%arg0: i32) -> (i32, i32, i32) {
    %c0_i32 = arith.constant 0 : i32
    %c0_i32_0 = arith.constant 0 : i32
    %c0_i32_1 = arith.constant 0 : i32
    %c0_i32_2 = arith.constant 0 : i32
    return %c0_i32, %c0_i32_0, %c0_i32_1 : i32, i32, i32
  }
  func.func @transform_6(%arg0: i32) -> (i32, i32) {
    %c0_i32 = arith.constant 0 : i32
    %c0_i32_0 = arith.constant 0 : i32
    %c0_i32_1 = arith.constant 0 : i32
    return %c0_i32, %c0_i32_0 : i32, i32
  }
  func.func @transform_7(%arg0: i32) -> (i32, i32) {
    %c0_i32 = arith.constant 0 : i32
    %c0_i32_0 = arith.constant 0 : i32
    %c0_i32_1 = arith.constant 0 : i32
    return %c0_i32, %c0_i32_0 : i32, i32
  }
  func.func @transform_8(%arg0: i32) -> (i32, i32) {
    %c0_i32 = arith.constant 0 : i32
    %c0_i32_0 = arith.constant 0 : i32
    %c0_i32_1 = arith.constant 0 : i32
    return %c0_i32, %c0_i32_0 : i32, i32
  }
  func.func @transform_9(%arg0: i32) -> (i32, i32, i32) {
    %c0_i32 = arith.constant 0 : i32
    %c0_i32_0 = arith.constant 0 : i32
    %c0_i32_1 = arith.constant 0 : i32
    return %arg0, %c0_i32, %c0_i32_0 : i32, i32, i32
  }
  func.func @transform_10(%arg0: i32) -> (i32, i32, i32) {
    %c0_i32 = arith.constant 0 : i32
    %c0_i32_0 = arith.constant 0 : i32
    %c0_i32_1 = arith.constant 0 : i32
    return %arg0, %c0_i32, %c0_i32_0 : i32, i32, i32
  }
}

</mosaic_0001>

<llo_original>
// kernel: custom-call
$region0: #{custom-call}
  #allocation0 [shape = 'u32[8,128]{1,0}', space=vmem, size = 0x1000, scoped, tag = 'scratch']
  #allocation1 [shape = 'u32[8,128]{1,0}', space=vmem, size = 0x1000, scoped, tag = 'scratch']
  #allocation2 [shape = 'u32[8,128]{1,0}', space=vmem, size = 0x1000, scoped, tag = 'scratch']
  #allocation3 [shape = 'u32[8,128]{1,0}', space=vmem, size = 0x1000, scoped, tag = 'scratch']
  #allocation4 [shape = 'u32[8,128]{1,0}', space=vmem, size = 0x1000, scoped, tag = 'scratch']
  #allocation5 [shape = 'u32[8,128]{1,0}', space=vmem, size = 0x1000, scoped, tag = 'scratch']
  #allocation6 [shape = 'u32[8,128]{1,0}', space=vmem, size = 0x1000, scoped, tag = 'scratch']
  %s0 = inlined_call_operand.vmem [shape: f32[2,768], index: 0, kind: input, shape index: {}]
  %s1 = inlined_call_operand.hbm [shape: f32[2,8], index: 1, kind: output, shape index: {0}]
  %s2 = inlined_call_operand.vmem [shape: s32[2,8], index: 2, kind: output, shape index: {1}]
  %3 = xla_tuple %s1, %s2
  %4 = xla_tuple 2147483648, 2147483647
  $region1: #{custom-call} parent=0
    #allocation7 [shape = 'u8[4096]{0}', space=vmem, size = 0x1000, scoped, tag = 'operand span for operand 1']
    #allocation8 [shape = 'u8[1024]{0}', space=vmem, size = 0x400, scoped, tag = 'packed  for operand 1']
    #allocation9 [shape = 's32[1]{0}', space=sflag, size = 0x4, scoped, tag = 'scoped memory for custom-call']
    #allocation10 [shape = 'u8[4096]{0}', space=vmem, size = 0x1000, scoped, tag = 'operand span for operand 2']
    #allocation11 [shape = 'u8[1024]{0}', space=vmem, size = 0x400, scoped, tag = 'packed  for operand 2']
    #allocation12 [shape = 'f32[8,2]{1,0:T(8,128)}', space=vmem, size = 0x1000, scoped, tag = 'scoped memory for custom-call']
    #allocation13 [shape = 'f32[8,2]{1,0:T(8,128)}', space=vmem, size = 0x1000, scoped, tag = 'scoped memory for custom-call']
    #allocation14 [shape = 's32[8,2]{1,0:T(8,128)}', space=vmem, size = 0x1000, scoped, tag = 'scoped memory for custom-call']
    #allocation15 [shape = 's32[8,2]{1,0:T(8,128)}', space=vmem, size = 0x1000, scoped, tag = 'scoped memory for custom-call']
    %5 = vsyncpa [#allocation9], 0
    %6 = xla_tuple [#allocation7], [#allocation10]
    %7 = vst [vmem:[#allocation12] sm:$0xff] 2147483648
    %8 = vst [vmem:[#allocation14] sm:$0xff] 2147483647
    %9 = xla_tuple [#allocation12], [#allocation14]
    %10 = xla_tuple [#allocation13], [#allocation15]
    $region2: #{custom-call} parent=1
      #allocation16 [shape = 'u8[8192]{0}', space=vmem, size = 0x2000, scoped, tag = 'operand span for operand 0']
      #allocation17 [shape = 's32[2048]{0}', space=vmem, size = 0x2000, scoped, tag = 'scoped memory for custom-call']
      // Predicated region
      $region3: #{custom-call} parent=2 // pred_check
        _
      $region4: #{custom-call} parent=2 // pred_check_branch
        %12 = sbr.rel (0) target = $region6
      $region5: #{custom-call} parent=2 // pred_region
        // Predicated region
        $region7: #{custom-call} parent=5 // pred_check
          _
        $region8: #{custom-call} parent=5 // pred_check_branch
          %14 = sbr.rel (0) target = $region10
        $region9: #{custom-call} parent=5 // pred_region
          // Predicated region
          $region11: #{custom-call} parent=9 // pred_check
            _
          $region12: #{custom-call} parent=9 // pred_check_branch
            %16 = sbr.rel (0) target = $region14
          $region13: #{custom-call} parent=9 // pred_region
            %s17 = scalar_lea.vmem %s0, 8
            %s18 = scalar_lea.vmem [#allocation16], 8
            loop: start=0, step=1, limit=1
            $region15: #{custom-call} parent=13 // loop_pre_header
              _
            $region16: #{custom-call} parent=13 // loop_header
              %s20 = sphi 0, %s24
              %p21 = scmp.ge.s32.totalorder %s20, 1
              %s25 = sphi %s0, %s0
              %s26 = sphi [#allocation16], [#allocation16]
            $region17: #{custom-call} parent=13 // loop_header_branch
              %23 = sbr.rel (%p21) target = $region21
            $region18: #{custom-call} parent=13 // loop_body
              %v27 = vld [vmem:[%s25] sm:$0xff]
              %28 = vst [vmem:[%s26] sm:$0xff] %v27
            $region19: #{custom-call} parent=13 // loop_footer
              %s24 = sadd.s32 1, %s20
            $region20: #{custom-call} parent=13 // loop_footer_branch
              %19 = sbr.rel target = $region16
            $region21: #{custom-call} parent=13 // loop_exit
              _
            %s30 = ssub.s32 16, 1
            loop: start=0, step=1, limit=1
            $region22: #{custom-call} parent=13 // loop_pre_header
              _
            $region23: #{custom-call} parent=13 // loop_header
              %s32 = sphi 0, %s36
              %p33 = scmp.ge.s32.totalorder %s32, 1
              %s37 = sphi %s17, %s17
              %s38 = sphi %s18, %s18
            $region24: #{custom-call} parent=13 // loop_header_branch
              %35 = sbr.rel (%p33) target = $region28
            $region25: #{custom-call} parent=13 // loop_body
              %v39 = vld [vmem:[%s37] sm:%s30]
              %40 = vst [vmem:[%s38] sm:%s30] %v39
            $region26: #{custom-call} parent=13 // loop_footer
              %s36 = sadd.s32 1, %s32
            $region27: #{custom-call} parent=13 // loop_footer_branch
              %31 = sbr.rel target = $region23
            $region28: #{custom-call} parent=13 // loop_exit
              _
          $region14: #{custom-call} parent=9 // pred_fallthru
            _
        $region10: #{custom-call} parent=5 // pred_fallthru
          _
        %41 = vnop
      $region6: #{custom-call} parent=2 // pred_fallthru
        _
      // Predicated region
      $region29: #{custom-call} parent=2 // pred_check
        _
      $region30: #{custom-call} parent=2 // pred_check_branch
        %43 = sbr.rel (0) target = $region32
      $region31: #{custom-call} parent=2 // pred_region
        _
      $region32: #{custom-call} parent=2 // pred_fallthru
        _
      %v44 = vlaneseq
      %v45 = vand.u32 %v44, 127
      %v46 = vlaneseq
      %v47 = vshrl.u32 %v46, 7
      %v48 = vshrl.u32 %v47, 1
      %v49 = vand.u32 %v47, 1
      %v50 = vmul.u32 %v48, 128
      %v51 = vadd.s32 %v45, %v50
      %v53 = vld [vmem:[#allocation16] sm:$0xff]
      %vm54 = vcmp.lt.s32.totalorder %v53, 0
      %v55 = vsub.s32 2147483647, %v53
      %v56 = vsel %vm54, %v55, %v53
      %vm58 = vcmp.lt.s32.totalorder %v51, 768
      %v59 = vsel %vm58, %v56, 2147483648
      %60 = vst [vmem:[#allocation16] sm:$0xff] %v59
      %s61 = scalar_lea.vmem [#allocation16], 8
      %v62 = vld [vmem:[%s61] sm:$0xff]
      %vm63 = vcmp.lt.s32.totalorder %v62, 0
      %v64 = vsub.s32 2147483647, %v62
      %v65 = vsel %vm63, %v64, %v62
      %v66 = vadd.s32 %v51, 512
      %vm67 = vcmp.lt.s32.totalorder %v66, 768
      %v68 = vsel %vm67, %v65, 2147483648
      %69 = vst [vmem:[%s61] sm:$0xff] %v68
      %v70 = vlaneseq
      %v71 = vand.u32 %v70, 127
      %v72 = vlaneseq
      %v73 = vshrl.u32 %v72, 7
      %v74 = vshrl.u32 %v73, 1
      %v75 = vand.u32 %v73, 1
      %v76 = vmul.u32 %v74, 128
      %v77 = vadd.s32 %v71, %v76
      %80 = vst [vmem:[#allocation17] sm:$0xff] %v77
      %v81 = vadd.s32 %v77, 512
      %s82 = scalar_lea.vmem [#allocation17], 8
      %83 = vst [vmem:[%s82] sm:$0xff] %v81
      %84 = xla_tuple [#allocation16], [#allocation17]
      %85 = vst [vmem:[#allocation13] sm:$0xff] 2147483648
      %86 = vst [vmem:[#allocation15] sm:$0xff] 2147483647
      %87 = xla_tuple [#allocation13], [#allocation15]
      loop: start=0, step=1, limit=8
      $region33: #{custom-call} parent=2 // loop_pre_header
        _
      $region34: #{custom-call} parent=2 // loop_header
        %s89 = sphi 0, %s93
        %p90 = scmp.ge.s32.totalorder %s89, 8
      $region35: #{custom-call} parent=2 // loop_header_branch
        %92 = sbr.rel (%p90) target = $region39
      $region36: #{custom-call} parent=2 // loop_body
        %v94 = vld [vmem:[#allocation16] sm:$0xff]
        %v95 = vld [vmem:[#allocation17] sm:$0xff]
        %96 = xla_tuple %v94, %v95
        %s97 = scalar_lea.vmem [#allocation16], 8
        %v98 = vld [vmem:[%s97] sm:$0xff]
        %s99 = scalar_lea.vmem [#allocation17], 8
        %v100 = vld [vmem:[%s99] sm:$0xff]
        %101 = xla_tuple %v98, %v100
        %vm102 = vcmp.gt.s32.totalorder %v98, %v94
        %vm103 = vcmp.eq.s32.totalorder %v98, %v94
        %vm104 = vcmp.lt.s32.totalorder %v100, %v95
        %vm105 = vmand %vm103, %vm104
        %vm106 = vmor %vm102, %vm105
        %v107 = vsel %vm106, %v98, %v94
        %v108 = vsel %vm106, %v100, %v95
        %109 = xla_tuple %v107, %v108
        %v110 = vrot.slane %v107, 2
        %v111 = vrot.slane %v108, 2
        %112 = xla_tuple %v110, %v111
        %vm113 = vcmp.gt.s32.totalorder %v110, %v107
        %vm114 = vcmp.eq.s32.totalorder %v110, %v107
        %vm115 = vcmp.lt.s32.totalorder %v111, %v108
        %vm116 = vmand %vm114, %vm115
        %vm117 = vmor %vm113, %vm116
        %v118 = vsel %vm117, %v110, %v107
        %v119 = vsel %vm117, %v111, %v108
        %120 = xla_tuple %v118, %v119
        %v121 = vrot.slane %v118, 2
        %v122 = vrot.slane %v119, 2
        %123 = xla_tuple %v121, %v122
        %vm124 = vcmp.gt.s32.totalorder %v121, %v118
        %vm125 = vcmp.eq.s32.totalorder %v121, %v118
        %vm126 = vcmp.lt.s32.totalorder %v122, %v119
        %vm127 = vmand %vm125, %vm126
        %vm128 = vmor %vm124, %vm127
        %v129 = vsel %vm128, %v121, %v118
        %v130 = vsel %vm128, %v122, %v119
        %131 = xla_tuple %v129, %v130
        %v132 = vrot.slane %v129, 2
        %v133 = vrot.slane %v130, 2
        %134 = xla_tuple %v132, %v133
        %vm135 = vcmp.gt.s32.totalorder %v132, %v129
        %vm136 = vcmp.eq.s32.totalorder %v132, %v129
        %vm137 = vcmp.lt.s32.totalorder %v133, %v130
        %vm138 = vmand %vm136, %vm137
        %vm139 = vmor %vm135, %vm138
        %v140 = vsel %vm139, %v132, %v129
        %v141 = vsel %vm139, %v133, %v130
        %142 = xla_tuple %v140, %v141
        %143 = vxpose.xlu0.b32.start [1/16] %v140, 128
        %144 = vxpose.xlu0.b32.cont [2/16] %v140, 128
        %145 = vxpose.xlu0.b32.cont [3/16] %v140, 128
        %146 = vxpose.xlu0.b32.cont [4/16] %v140, 128
        %147 = vxpose.xlu0.b32.cont [5/16] %v140, 128
        %148 = vxpose.xlu0.b32.cont [6/16] %v140, 128
        %149 = vxpose.xlu0.b32.cont [7/16] %v140, 128
        %150 = vxpose.xlu0.b32.cont [8/16] %v140, 128
        %151 = vxpose.xlu0.b32.cont [9/16] %v140, 128
        %152 = vxpose.xlu0.b32.cont [10/16] %v140, 128
        %153 = vxpose.xlu0.b32.cont [11/16] %v140, 128
        %154 = vxpose.xlu0.b32.cont [12/16] %v140, 128
        %155 = vxpose.xlu0.b32.cont [13/16] %v140, 128
        %156 = vxpose.xlu0.b32.cont [14/16] %v140, 128
        %157 = vxpose.xlu0.b32.cont [15/16] %v140, 128
        %158 = vxpose.xlu0.b32.end [16/16] %v140, 128
        %v159 = vpop.trf.xlu0
        %v160 = vpop.trf.xlu0
        %v161 = vpop.trf.xlu0
        %v162 = vpop.trf.xlu0
        %v163 = vpop.trf.xlu0
        %v164 = vpop.trf.xlu0
        %v165 = vpop.trf.xlu0
        %v166 = vpop.trf.xlu0
        %v167 = vpop.trf.xlu0
        %v168 = vpop.trf.xlu0
        %v169 = vpop.trf.xlu0
        %v170 = vpop.trf.xlu0
        %v171 = vpop.trf.xlu0
        %v172 = vpop.trf.xlu0
        %v173 = vpop.trf.xlu0
        %v174 = vpop.trf.xlu0
        %175 = vxpose.xlu0.b32.start [1/16] %v141, 128
        %176 = vxpose.xlu0.b32.cont [2/16] %v141, 128
        %177 = vxpose.xlu0.b32.cont [3/16] %v141, 128
        %178 = vxpose.xlu0.b32.cont [4/16] %v141, 128
        %179 = vxpose.xlu0.b32.cont [5/16] %v141, 128
        %180 = vxpose.xlu0.b32.cont [6/16] %v141, 128
        %181 = vxpose.xlu0.b32.cont [7/16] %v141, 128
        %182 = vxpose.xlu0.b32.cont [8/16] %v141, 128
        %183 = vxpose.xlu0.b32.cont [9/16] %v141, 128
        %184 = vxpose.xlu0.b32.cont [10/16] %v141, 128
        %185 = vxpose.xlu0.b32.cont [11/16] %v141, 128
        %186 = vxpose.xlu0.b32.cont [12/16] %v141, 128
        %187 = vxpose.xlu0.b32.cont [13/16] %v141, 128
        %188 = vxpose.xlu0.b32.cont [14/16] %v141, 128
        %189 = vxpose.xlu0.b32.cont [15/16] %v141, 128
        %190 = vxpose.xlu0.b32.end [16/16] %v141, 128
        %v191 = vpop.trf.xlu0
        %v192 = vpop.trf.xlu0
        %v193 = vpop.trf.xlu0
        %v194 = vpop.trf.xlu0
        %v195 = vpop.trf.xlu0
        %v196 = vpop.trf.xlu0
        %v197 = vpop.trf.xlu0
        %v198 = vpop.trf.xlu0
        %v199 = vpop.trf.xlu0
        %v200 = vpop.trf.xlu0
        %v201 = vpop.trf.xlu0
        %v202 = vpop.trf.xlu0
        %v203 = vpop.trf.xlu0
        %v204 = vpop.trf.xlu0
        %v205 = vpop.trf.xlu0
        %v206 = vpop.trf.xlu0
        %207 = xla_tuple %v159, %v191
        %208 = xla_tuple %v160, %v192
        %vm209 = vcmp.gt.s32.totalorder %v160, %v159
        %vm210 = vcmp.eq.s32.totalorder %v160, %v159
        %vm211 = vcmp.lt.s32.totalorder %v192, %v191
        %vm212 = vmand %vm210, %vm211
        %vm213 = vmor %vm209, %vm212
        %v214 = vsel %vm213, %v160, %v159
        %v215 = vsel %vm213, %v192, %v191
        %216 = xla_tuple %v214, %v215
        %217 = xla_tuple %v161, %v193
        %vm218 = vcmp.gt.s32.totalorder %v161, %v214
        %vm219 = vcmp.eq.s32.totalorder %v161, %v214
        %vm220 = vcmp.lt.s32.totalorder %v193, %v215
        %vm221 = vmand %vm219, %vm220
        %vm222 = vmor %vm218, %vm221
        %v223 = vsel %vm222, %v161, %v214
        %v224 = vsel %vm222, %v193, %v215
        %225 = xla_tuple %v223, %v224
        %226 = xla_tuple %v162, %v194
        %vm227 = vcmp.gt.s32.totalorder %v162, %v223
        %vm228 = vcmp.eq.s32.totalorder %v162, %v223
        %vm229 = vcmp.lt.s32.totalorder %v194, %v224
        %vm230 = vmand %vm228, %vm229
        %vm231 = vmor %vm227, %vm230
        %v232 = vsel %vm231, %v162, %v223
        %v233 = vsel %vm231, %v194, %v224
        %234 = xla_tuple %v232, %v233
        %235 = xla_tuple %v163, %v195
        %vm236 = vcmp.gt.s32.totalorder %v163, %v232
        %vm237 = vcmp.eq.s32.totalorder %v163, %v232
        %vm238 = vcmp.lt.s32.totalorder %v195, %v233
        %vm239 = vmand %vm237, %vm238
        %vm240 = vmor %vm236, %vm239
        %v241 = vsel %vm240, %v163, %v232
        %v242 = vsel %vm240, %v195, %v233
        %243 = xla_tuple %v241, %v242
        %244 = xla_tuple %v164, %v196
        %vm245 = vcmp.gt.s32.totalorder %v164, %v241
        %vm246 = vcmp.eq.s32.totalorder %v164, %v241
        %vm247 = vcmp.lt.s32.totalorder %v196, %v242
        %vm248 = vmand %vm246, %vm247
        %vm249 = vmor %vm245, %vm248
        %v250 = vsel %vm249, %v164, %v241
        %v251 = vsel %vm249, %v196, %v242
        %252 = xla_tuple %v250, %v251
        %253 = xla_tuple %v165, %v197
        %vm254 = vcmp.gt.s32.totalorder %v165, %v250
        %vm255 = vcmp.eq.s32.totalorder %v165, %v250
        %vm256 = vcmp.lt.s32.totalorder %v197, %v251
        %vm257 = vmand %vm255, %vm256
        %vm258 = vmor %vm254, %vm257
        %v259 = vsel %vm258, %v165, %v250
        %v260 = vsel %vm258, %v197, %v251
        %261 = xla_tuple %v259, %v260
        %262 = xla_tuple %v166, %v198
        %vm263 = vcmp.gt.s32.totalorder %v166, %v259
        %vm264 = vcmp.eq.s32.totalorder %v166, %v259
        %vm265 = vcmp.lt.s32.totalorder %v198, %v260
        %vm266 = vmand %vm264, %vm265
        %vm267 = vmor %vm263, %vm266
        %v268 = vsel %vm267, %v166, %v259
        %v269 = vsel %vm267, %v198, %v260
        %270 = xla_tuple %v268, %v269
        %271 = xla_tuple %v167, %v199
        %vm272 = vcmp.gt.s32.totalorder %v167, %v268
        %vm273 = vcmp.eq.s32.totalorder %v167, %v268
        %vm274 = vcmp.lt.s32.totalorder %v199, %v269
        %vm275 = vmand %vm273, %vm274
        %vm276 = vmor %vm272, %vm275
        %v277 = vsel %vm276, %v167, %v268
        %v278 = vsel %vm276, %v199, %v269
        %279 = xla_tuple %v277, %v278
        %280 = xla_tuple %v168, %v200
        %vm281 = vcmp.gt.s32.totalorder %v168, %v277
        %vm282 = vcmp.eq.s32.totalorder %v168, %v277
        %vm283 = vcmp.lt.s32.totalorder %v200, %v278
        %vm284 = vmand %vm282, %vm283
        %vm285 = vmor %vm281, %vm284
        %v286 = vsel %vm285, %v168, %v277
        %v287 = vsel %vm285, %v200, %v278
        %288 = xla_tuple %v286, %v287
        %289 = xla_tuple %v169, %v201
        %vm290 = vcmp.gt.s32.totalorder %v169, %v286
        %vm291 = vcmp.eq.s32.totalorder %v169, %v286
        %vm292 = vcmp.lt.s32.totalorder %v201, %v287
        %vm293 = vmand %vm291, %vm292
        %vm294 = vmor %vm290, %vm293
        %v295 = vsel %vm294, %v169, %v286
        %v296 = vsel %vm294, %v201, %v287
        %297 = xla_tuple %v295, %v296
        %298 = xla_tuple %v170, %v202
        %vm299 = vcmp.gt.s32.totalorder %v170, %v295
        %vm300 = vcmp.eq.s32.totalorder %v170, %v295
        %vm301 = vcmp.lt.s32.totalorder %v202, %v296
        %vm302 = vmand %vm300, %vm301
        %vm303 = vmor %vm299, %vm302
        %v304 = vsel %vm303, %v170, %v295
        %v305 = vsel %vm303, %v202, %v296
        %306 = xla_tuple %v304, %v305
        %307 = xla_tuple %v171, %v203
        %vm308 = vcmp.gt.s32.totalorder %v171, %v304
        %vm309 = vcmp.eq.s32.totalorder %v171, %v304
        %vm310 = vcmp.lt.s32.totalorder %v203, %v305
        %vm311 = vmand %vm309, %vm310
        %vm312 = vmor %vm308, %vm311
        %v313 = vsel %vm312, %v171, %v304
        %v314 = vsel %vm312, %v203, %v305
        %315 = xla_tuple %v313, %v314
        %316 = xla_tuple %v172, %v204
        %vm317 = vcmp.gt.s32.totalorder %v172, %v313
        %vm318 = vcmp.eq.s32.totalorder %v172, %v313
        %vm319 = vcmp.lt.s32.totalorder %v204, %v314
        %vm320 = vmand %vm318, %vm319
        %vm321 = vmor %vm317, %vm320
        %v322 = vsel %vm321, %v172, %v313
        %v323 = vsel %vm321, %v204, %v314
        %324 = xla_tuple %v322, %v323
        %325 = xla_tuple %v173, %v205
        %vm326 = vcmp.gt.s32.totalorder %v173, %v322
        %vm327 = vcmp.eq.s32.totalorder %v173, %v322
        %vm328 = vcmp.lt.s32.totalorder %v205, %v323
        %vm329 = vmand %vm327, %vm328
        %vm330 = vmor %vm326, %vm329
        %v331 = vsel %vm330, %v173, %v322
        %v332 = vsel %vm330, %v205, %v323
        %333 = xla_tuple %v331, %v332
        %334 = xla_tuple %v174, %v206
        %vm335 = vcmp.gt.s32.totalorder %v174, %v331
        %vm336 = vcmp.eq.s32.totalorder %v174, %v331
        %vm337 = vcmp.lt.s32.totalorder %v206, %v332
        %vm338 = vmand %vm336, %vm337
        %vm339 = vmor %vm335, %vm338
        %v340 = vsel %vm339, %v174, %v331
        %v341 = vsel %vm339, %v206, %v332
        %342 = xla_tuple %v340, %v341
        %v343 = vrot.slane %v340, 1
        %v344 = vrot.slane %v341, 1
        %345 = xla_tuple %v343, %v344
        %vm346 = vcmp.gt.s32.totalorder %v343, %v340
        %vm347 = vcmp.eq.s32.totalorder %v343, %v340
        %vm348 = vcmp.lt.s32.totalorder %v344, %v341
        %vm349 = vmand %vm347, %vm348
        %vm350 = vmor %vm346, %vm349
        %v351 = vsel %vm350, %v343, %v340
        %v352 = vsel %vm350, %v344, %v341
        %353 = xla_tuple %v351, %v352
        %v354 = vrot.slane %v351, 1
        %v355 = vrot.slane %v352, 1
        %356 = xla_tuple %v354, %v355
        %vm357 = vcmp.gt.s32.totalorder %v354, %v351
        %vm358 = vcmp.eq.s32.totalorder %v354, %v351
        %vm359 = vcmp.lt.s32.totalorder %v355, %v352
        %vm360 = vmand %vm358, %vm359
        %vm361 = vmor %vm357, %vm360
        %v362 = vsel %vm361, %v354, %v351
        %v363 = vsel %vm361, %v355, %v352
        %364 = xla_tuple %v362, %v363
        %v365 = vrot.slane %v362, 1
        %v366 = vrot.slane %v363, 1
        %367 = xla_tuple %v365, %v366
        %vm368 = vcmp.gt.s32.totalorder %v365, %v362
        %vm369 = vcmp.eq.s32.totalorder %v365, %v362
        %vm370 = vcmp.lt.s32.totalorder %v366, %v363
        %vm371 = vmand %vm369, %vm370
        %vm372 = vmor %vm368, %vm371
        %v373 = vsel %vm372, %v365, %v362
        %v374 = vsel %vm372, %v366, %v363
        %375 = xla_tuple %v373, %v374
        %v376 = vrot.slane %v373, 1
        %v377 = vrot.slane %v374, 1
        %378 = xla_tuple %v376, %v377
        %vm379 = vcmp.gt.s32.totalorder %v376, %v373
        %vm380 = vcmp.eq.s32.totalorder %v376, %v373
        %vm381 = vcmp.lt.s32.totalorder %v377, %v374
        %vm382 = vmand %vm380, %vm381
        %vm383 = vmor %vm379, %vm382
        %v384 = vsel %vm383, %v376, %v373
        %v385 = vsel %vm383, %v377, %v374
        %386 = xla_tuple %v384, %v385
        %v387 = vrot.slane %v384, 1
        %v388 = vrot.slane %v385, 1
        %389 = xla_tuple %v387, %v388
        %vm390 = vcmp.gt.s32.totalorder %v387, %v384
        %vm391 = vcmp.eq.s32.totalorder %v387, %v384
        %vm392 = vcmp.lt.s32.totalorder %v388, %v385
        %vm393 = vmand %vm391, %vm392
        %vm394 = vmor %vm390, %vm393
        %v395 = vsel %vm394, %v387, %v384
        %v396 = vsel %vm394, %v388, %v385
        %397 = xla_tuple %v395, %v396
        %v398 = vrot.slane %v395, 1
        %v399 = vrot.slane %v396, 1
        %400 = xla_tuple %v398, %v399
        %vm401 = vcmp.gt.s32.totalorder %v398, %v395
        %vm402 = vcmp.eq.s32.totalorder %v398, %v395
        %vm403 = vcmp.lt.s32.totalorder %v399, %v396
        %vm404 = vmand %vm402, %vm403
        %vm405 = vmor %vm401, %vm404
        %v406 = vsel %vm405, %v398, %v395
        %v407 = vsel %vm405, %v399, %v396
        %408 = xla_tuple %v406, %v407
        %v409 = vrot.slane %v406, 1
        %v410 = vrot.slane %v407, 1
        %411 = xla_tuple %v409, %v410
        %vm412 = vcmp.gt.s32.totalorder %v409, %v406
        %vm413 = vcmp.eq.s32.totalorder %v409, %v406
        %vm414 = vcmp.lt.s32.totalorder %v410, %v407
        %vm415 = vmand %vm413, %vm414
        %vm416 = vmor %vm412, %vm415
        %v417 = vsel %vm416, %v409, %v406
        %v418 = vsel %vm416, %v410, %v407
        %419 = xla_tuple %v417, %v418
        %s420 = scalar_lea.vmem [#allocation13], %s89
        %421 = vst [vmem:[%s420] sm:$0x1] %v417
        %s422 = scalar_lea.vmem [#allocation15], %s89
        %423 = vst [vmem:[%s422] sm:$0x1] %v418
        %424 = xla_tuple %421, %423
        %425 = vxpose.xlu0.b32.start [1/16] %v418, 128
        %426 = vxpose.xlu0.b32.cont [2/16] 0.0, 128
        %427 = vxpose.xlu0.b32.cont [3/16] 0.0, 128
        %428 = vxpose.xlu0.b32.cont [4/16] 0.0, 128
        %429 = vxpose.xlu0.b32.cont [5/16] 0.0, 128
        %430 = vxpose.xlu0.b32.cont [6/16] 0.0, 128
        %431 = vxpose.xlu0.b32.cont [7/16] 0.0, 128
        %432 = vxpose.xlu0.b32.cont [8/16] 0.0, 128
        %433 = vxpose.xlu0.b32.cont [9/16] 0.0, 128
        %434 = vxpose.xlu0.b32.cont [10/16] 0.0, 128
        %435 = vxpose.xlu0.b32.cont [11/16] 0.0, 128
        %436 = vxpose.xlu0.b32.cont [12/16] 0.0, 128
        %437 = vxpose.xlu0.b32.cont [13/16] 0.0, 128
        %438 = vxpose.xlu0.b32.cont [14/16] 0.0, 128
        %439 = vxpose.xlu0.b32.cont [15/16] 0.0, 128
        %440 = vxpose.xlu0.b32.end [16/16] 0.0, 128
        %v441 = vpop.trf.xlu0
        %v442 = vpop.trf.xlu0
        %v443 = vpop.trf.xlu0
        %v444 = vpop.trf.xlu0
        %v445 = vpop.trf.xlu0
        %v446 = vpop.trf.xlu0
        %v447 = vpop.trf.xlu0
        %v448 = vpop.trf.xlu0
        %v449 = vpop.trf.xlu0
        %v450 = vpop.trf.xlu0
        %v451 = vpop.trf.xlu0
        %v452 = vpop.trf.xlu0
        %v453 = vpop.trf.xlu0
        %v454 = vpop.trf.xlu0
        %v455 = vpop.trf.xlu0
        %v456 = vpop.trf.xlu0
        %s457 = vtos %v441
        %s458 = sshrl.u32 %s457, 9
        %p459 = scmp.lt.s32.totalorder %s457, 0
        %s460 = ssub.s32 0, %s457
        %s461 = scalar_select %p459, %s460, %s457
        %s462 = sand.u32 %s461, 511
        %s463 = ssub.s32 0, %s462
        %s464 = scalar_select %p459, %s463, %s462
        %s465 = sshrl.u32 %s464, 7
        %s466 = smul.u32 %s465, 256
        %s467 = sand.u32 %s464, 127
        %s468 = sadd.s32 %s466, %s467
        %v469 = vlaneseq
        %v470 = vstv %s468
        %vm472 = vcmp.eq.s32.totalorder %v469, %v470
        %s473 = smul.addr %s458, 8
        %s474 = scalar_lea.vmem [#allocation16], %s473
        %475 = vst.msk [vmem:[%s474] sm:$0xff] %vm472, 2147483648
        %s476 = smul.addr %s458, 8
        %s477 = scalar_lea.vmem [#allocation17], %s476
        %478 = vst.msk [vmem:[%s477] sm:$0xff] %vm472, 2147483647
        %479 = xla_tuple %475, %478
        %v480 = vrot.slane %v441, 1
        %s481 = vtos %v480
        %s482 = sshrl.u32 %s481, 9
        %p483 = scmp.lt.s32.totalorder %s481, 0
        %s484 = ssub.s32 0, %s481
        %s485 = scalar_select %p483, %s484, %s481
        %s486 = sand.u32 %s485, 511
        %s487 = ssub.s32 0, %s486
        %s488 = scalar_select %p483, %s487, %s486
        %s489 = sshrl.u32 %s488, 7
        %s490 = smul.u32 %s489, 256
        %s491 = sand.u32 %s488, 127
        %s492 = sadd.s32 %s490, %s491
        %v493 = vlaneseq
        %v494 = vstv %s492
        %v495 = vadd.s32 %v494, 128
        %vm496 = vcmp.eq.s32.totalorder %v493, %v495
        %s497 = smul.addr %s482, 8
        %s498 = scalar_lea.vmem [#allocation16], %s497
        %499 = vst.msk [vmem:[%s498] sm:$0xff] %vm496, 2147483648
        %s500 = smul.addr %s482, 8
        %s501 = scalar_lea.vmem [#allocation17], %s500
        %502 = vst.msk [vmem:[%s501] sm:$0xff] %vm496, 2147483647
        %503 = xla_tuple %499, %502
        %v504 = vrot.slane %v480, 1
      $region37: #{custom-call} parent=2 // loop_footer
        %s93 = sadd.s32 1, %s89
      $region38: #{custom-call} parent=2 // loop_footer_branch
        %88 = sbr.rel target = $region34
      $region39: #{custom-call} parent=2 // loop_exit
        _
      %s505 = scalar_lea.vmem [#allocation13], 7
      %v506 = vld [vmem:[%s505] ss:$-1 sm:$0xff]
      %s507 = scalar_lea.vmem [#allocation13], 7
      %v508 = vld [vmem:[%s507] ss:$-1 sm:$0xff]
      %509 = vst [vmem:[#allocation13] sm:$0xff] %v508
      %510 = vst [vmem:[#allocation13] sm:$0xff] %v506
      %s511 = scalar_lea.vmem [#allocation15], 7
      %v512 = vld [vmem:[%s511] ss:$-1 sm:$0xff]
      %s513 = scalar_lea.vmem [#allocation15], 7
      %v514 = vld [vmem:[%s513] ss:$-1 sm:$0xff]
      %515 = vst [vmem:[#allocation15] sm:$0xff] %v514
      %516 = vst [vmem:[#allocation15] sm:$0xff] %v512
      %517 = xla_tuple %510, %516
      %v518 = vld [vmem:[#allocation12] sm:$0xff]
      %v519 = vld [vmem:[#allocation14] sm:$0xff]
      %520 = xla_tuple %v518, %v519
      %v521 = vld [vmem:[#allocation13] sm:$0xff]
      %v522 = vld [vmem:[#allocation15] sm:$0xff]
      %523 = xla_tuple %v521, %v522
      %vm524 = vcmp.gt.s32.totalorder %v518, %v521
      %vm525 = vcmp.eq.s32.totalorder %v518, %v521
      %vm526 = vcmp.lt.s32.totalorder %v519, %v522
      %vm527 = vmand %vm525, %vm526
      %vm528 = vmor %vm524, %vm527
      %v529 = vsel %vm528, %v518, %v521
      %530 = vst [vmem:[#allocation12] sm:$0xff] %v529
      %v531 = vsel %vm528, %v521, %v518
      %532 = vst [vmem:[#allocation13] sm:$0xff] %v531
      %v533 = vsel %vm528, %v519, %v522
      %534 = vst [vmem:[#allocation14] sm:$0xff] %v533
      %v535 = vsel %vm528, %v522, %v519
      %536 = vst [vmem:[#allocation15] sm:$0xff] %v535
      %537 = xla_tuple %532, %536
      %538 = xla_tuple [#allocation12], [#allocation14]
      %v539 = vld [vmem:[#allocation12] sm:$0xff]
      %v540 = vld [vmem:[#allocation14] sm:$0xff]
      %541 = xla_tuple %v539, %v540
      %v543 = vunpack.c.l.s4 839939668
      %v544 = vunpack.c.0.s8 %v543
      %v545 = vlaneseq
      %v546 = vshrl.u32 %v545, 7
      %v547 = vsub.s32 %v544, %v546
      %v548 = vrot.slane %v539, %v547
      %v550 = vunpack.c.l.s4 839939668
      %v551 = vunpack.c.0.s8 %v550
      %v552 = vlaneseq
      %v553 = vshrl.u32 %v552, 7
      %v554 = vsub.s32 %v551, %v553
      %v555 = vrot.slane %v540, %v554
      %556 = xla_tuple %v548, %v555
      %vm557 = vcmp.gt.s32.totalorder %v539, %v548
      %vm558 = vcmp.eq.s32.totalorder %v539, %v548
      %vm559 = vcmp.lt.s32.totalorder %v540, %v555
      %vm560 = vmand %vm558, %vm559
      %vm561 = vmor %vm557, %vm560
      %v562 = vlaneseq
      %v563 = vshrl.u32 %v562, 7
      %v564 = vand.u32 %v563, 4
      %vm565 = vcmp.ne.s32.totalorder %v564, 0
      %vm566 = vmxor %vm561, %vm565
      %v567 = vsel %vm566, %v539, %v548
      %v568 = vsel %vm566, %v540, %v555
      %569 = xla_tuple %v567, %v568
      %v571 = vunpack.c.l.s4 1417023538
      %v572 = vunpack.c.0.s8 %v571
      %v573 = vlaneseq
      %v574 = vshrl.u32 %v573, 7
      %v575 = vsub.s32 %v572, %v574
      %v576 = vrot.slane %v567, %v575
      %v578 = vunpack.c.l.s4 1417023538
      %v579 = vunpack.c.0.s8 %v578
      %v580 = vlaneseq
      %v581 = vshrl.u32 %v580, 7
      %v582 = vsub.s32 %v579, %v581
      %v583 = vrot.slane %v568, %v582
      %584 = xla_tuple %v576, %v583
      %vm585 = vcmp.gt.s32.totalorder %v567, %v576
      %vm586 = vcmp.eq.s32.totalorder %v567, %v576
      %vm587 = vcmp.lt.s32.totalorder %v568, %v583
      %vm588 = vmand %vm586, %vm587
      %vm589 = vmor %vm585, %vm588
      %v590 = vlaneseq
      %v591 = vshrl.u32 %v590, 7
      %v592 = vand.u32 %v591, 2
      %vm593 = vcmp.ne.s32.totalorder %v592, 0
      %vm594 = vmxor %vm589, %vm593
      %v595 = vsel %vm594, %v567, %v576
      %v596 = vsel %vm594, %v568, %v583
      %597 = xla_tuple %v595, %v596
      %v599 = vunpack.c.l.s4 1732584193
      %v600 = vunpack.c.0.s8 %v599
      %v601 = vlaneseq
      %v602 = vshrl.u32 %v601, 7
      %v603 = vsub.s32 %v600, %v602
      %v604 = vrot.slane %v595, %v603
      %v606 = vunpack.c.l.s4 1732584193
      %v607 = vunpack.c.0.s8 %v606
      %v608 = vlaneseq
      %v609 = vshrl.u32 %v608, 7
      %v610 = vsub.s32 %v607, %v609
      %v611 = vrot.slane %v596, %v610
      %612 = xla_tuple %v604, %v611
      %vm613 = vcmp.gt.s32.totalorder %v595, %v604
      %vm614 = vcmp.eq.s32.totalorder %v595, %v604
      %vm615 = vcmp.lt.s32.totalorder %v596, %v611
      %vm616 = vmand %vm614, %vm615
      %vm617 = vmor %vm613, %vm616
      %v618 = vlaneseq
      %v619 = vshrl.u32 %v618, 7
      %v620 = vand.u32 %v619, 1
      %vm621 = vcmp.ne.s32.totalorder %v620, 0
      %vm622 = vmxor %vm617, %vm621
      %v623 = vsel %vm622, %v595, %v604
      %v624 = vsel %vm622, %v596, %v611
      %625 = xla_tuple %v623, %v624
      %626 = vst [vmem:[#allocation12] sm:$0xff] %v623
      %627 = vst [vmem:[#allocation14] sm:$0xff] %v624
      %628 = xla_tuple %626, %627
      %v629 = vld [vmem:[#allocation12] sm:$0xff]
      %v630 = vld [vmem:[#allocation14] sm:$0xff]
      %631 = xla_tuple %v629, %v630
      %v633 = vunpack.c.l.s4 839939668
      %v634 = vunpack.c.0.s8 %v633
      %v635 = vlaneseq
      %v636 = vshrl.u32 %v635, 7
      %v637 = vsub.s32 %v634, %v636
      %v638 = vrot.slane %v629, %v637
      %v640 = vunpack.c.l.s4 839939668
      %v641 = vunpack.c.0.s8 %v640
      %v642 = vlaneseq
      %v643 = vshrl.u32 %v642, 7
      %v644 = vsub.s32 %v641, %v643
      %v645 = vrot.slane %v630, %v644
      %646 = xla_tuple %v638, %v645
      %vm647 = vcmp.gt.s32.totalorder %v629, %v638
      %vm648 = vcmp.eq.s32.totalorder %v629, %v638
      %vm649 = vcmp.lt.s32.totalorder %v630, %v645
      %vm650 = vmand %vm648, %vm649
      %vm651 = vmor %vm647, %vm650
      %v652 = vlaneseq
      %v653 = vshrl.u32 %v652, 7
      %v654 = vand.u32 %v653, 4
      %vm655 = vcmp.ne.s32.totalorder %v654, 0
      %vm656 = vmxor %vm651, %vm655
      %v657 = vsel %vm656, %v629, %v638
      %v658 = vsel %vm656, %v630, %v645
      %659 = xla_tuple %v657, %v658
      %v661 = vunpack.c.l.s4 1417023538
      %v662 = vunpack.c.0.s8 %v661
      %v663 = vlaneseq
      %v664 = vshrl.u32 %v663, 7
      %v665 = vsub.s32 %v662, %v664
      %v666 = vrot.slane %v657, %v665
      %v668 = vunpack.c.l.s4 1417023538
      %v669 = vunpack.c.0.s8 %v668
      %v670 = vlaneseq
      %v671 = vshrl.u32 %v670, 7
      %v672 = vsub.s32 %v669, %v671
      %v673 = vrot.slane %v658, %v672
      %674 = xla_tuple %v666, %v673
      %vm675 = vcmp.gt.s32.totalorder %v657, %v666
      %vm676 = vcmp.eq.s32.totalorder %v657, %v666
      %vm677 = vcmp.lt.s32.totalorder %v658, %v673
      %vm678 = vmand %vm676, %vm677
      %vm679 = vmor %vm675, %vm678
      %v680 = vlaneseq
      %v681 = vshrl.u32 %v680, 7
      %v682 = vand.u32 %v681, 2
      %vm683 = vcmp.ne.s32.totalorder %v682, 0
      %vm684 = vmxor %vm679, %vm683
      %v685 = vsel %vm684, %v657, %v666
      %v686 = vsel %vm684, %v658, %v673
      %687 = xla_tuple %v685, %v686
      %v689 = vunpack.c.l.s4 1732584193
      %v690 = vunpack.c.0.s8 %v689
      %v691 = vlaneseq
      %v692 = vshrl.u32 %v691, 7
      %v693 = vsub.s32 %v690, %v692
      %v694 = vrot.slane %v685, %v693
      %v696 = vunpack.c.l.s4 1732584193
      %v697 = vunpack.c.0.s8 %v696
      %v698 = vlaneseq
      %v699 = vshrl.u32 %v698, 7
      %v700 = vsub.s32 %v697, %v699
      %v701 = vrot.slane %v686, %v700
      %702 = xla_tuple %v694, %v701
      %vm703 = vcmp.gt.s32.totalorder %v685, %v694
      %vm704 = vcmp.eq.s32.totalorder %v685, %v694
      %vm705 = vcmp.lt.s32.totalorder %v686, %v701
      %vm706 = vmand %vm704, %vm705
      %vm707 = vmor %vm703, %vm706
      %v708 = vlaneseq
      %v709 = vshrl.u32 %v708, 7
      %v710 = vand.u32 %v709, 1
      %vm711 = vcmp.ne.s32.totalorder %v710, 0
      %vm712 = vmxor %vm707, %vm711
      %v713 = vsel %vm712, %v685, %v694
      %v714 = vsel %vm712, %v686, %v701
      %715 = xla_tuple %v713, %v714
      %716 = vst [vmem:[#allocation12] sm:$0xff] %v713
      %717 = vst [vmem:[#allocation14] sm:$0xff] %v714
      %718 = xla_tuple %716, %717
      %719 = xla_tuple [#allocation13], [#allocation15]
      %v720 = vld [vmem:[#allocation13] sm:$0xff]
      %v721 = vld [vmem:[#allocation15] sm:$0xff]
      %722 = xla_tuple %v720, %v721
      %v724 = vunpack.c.l.s4 839939668
      %v725 = vunpack.c.0.s8 %v724
      %v726 = vlaneseq
      %v727 = vshrl.u32 %v726, 7
      %v728 = vsub.s32 %v725, %v727
      %v729 = vrot.slane %v720, %v728
      %v731 = vunpack.c.l.s4 839939668
      %v732 = vunpack.c.0.s8 %v731
      %v733 = vlaneseq
      %v734 = vshrl.u32 %v733, 7
      %v735 = vsub.s32 %v732, %v734
      %v736 = vrot.slane %v721, %v735
      %737 = xla_tuple %v729, %v736
      %vm738 = vcmp.gt.s32.totalorder %v720, %v729
      %vm739 = vcmp.eq.s32.totalorder %v720, %v729
      %vm740 = vcmp.lt.s32.totalorder %v721, %v736
      %vm741 = vmand %vm739, %vm740
      %vm742 = vmor %vm738, %vm741
      %v743 = vlaneseq
      %v744 = vshrl.u32 %v743, 7
      %v745 = vand.u32 %v744, 4
      %vm746 = vcmp.ne.s32.totalorder %v745, 0
      %vm747 = vmxor %vm742, %vm746
      %v748 = vsel %vm747, %v720, %v729
      %v749 = vsel %vm747, %v721, %v736
      %750 = xla_tuple %v748, %v749
      %v752 = vunpack.c.l.s4 1417023538
      %v753 = vunpack.c.0.s8 %v752
      %v754 = vlaneseq
      %v755 = vshrl.u32 %v754, 7
      %v756 = vsub.s32 %v753, %v755
      %v757 = vrot.slane %v748, %v756
      %v759 = vunpack.c.l.s4 1417023538
      %v760 = vunpack.c.0.s8 %v759
      %v761 = vlaneseq
      %v762 = vshrl.u32 %v761, 7
      %v763 = vsub.s32 %v760, %v762
      %v764 = vrot.slane %v749, %v763
      %765 = xla_tuple %v757, %v764
      %vm766 = vcmp.gt.s32.totalorder %v748, %v757
      %vm767 = vcmp.eq.s32.totalorder %v748, %v757
      %vm768 = vcmp.lt.s32.totalorder %v749, %v764
      %vm769 = vmand %vm767, %vm768
      %vm770 = vmor %vm766, %vm769
      %v771 = vlaneseq
      %v772 = vshrl.u32 %v771, 7
      %v773 = vand.u32 %v772, 2
      %vm774 = vcmp.ne.s32.totalorder %v773, 0
      %vm775 = vmxor %vm770, %vm774
      %v776 = vsel %vm775, %v748, %v757
      %v777 = vsel %vm775, %v749, %v764
      %778 = xla_tuple %v776, %v777
      %v780 = vunpack.c.l.s4 1732584193
      %v781 = vunpack.c.0.s8 %v780
      %v782 = vlaneseq
      %v783 = vshrl.u32 %v782, 7
      %v784 = vsub.s32 %v781, %v783
      %v785 = vrot.slane %v776, %v784
      %v787 = vunpack.c.l.s4 1732584193
      %v788 = vunpack.c.0.s8 %v787
      %v789 = vlaneseq
      %v790 = vshrl.u32 %v789, 7
      %v791 = vsub.s32 %v788, %v790
      %v792 = vrot.slane %v777, %v791
      %793 = xla_tuple %v785, %v792
      %vm794 = vcmp.gt.s32.totalorder %v776, %v785
      %vm795 = vcmp.eq.s32.totalorder %v776, %v785
      %vm796 = vcmp.lt.s32.totalorder %v777, %v792
      %vm797 = vmand %vm795, %vm796
      %vm798 = vmor %vm794, %vm797
      %v799 = vlaneseq
      %v800 = vshrl.u32 %v799, 7
      %v801 = vand.u32 %v800, 1
      %vm802 = vcmp.ne.s32.totalorder %v801, 0
      %vm803 = vmxor %vm798, %vm802
      %v804 = vsel %vm803, %v776, %v785
      %v805 = vsel %vm803, %v777, %v792
      %806 = xla_tuple %v804, %v805
      %807 = vst [vmem:[#allocation13] sm:$0xff] %v804
      %808 = vst [vmem:[#allocation15] sm:$0xff] %v805
      %809 = xla_tuple %807, %808
      %v810 = vld [vmem:[#allocation13] sm:$0xff]
      %v811 = vld [vmem:[#allocation15] sm:$0xff]
      %812 = xla_tuple %v810, %v811
      %v814 = vunpack.c.l.s4 839939668
      %v815 = vunpack.c.0.s8 %v814
      %v816 = vlaneseq
      %v817 = vshrl.u32 %v816, 7
      %v818 = vsub.s32 %v815, %v817
      %v819 = vrot.slane %v810, %v818
      %v821 = vunpack.c.l.s4 839939668
      %v822 = vunpack.c.0.s8 %v821
      %v823 = vlaneseq
      %v824 = vshrl.u32 %v823, 7
      %v825 = vsub.s32 %v822, %v824
      %v826 = vrot.slane %v811, %v825
      %827 = xla_tuple %v819, %v826
      %vm828 = vcmp.gt.s32.totalorder %v810, %v819
      %vm829 = vcmp.eq.s32.totalorder %v810, %v819
      %vm830 = vcmp.lt.s32.totalorder %v811, %v826
      %vm831 = vmand %vm829, %vm830
      %vm832 = vmor %vm828, %vm831
      %v833 = vlaneseq
      %v834 = vshrl.u32 %v833, 7
      %v835 = vand.u32 %v834, 4
      %vm836 = vcmp.ne.s32.totalorder %v835, 0
      %vm837 = vmxor %vm832, %vm836
      %v838 = vsel %vm837, %v810, %v819
      %v839 = vsel %vm837, %v811, %v826
      %840 = xla_tuple %v838, %v839
      %v842 = vunpack.c.l.s4 1417023538
      %v843 = vunpack.c.0.s8 %v842
      %v844 = vlaneseq
      %v845 = vshrl.u32 %v844, 7
      %v846 = vsub.s32 %v843, %v845
      %v847 = vrot.slane %v838, %v846
      %v849 = vunpack.c.l.s4 1417023538
      %v850 = vunpack.c.0.s8 %v849
      %v851 = vlaneseq
      %v852 = vshrl.u32 %v851, 7
      %v853 = vsub.s32 %v850, %v852
      %v854 = vrot.slane %v839, %v853
      %855 = xla_tuple %v847, %v854
      %vm856 = vcmp.gt.s32.totalorder %v838, %v847
      %vm857 = vcmp.eq.s32.totalorder %v838, %v847
      %vm858 = vcmp.lt.s32.totalorder %v839, %v854
      %vm859 = vmand %vm857, %vm858
      %vm860 = vmor %vm856, %vm859
      %v861 = vlaneseq
      %v862 = vshrl.u32 %v861, 7
      %v863 = vand.u32 %v862, 2
      %vm864 = vcmp.ne.s32.totalorder %v863, 0
      %vm865 = vmxor %vm860, %vm864
      %v866 = vsel %vm865, %v838, %v847
      %v867 = vsel %vm865, %v839, %v854
      %868 = xla_tuple %v866, %v867
      %v870 = vunpack.c.l.s4 1732584193
      %v871 = vunpack.c.0.s8 %v870
      %v872 = vlaneseq
      %v873 = vshrl.u32 %v872, 7
      %v874 = vsub.s32 %v871, %v873
      %v875 = vrot.slane %v866, %v874
      %v877 = vunpack.c.l.s4 1732584193
      %v878 = vunpack.c.0.s8 %v877
      %v879 = vlaneseq
      %v880 = vshrl.u32 %v879, 7
      %v881 = vsub.s32 %v878, %v880
      %v882 = vrot.slane %v867, %v881
      %883 = xla_tuple %v875, %v882
      %vm884 = vcmp.gt.s32.totalorder %v866, %v875
      %vm885 = vcmp.eq.s32.totalorder %v866, %v875
      %vm886 = vcmp.lt.s32.totalorder %v867, %v882
      %vm887 = vmand %vm885, %vm886
      %vm888 = vmor %vm884, %vm887
      %v889 = vlaneseq
      %v890 = vshrl.u32 %v889, 7
      %v891 = vand.u32 %v890, 1
      %vm892 = vcmp.ne.s32.totalorder %v891, 0
      %vm893 = vmxor %vm888, %vm892
      %v894 = vsel %vm893, %v866, %v875
      %v895 = vsel %vm893, %v867, %v882
      %896 = xla_tuple %v894, %v895
      %897 = vst [vmem:[#allocation13] sm:$0xff] %v894
      %898 = vst [vmem:[#allocation15] sm:$0xff] %v895
      %899 = xla_tuple %897, %898
    %v900 = vld [vmem:[#allocation12] sm:$0xff]
    %vm901 = vcmp.lt.s32.totalorder %v900, 0
    %v902 = vsub.s32 2147483647, %v900
    %v903 = vsel %vm901, %v902, %v900
    %904 = vst [vmem:[#allocation12] sm:$0xff] %v903
    %v905 = vld [vmem:[#allocation12] sm:$0xff]
    %906 = vxpose.xlu0.b32.start.end [1/1] (short) %v905, 128
    %v907 = vpop.trf.xlu0
    %v908 = vpop.trf.xlu0
    %v909 = vpop.trf.xlu0
    %v910 = vpop.trf.xlu0
    %v911 = vpop.trf.xlu0
    %v912 = vpop.trf.xlu0
    %v913 = vpop.trf.xlu0
    %v914 = vpop.trf.xlu0
    %v915 = vpop.trf.xlu0
    %v916 = vpop.trf.xlu0
    %v917 = vpop.trf.xlu0
    %v918 = vpop.trf.xlu0
    %v919 = vpop.trf.xlu0
    %v920 = vpop.trf.xlu0
    %v921 = vpop.trf.xlu0
    %v922 = vpop.trf.xlu0
    %923 = vst [vmem:[#allocation7] sm:$0xff] %v907
    %v924 = vld [vmem:[#allocation14] sm:$0xff]
    %925 = vxpose.xlu0.b32.start.end [1/1] (short) %v924, 128
    %v926 = vpop.trf.xlu0
    %v927 = vpop.trf.xlu0
    %v928 = vpop.trf.xlu0
    %v929 = vpop.trf.xlu0
    %v930 = vpop.trf.xlu0
    %v931 = vpop.trf.xlu0
    %v932 = vpop.trf.xlu0
    %v933 = vpop.trf.xlu0
    %v934 = vpop.trf.xlu0
    %v935 = vpop.trf.xlu0
    %v936 = vpop.trf.xlu0
    %v937 = vpop.trf.xlu0
    %v938 = vpop.trf.xlu0
    %v939 = vpop.trf.xlu0
    %v940 = vpop.trf.xlu0
    %v941 = vpop.trf.xlu0
    %942 = vst [vmem:[#allocation10] sm:$0xff] %v926
    %s944 = sshll.u32 1, 2
    %s945 = ssub.s32 %s944, 1
    %v947 = vld [vmem:[#allocation7] sm:%s945]
    %s948 = sshll.u32 1, 2
    %s949 = ssub.s32 %s948, 1
    %950 = vst [vmem:[#allocation8] sm:%s949] %v947
    %s952 = sshll.u32 1, 2
    %s953 = ssub.s32 %s952, 1
    %v955 = vld [vmem:[#allocation10] sm:%s953]
    %s956 = sshll.u32 1, 2
    %s957 = ssub.s32 %s956, 1
    %958 = vst [vmem:[#allocation11] sm:%s957] %v955
    %s960 = ssub.s32 32, 32
    %961 = vsyncadd [#allocation9], %s960
    %s963 = sshll.u32 [#allocation8], 4
    %s964 = int_to_ptr.vmem [resolvable:$true] %s963
    %966 = dma.vmem_to_hbm [thread:$0]  %s964, 32, %s1, [#allocation9]
    // Predicated region
    $region40: #{custom-call} parent=1 // pred_check
      _
    $region41: #{custom-call} parent=1 // pred_check_branch
      %968 = sbr.rel (0) target = $region43
    $region42: #{custom-call} parent=1 // pred_region
      // Predicated region
      $region44: #{custom-call} parent=42 // pred_check
        _
      $region45: #{custom-call} parent=42 // pred_check_branch
        %970 = sbr.rel target = $region47
      $region46: #{custom-call} parent=42 // pred_region
        // Predicated region
        $region59: #{custom-call} parent=46 // pred_check
          _
        $region60: #{custom-call} parent=46 // pred_check_branch
          %986 = sbr.rel (0) target = $region62
        $region61: #{custom-call} parent=46 // pred_region
          %s988 = ssub.s32 4, 1
          loop: start=0, step=1, limit=1
          $region63: #{custom-call} parent=61 // loop_pre_header
            _
          $region64: #{custom-call} parent=61 // loop_header
            %s990 = sphi 0, %s994
            %p991 = scmp.ge.s32.totalorder %s990, 1
            %s995 = sphi [#allocation11], [#allocation11]
            %s996 = sphi %s2, %s2
          $region65: #{custom-call} parent=61 // loop_header_branch
            %993 = sbr.rel (%p991) target = $region69
          $region66: #{custom-call} parent=61 // loop_body
            %v997 = vld [vmem:[%s995] sm:%s988]
            %998 = vst [vmem:[%s996] sm:%s988] %v997
          $region67: #{custom-call} parent=61 // loop_footer
            %s994 = sadd.s32 1, %s990
          $region68: #{custom-call} parent=61 // loop_footer_branch
            %989 = sbr.rel target = $region64
          $region69: #{custom-call} parent=61 // loop_exit
            _
        $region62: #{custom-call} parent=46 // pred_fallthru
          _
      $region47: #{custom-call} parent=42 // pred_fallthru
        _
      // Predicated region
      $region48: #{custom-call} parent=42 // pred_check
        _
      $region49: #{custom-call} parent=42 // pred_check_branch
        %972 = sbr.rel (0) target = $region51
      $region50: #{custom-call} parent=42 // pred_region
        %s974 = ssub.s32 4, 1
        loop: start=0, step=1, limit=1
        $region52: #{custom-call} parent=50 // loop_pre_header
          _
        $region53: #{custom-call} parent=50 // loop_header
          %s976 = sphi 0, %s980
          %p977 = scmp.ge.s32.totalorder %s976, 1
          %s981 = sphi [#allocation11], [#allocation11]
          %s982 = sphi %s2, %s2
        $region54: #{custom-call} parent=50 // loop_header_branch
          %979 = sbr.rel (%p977) target = $region58
        $region55: #{custom-call} parent=50 // loop_body
          %v983 = vld [vmem:[%s981] sm:%s974]
          %984 = vst [vmem:[%s982] sm:%s974] %v983
        $region56: #{custom-call} parent=50 // loop_footer
          %s980 = sadd.s32 1, %s976
        $region57: #{custom-call} parent=50 // loop_footer_branch
          %975 = sbr.rel target = $region53
        $region58: #{custom-call} parent=50 // loop_exit
          _
      $region51: #{custom-call} parent=42 // pred_fallthru
        _
    $region43: #{custom-call} parent=1 // pred_fallthru
      _
    %999 = vnop
    %1000 = dma.done [#allocation9], 32
    %1001 = vsyncpa [#allocation9], 1

// kernel: forward.1
$region0: #{forward.1}
  #allocation0 [shape = 'u32[]', space=smem, size = 0x4, offset = 0x4, fixed_abs, tag = 'smem constant byte address 0x4 - core index']
  #allocation1 [shape = 'u32[144,128]{1,0:T(1,128)}', space=vmem, size = 0x12000, scoped, tag = 'internal scratch']
  #allocation2 [shape = 'f32[18,256]{1,0:T(8,128)}', space=vmem, size = 0x6000, scoped, tag = 'scratch operand']
  %s0 = inlined_call_operand.vmem [shape: f32[2,16,48], index: 0, kind: input, shape index: {}]
  %s1 = inlined_call_operand.vmem [shape: f32[3,48,256], index: 1, kind: input, shape index: {}]
  %s2 = inlined_call_operand.vmem [shape: f32[1,256], index: 2, kind: input, shape index: {}, may-alias: {2,4,6,8}]
  %s3 = inlined_call_operand.hbm [shape: f32[3,256,256], index: 3, kind: input, shape index: {}]
  %s4 = inlined_call_operand.vmem [shape: f32[1,256], index: 4, kind: input, shape index: {}, may-alias: {2,4,6,8}]
  %s5 = inlined_call_operand.hbm [shape: f32[3,256,256], index: 5, kind: input, shape index: {}]
  %s6 = inlined_call_operand.vmem [shape: f32[1,256], index: 6, kind: input, shape index: {}, may-alias: {2,4,6,8}]
  %s7 = inlined_call_operand.hbm [shape: f32[256,256], index: 7, kind: input, shape index: {}]
  %s8 = inlined_call_operand.vmem [shape: f32[1,256], index: 8, kind: input, shape index: {}, may-alias: {2,4,6,8}]
  %s9 = inlined_call_operand.vmem [shape: f32[2,16,256], index: 9, kind: output, shape index: {0}]
  %s10 = inlined_call_operand.vmem [shape: f32[2,16,256], index: 10, kind: output, shape index: {1}]
  %11 = xla_tuple %s9, %s10
  %s12 = sld [smem:[#allocation0]]
  $region89: #{forward.1} parent=0
    _
  %s14 = ssub.s32 1, %s12
  %s15 = scalar_select 0, %s14, %s12
  $region1: #{forward.1} parent=0
    #allocation3 [shape = 'u8[786432]{0}', space=vmem, size = 0xc0000, scoped, tag = 'input window, operand 3, single buffered']
    #allocation4 [shape = 's32[2]{0}', space=sflag, size = 0x8, scoped, tag = 'scoped memory for forward.1']
    #allocation5 [shape = 'u8[786432]{0}', space=vmem, size = 0xc0000, scoped, tag = 'input window, operand 5, single buffered']
    #allocation6 [shape = 's32[1]{0}', space=sflag, size = 0x4, scoped, tag = 'scoped memory for forward.1']
    #allocation7 [shape = 'u8[262144]{0}', space=vmem, size = 0x40000, scoped, tag = 'input window, operand 7, single buffered']
    %16 = vsyncpa [#allocation4], 0
    %17 = vsyncpa [#allocation6], 0
    loop: start=0, step=1, limit=4
    $region2: #{forward.1} parent=1 // loop_pre_header
      _
    $region3: #{forward.1} parent=1 // loop_header
      %s19 = sphi 0, %s23
      %p20 = scmp.ge.s32.totalorder %s19, 4
      %s29 = sphi 0, %s31
      %s32 = sphi 0, %s29
      %s33 = sphi 0, %s32
      %s49 = sphi 0, %s33
      %s53 = sphi 0, %s53
      %s55 = sphi 0, %s53
      %s56 = sphi 0, %s55
      %s70 = sphi 0, %s56
      %s74 = sphi 0, %s74
      %s76 = sphi 0, %s74
      %s77 = sphi 0, %s76
      %s91 = sphi 0, %s77
      %s95 = sphi 0, %s95
      %s97 = sphi 0, %s95
      %s98 = sphi 0, %s97
      %s112 = sphi 0, %s98
      %s116 = sphi 0, %s116
      %s118 = sphi 0, %s116
      %s119 = sphi 0, %s118
      %s133 = sphi 0, %s119
      %s137 = sphi 0, %s137
      %s139 = sphi 0, %s137
      %s140 = sphi 0, %s139
      %s154 = sphi 0, %s140
      %s158 = sphi 0, %s158
      %s160 = sphi 0, %s158
      %s161 = sphi 0, %s160
      %s175 = sphi 0, %s161
      %s179 = sphi 0, %s179
      %s181 = sphi 0, %s179
      %s182 = sphi 0, %s181
      %s196 = sphi 0, %s182
      %s200 = sphi 0, %s200
      %s202 = sphi 0, %s200
      %s203 = sphi 0, %s202
      %s217 = sphi 0, %s203
      %s223 = sphi 0, %s225
      %s226 = sphi 0, %s223
      %s227 = sphi 0, %s226
      %s243 = sphi 0, %s227
      %s249 = sphi 0, %s251
      %s252 = sphi 0, %s249
      %s253 = sphi 0, %s252
      %s269 = sphi 0, %s253
    $region4: #{forward.1} parent=1 // loop_header_branch
      %22 = sbr.rel (%p20) target = $region8
    $region5: #{forward.1} parent=1 // loop_body
      %s24 = ssub.s32 %s19, 1
      %s25 = ssub.s32 %s19, 2
      %s26 = sadd.s32 %s19, 1
      %s27 = ssub.s32 %s19, %s26
      %p28 = scmp.eq.s32.totalorder %s27, 0
      %s30 = sadd.s32 %s29, 1
      %s31 = scalar_select %p28, %s29, %s30
      %p34 = pneg %p28
      %p35 = scmp.eq.s32.totalorder %s19, 1
      %p36 = por %p34, %p35
      %p37 = scmp.ne.s32.totalorder %s29, %s32
      %p38 = scmp.eq.s32.totalorder %s19, 0
      %p39 = por %p37, %p38
      %p40 = scmp.ne.s32.totalorder %s29, %s32
      %p41 = scmp.eq.s32.totalorder %s24, 1
      %p42 = por %p40, %p41
      %p43 = scmp.ne.s32.totalorder %s32, %s33
      %p44 = scmp.eq.s32.totalorder %s24, 0
      %p45 = por %p43, %p44
      %p46 = scmp.ne.s32.totalorder %s32, %s33
      %p47 = scmp.eq.s32.totalorder %s25, 1
      %p48 = por %p46, %p47
      %p50 = scmp.ne.s32.totalorder %s33, %s49
      %p51 = scmp.eq.s32.totalorder %s25, 0
      %p52 = por %p50, %p51
      %s54 = sadd.s32 %s53, 1
      %p57 = scmp.eq.s32.totalorder %s19, 1
      %p58 = scmp.ne.s32.totalorder %s53, %s55
      %p59 = scmp.eq.s32.totalorder %s19, 0
      %p60 = por %p58, %p59
      %p61 = scmp.ne.s32.totalorder %s53, %s55
      %p62 = scmp.eq.s32.totalorder %s24, 1
      %p63 = por %p61, %p62
      %p64 = scmp.ne.s32.totalorder %s55, %s56
      %p65 = scmp.eq.s32.totalorder %s24, 0
      %p66 = por %p64, %p65
      %p67 = scmp.ne.s32.totalorder %s55, %s56
      %p68 = scmp.eq.s32.totalorder %s25, 1
      %p69 = por %p67, %p68
      %p71 = scmp.ne.s32.totalorder %s56, %s70
      %p72 = scmp.eq.s32.totalorder %s25, 0
      %p73 = por %p71, %p72
      %s75 = sadd.s32 %s74, 1
      %p78 = scmp.eq.s32.totalorder %s19, 1
      %p79 = scmp.ne.s32.totalorder %s74, %s76
      %p80 = scmp.eq.s32.totalorder %s19, 0
      %p81 = por %p79, %p80
      %p82 = scmp.ne.s32.totalorder %s74, %s76
      %p83 = scmp.eq.s32.totalorder %s24, 1
      %p84 = por %p82, %p83
      %p85 = scmp.ne.s32.totalorder %s76, %s77
      %p86 = scmp.eq.s32.totalorder %s24, 0
      %p87 = por %p85, %p86
      %p88 = scmp.ne.s32.totalorder %s76, %s77
      %p89 = scmp.eq.s32.totalorder %s25, 1
      %p90 = por %p88, %p89
      %p92 = scmp.ne.s32.totalorder %s77, %s91
      %p93 = scmp.eq.s32.totalorder %s25, 0
      %p94 = por %p92, %p93
      %s96 = sadd.s32 %s95, 1
      %p99 = scmp.eq.s32.totalorder %s19, 1
      %p100 = scmp.ne.s32.totalorder %s95, %s97
      %p101 = scmp.eq.s32.totalorder %s19, 0
      %p102 = por %p100, %p101
      %p103 = scmp.ne.s32.totalorder %s95, %s97
      %p104 = scmp.eq.s32.totalorder %s24, 1
      %p105 = por %p103, %p104
      %p106 = scmp.ne.s32.totalorder %s97, %s98
      %p107 = scmp.eq.s32.totalorder %s24, 0
      %p108 = por %p106, %p107
      %p109 = scmp.ne.s32.totalorder %s97, %s98
      %p110 = scmp.eq.s32.totalorder %s25, 1
      %p111 = por %p109, %p110
      %p113 = scmp.ne.s32.totalorder %s98, %s112
      %p114 = scmp.eq.s32.totalorder %s25, 0
      %p115 = por %p113, %p114
      %s117 = sadd.s32 %s116, 1
      %p120 = scmp.eq.s32.totalorder %s19, 1
      %p121 = scmp.ne.s32.totalorder %s116, %s118
      %p122 = scmp.eq.s32.totalorder %s19, 0
      %p123 = por %p121, %p122
      %p124 = scmp.ne.s32.totalorder %s116, %s118
      %p125 = scmp.eq.s32.totalorder %s24, 1
      %p126 = por %p124, %p125
      %p127 = scmp.ne.s32.totalorder %s118, %s119
      %p128 = scmp.eq.s32.totalorder %s24, 0
      %p129 = por %p127, %p128
      %p130 = scmp.ne.s32.totalorder %s118, %s119
      %p131 = scmp.eq.s32.totalorder %s25, 1
      %p132 = por %p130, %p131
      %p134 = scmp.ne.s32.totalorder %s119, %s133
      %p135 = scmp.eq.s32.totalorder %s25, 0
      %p136 = por %p134, %p135
      %s138 = sadd.s32 %s137, 1
      %p141 = scmp.eq.s32.totalorder %s19, 1
      %p142 = scmp.ne.s32.totalorder %s137, %s139
      %p143 = scmp.eq.s32.totalorder %s19, 0
      %p144 = por %p142, %p143
      %p145 = scmp.ne.s32.totalorder %s137, %s139
      %p146 = scmp.eq.s32.totalorder %s24, 1
      %p147 = por %p145, %p146
      %p148 = scmp.ne.s32.totalorder %s139, %s140
      %p149 = scmp.eq.s32.totalorder %s24, 0
      %p150 = por %p148, %p149
      %p151 = scmp.ne.s32.totalorder %s139, %s140
      %p152 = scmp.eq.s32.totalorder %s25, 1
      %p153 = por %p151, %p152
      %p155 = scmp.ne.s32.totalorder %s140, %s154
      %p156 = scmp.eq.s32.totalorder %s25, 0
      %p157 = por %p155, %p156
      %s159 = sadd.s32 %s158, 1
      %p162 = scmp.eq.s32.totalorder %s19, 1
      %p163 = scmp.ne.s32.totalorder %s158, %s160
      %p164 = scmp.eq.s32.totalorder %s19, 0
      %p165 = por %p163, %p164
      %p166 = scmp.ne.s32.totalorder %s158, %s160
      %p167 = scmp.eq.s32.totalorder %s24, 1
      %p168 = por %p166, %p167
      %p169 = scmp.ne.s32.totalorder %s160, %s161
      %p170 = scmp.eq.s32.totalorder %s24, 0
      %p171 = por %p169, %p170
      %p172 = scmp.ne.s32.totalorder %s160, %s161
      %p173 = scmp.eq.s32.totalorder %s25, 1
      %p174 = por %p172, %p173
      %p176 = scmp.ne.s32.totalorder %s161, %s175
      %p177 = scmp.eq.s32.totalorder %s25, 0
      %p178 = por %p176, %p177
      %s180 = sadd.s32 %s179, 1
      %p183 = scmp.eq.s32.totalorder %s19, 1
      %p184 = scmp.ne.s32.totalorder %s179, %s181
      %p185 = scmp.eq.s32.totalorder %s19, 0
      %p186 = por %p184, %p185
      %p187 = scmp.ne.s32.totalorder %s179, %s181
      %p188 = scmp.eq.s32.totalorder %s24, 1
      %p189 = por %p187, %p188
      %p190 = scmp.ne.s32.totalorder %s181, %s182
      %p191 = scmp.eq.s32.totalorder %s24, 0
      %p192 = por %p190, %p191
      %p193 = scmp.ne.s32.totalorder %s181, %s182
      %p194 = scmp.eq.s32.totalorder %s25, 1
      %p195 = por %p193, %p194
      %p197 = scmp.ne.s32.totalorder %s182, %s196
      %p198 = scmp.eq.s32.totalorder %s25, 0
      %p199 = por %p197, %p198
      %s201 = sadd.s32 %s200, 1
      %p204 = scmp.eq.s32.totalorder %s19, 1
      %p205 = scmp.ne.s32.totalorder %s200, %s202
      %p206 = scmp.eq.s32.totalorder %s19, 0
      %p207 = por %p205, %p206
      %p208 = scmp.ne.s32.totalorder %s200, %s202
      %p209 = scmp.eq.s32.totalorder %s24, 1
      %p210 = por %p208, %p209
      %p211 = scmp.ne.s32.totalorder %s202, %s203
      %p212 = scmp.eq.s32.totalorder %s24, 0
      %p213 = por %p211, %p212
      %p214 = scmp.ne.s32.totalorder %s202, %s203
      %p215 = scmp.eq.s32.totalorder %s25, 1
      %p216 = por %p214, %p215
      %p218 = scmp.ne.s32.totalorder %s203, %s217
      %p219 = scmp.eq.s32.totalorder %s25, 0
      %p220 = por %p218, %p219
      %s221 = ssub.s32 %s19, %s26
      %p222 = scmp.eq.s32.totalorder %s221, 0
      %s224 = sadd.s32 %s223, 1
      %s225 = scalar_select %p222, %s223, %s224
      %p228 = pneg %p222
      %p229 = scmp.eq.s32.totalorder %s19, 1
      %p230 = por %p228, %p229
      %p231 = scmp.ne.s32.totalorder %s223, %s226
      %p232 = scmp.eq.s32.totalorder %s19, 0
      %p233 = por %p231, %p232
      %p234 = scmp.ne.s32.totalorder %s223, %s226
      %p235 = scmp.eq.s32.totalorder %s24, 1
      %p236 = por %p234, %p235
      %p237 = scmp.ne.s32.totalorder %s226, %s227
      %p238 = scmp.eq.s32.totalorder %s24, 0
      %p239 = por %p237, %p238
      %p240 = scmp.ne.s32.totalorder %s226, %s227
      %p241 = scmp.eq.s32.totalorder %s25, 1
      %p242 = por %p240, %p241
      %p244 = scmp.ne.s32.totalorder %s227, %s243
      %p245 = scmp.eq.s32.totalorder %s25, 0
      %p246 = por %p244, %p245
      %s247 = ssub.s32 %s19, %s26
      %p248 = scmp.eq.s32.totalorder %s247, 0
      %s250 = sadd.s32 %s249, 1
      %s251 = scalar_select %p248, %s249, %s250
      %p254 = pneg %p248
      %p255 = scmp.eq.s32.totalorder %s19, 1
      %p256 = por %p254, %p255
      %p257 = scmp.ne.s32.totalorder %s249, %s252
      %p258 = scmp.eq.s32.totalorder %s19, 0
      %p259 = por %p257, %p258
      %p260 = scmp.ne.s32.totalorder %s249, %s252
      %p261 = scmp.eq.s32.totalorder %s24, 1
      %p262 = por %p260, %p261
      %p263 = scmp.ne.s32.totalorder %s252, %s253
      %p264 = scmp.eq.s32.totalorder %s24, 0
      %p265 = por %p263, %p264
      %p266 = scmp.ne.s32.totalorder %s252, %s253
      %p267 = scmp.eq.s32.totalorder %s25, 1
      %p268 = por %p266, %p267
      %p270 = scmp.ne.s32.totalorder %s253, %s269
      %p271 = scmp.eq.s32.totalorder %s25, 0
      %p272 = por %p270, %p271
      %p273 = scmp.le.s32.totalorder 1, %s19
      %p274 = scmp.lt.s32.totalorder %s19, 3
      %p275 = pnand %p273, %p274
      %p276 = pneg %p275
      // Predicated region
      $region9: #{forward.1} parent=5 // pred_check
        _
      $region10: #{forward.1} parent=5 // pred_check_branch
        %278 = sbr.rel (%p275) target = $region12
      $region11: #{forward.1} parent=5 // pred_region
        %s279 = ssub.s32 %s19, 1
        // Predicated region
        $region13: #{forward.1} parent=11 // pred_check
          %p280 = pneg %p66
        $region14: #{forward.1} parent=11 // pred_check_branch
          %282 = sbr.rel (%p280) target = $region16
        $region15: #{forward.1} parent=11 // pred_region
          _
        $region16: #{forward.1} parent=11 // pred_fallthru
          _
        // Predicated region
        $region17: #{forward.1} parent=11 // pred_check
          %p283 = pneg %p87
        $region18: #{forward.1} parent=11 // pred_check_branch
          %285 = sbr.rel (%p283) target = $region20
        $region19: #{forward.1} parent=11 // pred_region
          _
        $region20: #{forward.1} parent=11 // pred_fallthru
          _
        // Predicated region
        $region21: #{forward.1} parent=11 // pred_check
          %p286 = pneg %p108
        $region22: #{forward.1} parent=11 // pred_check_branch
          %288 = sbr.rel (%p286) target = $region24
        $region23: #{forward.1} parent=11 // pred_region
          %s290 = ssub.s32 24576, 24576
          %291 = vsyncadd [#allocation4], %s290
          %s292 = sshll.u32 [#allocation3], 4
          %s293 = int_to_ptr.vmem [resolvable:$true] %s292
          %298 = dma.hbm_to_vmem [thread:$0]  %s3, 24576, %s293, [#allocation4], 256, 256, 16
        $region24: #{forward.1} parent=11 // pred_fallthru
          _
        // Predicated region
        $region25: #{forward.1} parent=11 // pred_check
          %p299 = pneg %p129
        $region26: #{forward.1} parent=11 // pred_check_branch
          %301 = sbr.rel (%p299) target = $region28
        $region27: #{forward.1} parent=11 // pred_region
          _
        $region28: #{forward.1} parent=11 // pred_fallthru
          _
        // Predicated region
        $region29: #{forward.1} parent=11 // pred_check
          %p302 = pneg %p150
        $region30: #{forward.1} parent=11 // pred_check_branch
          %304 = sbr.rel (%p302) target = $region32
        $region31: #{forward.1} parent=11 // pred_region
          %s306 = ssub.s32 24576, 24576
          %307 = vsyncadd [#allocation6], %s306
          %s308 = sshll.u32 [#allocation5], 4
          %s309 = int_to_ptr.vmem [resolvable:$true] %s308
          %314 = dma.hbm_to_vmem [thread:$0]  %s5, 24576, %s309, [#allocation6], 256, 256, 16
        $region32: #{forward.1} parent=11 // pred_fallthru
          _
        // Predicated region
        $region33: #{forward.1} parent=11 // pred_check
          %p315 = pneg %p171
        $region34: #{forward.1} parent=11 // pred_check_branch
          %317 = sbr.rel (%p315) target = $region36
        $region35: #{forward.1} parent=11 // pred_region
          _
        $region36: #{forward.1} parent=11 // pred_fallthru
          _
        // Predicated region
        $region37: #{forward.1} parent=11 // pred_check
          %p318 = pneg %p192
        $region38: #{forward.1} parent=11 // pred_check_branch
          %320 = sbr.rel (%p318) target = $region40
        $region39: #{forward.1} parent=11 // pred_region
          %s322 = ssub.s32 8192, 8192
          %323 = vsyncadd [#allocation6], %s322
          %s324 = sshll.u32 [#allocation7], 4
          %s325 = int_to_ptr.vmem [resolvable:$true] %s324
          %330 = dma.hbm_to_vmem [thread:$0]  %s7, 8192, %s325, [#allocation6], 256, 256, 16
        $region40: #{forward.1} parent=11 // pred_fallthru
          _
        // Predicated region
        $region41: #{forward.1} parent=11 // pred_check
          %p331 = pneg %p213
        $region42: #{forward.1} parent=11 // pred_check_branch
          %333 = sbr.rel (%p331) target = $region44
        $region43: #{forward.1} parent=11 // pred_region
          _
        $region44: #{forward.1} parent=11 // pred_fallthru
          _
      $region12: #{forward.1} parent=5 // pred_fallthru
        _
      %p334 = scmp.lt.s32.totalorder %s19, 2
      // Predicated region
      $region45: #{forward.1} parent=5 // pred_check
        %p335 = pneg %p334
      $region46: #{forward.1} parent=5 // pred_check_branch
        %337 = sbr.rel (%p335) target = $region48
      $region47: #{forward.1} parent=5 // pred_region
        // Predicated region
        $region49: #{forward.1} parent=47 // pred_check
          %p338 = pneg %p39
        $region50: #{forward.1} parent=47 // pred_check_branch
          %340 = sbr.rel (%p338) target = $region52
        $region51: #{forward.1} parent=47 // pred_region
          %p341 = scmp.lt.s32.totalorder %s19, 1
          %s342 = scalar_select %p341, %s19, 1
          %s343 = smul.addr %s342, 2
          %s344 = smul.addr %s343, 8
          %s345 = scalar_lea.vmem %s0, %s344
        $region52: #{forward.1} parent=47 // pred_fallthru
          _
      $region48: #{forward.1} parent=5 // pred_fallthru
        _
      %p346 = scmp.le.s32.totalorder 1, %s19
      %p347 = scmp.lt.s32.totalorder %s19, 3
      %p348 = pnand %p346, %p347
      %p349 = pneg %p348
      // Predicated region
      $region53: #{forward.1} parent=5 // pred_check
        _
      $region54: #{forward.1} parent=5 // pred_check_branch
        %351 = sbr.rel (%p348) target = $region56
      $region55: #{forward.1} parent=5 // pred_region
        %s352 = ssub.s32 %s19, 1
        // Predicated region
        $region57: #{forward.1} parent=55 // pred_check
          %p353 = pneg %p108
        $region58: #{forward.1} parent=55 // pred_check_branch
          %355 = sbr.rel (%p353) target = $region60
        $region59: #{forward.1} parent=55 // pred_region
          %356 = dma.done [#allocation4], 24576
        $region60: #{forward.1} parent=55 // pred_fallthru
          _
        // Predicated region
        $region61: #{forward.1} parent=55 // pred_check
          %p357 = pneg %p150
        $region62: #{forward.1} parent=55 // pred_check_branch
          %359 = sbr.rel (%p357) target = $region64
        $region63: #{forward.1} parent=55 // pred_region
          %360 = dma.done [#allocation6], 24576
        $region64: #{forward.1} parent=55 // pred_fallthru
          _
        // Predicated region
        $region65: #{forward.1} parent=55 // pred_check
          %p361 = pneg %p192
        $region66: #{forward.1} parent=55 // pred_check_branch
          %363 = sbr.rel (%p361) target = $region68
        $region67: #{forward.1} parent=55 // pred_region
          %364 = dma.done [#allocation6], 8192
        $region68: #{forward.1} parent=55 // pred_fallthru
          _
        %p365 = scmp.lt.s32.totalorder %s24, 1
        %s366 = scalar_select %p365, %s24, 1
        %s367 = smul.addr %s366, 2
        %s368 = smul.addr %s367, 8
        %s369 = scalar_lea.vmem %s0, %s368
        %p370 = pneg %p45
        %p371 = pneg %p42
        %p372 = pneg %p66
        %p373 = pneg %p63
        %p374 = pneg %p87
        %p375 = pneg %p84
        %p376 = pneg %p108
        %p377 = pneg %p105
        %p378 = pneg %p129
        %p379 = pneg %p126
        %p380 = pneg %p150
        %p381 = pneg %p147
        %p382 = pneg %p171
        %p383 = pneg %p168
        %p384 = pneg %p192
        %p385 = pneg %p189
        %p386 = pneg %p213
        %p387 = pneg %p210
        %p388 = pneg %p239
        %p389 = pneg %p236
        %p390 = scmp.lt.s32.totalorder %s24, 1
        %s391 = scalar_select %p390, %s24, 1
        %s392 = smul.addr %s391, 4
        %s393 = smul.addr %s392, 8
        %s394 = scalar_lea.vmem %s9, %s393
        %p395 = pneg %p265
        %p396 = pneg %p262
        %p397 = scmp.lt.s32.totalorder %s24, 1
        %s398 = scalar_select %p397, %s24, 1
        %s399 = smul.addr %s398, 4
        %s400 = smul.addr %s399, 8
        %s401 = scalar_lea.vmem %s10, %s400
        %p402 = scmp.lt.s32.totalorder %s24, 1
        %s403 = scalar_select %p402, %s24, 1
        %s404 = smul.addr %s403, 2
        %s405 = smul.addr %s404, 8
        %s406 = scalar_lea.vmem %s0, %s405
        %p407 = scmp.lt.s32.totalorder %s24, 1
        %s408 = scalar_select %p407, %s24, 1
        %s409 = smul.addr %s408, 4
        %s410 = smul.addr %s409, 8
        %s411 = scalar_lea.vmem %s9, %s410
        %p412 = scmp.lt.s32.totalorder %s24, 1
        %s413 = scalar_select %p412, %s24, 1
        %s414 = smul.addr %s413, 4
        %s415 = smul.addr %s414, 8
        %s416 = scalar_lea.vmem %s10, %s415
        %417 = vst [vmem:[#allocation2] sm:$0xff] 0.0
        %418 = vst [vmem:[#allocation2 + $0x8] sm:$0xff] 0.0
        %419 = vst [vmem:[#allocation2 + $0x10] sm:$0xff] 0.0
        %420 = vst [vmem:[#allocation2 + $0x18] sm:$0xff] 0.0
        %421 = vst [vmem:[#allocation2 + $0x20] sm:$0x3] 0.0
        %422 = vst [vmem:[#allocation2 + $0x28] sm:$0x3] 0.0
        %v423 = vld [vmem:[%s406] sm:$0xff]
        %v424 = vld [vmem:[%s406 + $0x8] sm:$0xff]
        %vm427 = vcmask 1040384
        %v428 = vrot.slane %v423, 7
        %v429 = vrot.slane %v424, 7
        %v430 = vsel %vm427, %v428, %v429
        %vm434 = vcmask 392193
        %435 = vst.msk [vmem:[#allocation2] sm:$0xfe] %vm434, %v428
        %vm436 = vcmask 392192
        %437 = vst.msk [vmem:[#allocation2 + $0x10] sm:$0xff] %vm436, %v430
        %vm438 = vcmask 385024
        %439 = vst.msk [vmem:[#allocation2 + $0x20] sm:$0x1] %vm438, %v429
        %v440 = vld [vmem:[#allocation2] sm:$0xff]
        %v441 = vld [vmem:[#allocation2 + $0x10] sm:$0xff]
        %v442 = vld [vmem:[%s1] sm:$0xff]
        %v443 = vld [vmem:[%s1 + $0x8] sm:$0xff]
        %v444 = vld [vmem:[%s1 + $0x10] sm:$0xff]
        %v445 = vld [vmem:[%s1 + $0x18] sm:$0xff]
        %v446 = vld [vmem:[%s1 + $0x20] sm:$0xff]
        %v447 = vld [vmem:[%s1 + $0x28] sm:$0xff]
        %v448 = vld [vmem:[%s1 + $0x30] sm:$0xff]
        %v449 = vld [vmem:[%s1 + $0x38] sm:$0xff]
        %v450 = vld [vmem:[%s1 + $0x40] sm:$0xff]
        %v451 = vld [vmem:[%s1 + $0x48] sm:$0xff]
        %v452 = vld [vmem:[%s1 + $0x50] sm:$0xff]
        %v453 = vld [vmem:[%s1 + $0x58] sm:$0xff]
        %v454 = vld [vmem:[#allocation2] sm:$0xfe]
        %v455 = vld [vmem:[#allocation2 + $0x20] sm:$0x1]
        %s456 = scalar_lea.vmem %s1, 96
        %v457 = vld [vmem:[%s456] sm:$0xff]
        %v458 = vld [vmem:[%s456 + $0x8] sm:$0xff]
        %v459 = vld [vmem:[%s456 + $0x10] sm:$0xff]
        %v460 = vld [vmem:[%s456 + $0x18] sm:$0xff]
        %v461 = vld [vmem:[%s456 + $0x20] sm:$0xff]
        %v462 = vld [vmem:[%s456 + $0x28] sm:$0xff]
        %v463 = vld [vmem:[%s456 + $0x30] sm:$0xff]
        %v464 = vld [vmem:[%s456 + $0x38] sm:$0xff]
        %v465 = vld [vmem:[%s456 + $0x40] sm:$0xff]
        %v466 = vld [vmem:[%s456 + $0x48] sm:$0xff]
        %v467 = vld [vmem:[%s456 + $0x50] sm:$0xff]
        %v468 = vld [vmem:[%s456 + $0x58] sm:$0xff]
        %vm472 = vcmask 1046528
        %v473 = vrot.slane %v454, 1
        %v474 = vrot.slane %v441, 1
        %v475 = vsel %vm472, %v473, %v474
        %v476 = vrot.slane %v455, 1
        %v477 = vsel %vm472, %v474, %v476
        %v478 = vsel %vm436, %v475, 0
        %v480 = vsel %vm436, %v477, 0
        %482 = vmatprep.subr.mxu0 0.0
        %483 = vmatpush1.msra.mxu0 0.0
        %484 = vmatprep.subr.mxu0 0.0
        %485 = vmatpush1.msra.mxu0 0.0
        %486 = vmatprep.subr.mxu0 0.0
        %487 = vmatpush1.msra.mxu0 0.0
        %488 = vmatprep.subr.mxu0 0.0
        %489 = vmatpush1.msra.mxu0 0.0
        %490 = vmatprep.subr.mxu0 0.0
        %491 = vmatpush1.msra.mxu0 0.0
        %492 = vmatprep.subr.mxu0 0.0
        %493 = vmatpush1.msra.mxu0 0.0
        %494 = vmatprep.subr.mxu0 0.0
        %495 = vmatpush1.msra.mxu0 0.0
        %496 = vmatprep.subr.mxu0 0.0
        %497 = vmatpush1.msra.mxu0 0.0
        %498 = vmatprep.subr.mxu0 0.0
        %499 = vmatpush1.msra.mxu0 0.0
        %500 = vmatprep.subr.mxu0 0.0
        %501 = vmatpush1.msra.mxu0 0.0
        %502 = vmatprep.subr.mxu0 %v468
        %503 = vmatpush1.msra.mxu0 %v467
        %504 = vmatprep.subr.mxu0 %v466
        %505 = vmatpush1.msra.mxu0 %v465
        %506 = vmatprep.subr.mxu0 %v464
        %507 = vmatpush1.msra.mxu0 %v463
        %508 = vmatprep.subr.mxu0 %v462
        %509 = vmatpush1.msra.mxu0 %v461
        %510 = vmatprep.subr.mxu0 %v460
        %511 = vmatpush1.msra.mxu0 %v459
        %512 = vmatprep.subr.mxu0 %v458
        %513 = vmatpush1.msra.mxu0 %v457
        %514 = vmatprep.subr.mxu0 0.0
        %515 = vmatpush2.msra.mxu0 0.0
        %516 = vmatprep.subr.mxu0 0.0
        %517 = vmatpush2.msra.mxu0 0.0
        %518 = vmatprep.subr.mxu0 0.0
        %519 = vmatpush2.msra.mxu0 0.0
        %520 = vmatprep.subr.mxu0 0.0
        %521 = vmatpush2.msra.mxu0 0.0
        %522 = vmatprep.subr.mxu0 0.0
        %523 = vmatpush2.msra.mxu0 0.0
        %524 = vmatprep.subr.mxu0 0.0
        %525 = vmatpush2.msra.mxu0 0.0
        %526 = vmatprep.subr.mxu0 0.0
        %527 = vmatpush2.msra.mxu0 0.0
        %528 = vmatprep.subr.mxu0 0.0
        %529 = vmatpush2.msra.mxu0 0.0
        %530 = vmatprep.subr.mxu0 0.0
        %531 = vmatpush2.msra.mxu0 0.0
        %532 = vmatprep.subr.mxu0 0.0
        %533 = vmatpush2.msra.mxu0 0.0
        %534 = vmatprep.subr.mxu0 0.0
        %535 = vmatpush2.msra.mxu0 0.0
        %536 = vmatprep.subr.mxu0 0.0
        %537 = vmatpush2.msra.mxu0 0.0
        %538 = vmatprep.subr.mxu0 0.0
        %539 = vmatpush2.msra.mxu0 0.0
        %540 = vmatprep.subr.mxu0 0.0
        %541 = vmatpush2.msra.mxu0 0.0
        %542 = vmatprep.subr.mxu0 0.0
        %543 = vmatpush2.msra.mxu0 0.0
        %544 = vmatprep.subr.mxu0 0.0
        %545 = vmatpush2.msra.mxu0 0.0
        %546 = vmatprep.mubr.f32.mxu0 0.0
        %547 = vmatmul.mubr.f32.gmra.mxu0 %v478
        %v548 = vpop.f32.mrf.mxu0
        %v549 = vadd.f32 0.0, %v548
        %v550 = vpop.f32.mrf.mxu0
        %v551 = vadd.f32 0.0, %v550
        %552 = vmatprep.mubr.f32.mxu0 0.0
        %553 = vmatmul.mubr.f32.gmra.mxu0 %v480
        %v554 = vpop.f32.mrf.mxu0
        %v555 = vadd.f32 0.0, %v554
        %v556 = vpop.f32.mrf.mxu0
        %v557 = vadd.f32 0.0, %v556
        %558 = vdwg.mxu0
        %v560 = vsel %vm436, %v440, 0
        %v562 = vsel %vm436, %v441, 0
        %564 = vmatprep.subr.mxu0 0.0
        %565 = vmatpush1.msra.mxu0 0.0
        %566 = vmatprep.subr.mxu0 0.0
        %567 = vmatpush1.msra.mxu0 0.0
        %568 = vmatprep.subr.mxu0 0.0
        %569 = vmatpush1.msra.mxu0 0.0
        %570 = vmatprep.subr.mxu0 0.0
        %571 = vmatpush1.msra.mxu0 0.0
        %572 = vmatprep.subr.mxu0 0.0
        %573 = vmatpush1.msra.mxu0 0.0
        %574 = vmatprep.subr.mxu0 0.0
        %575 = vmatpush1.msra.mxu0 0.0
        %576 = vmatprep.subr.mxu0 0.0
        %577 = vmatpush1.msra.mxu0 0.0
        %578 = vmatprep.subr.mxu0 0.0
        %579 = vmatpush1.msra.mxu0 0.0
        %580 = vmatprep.subr.mxu0 0.0
        %581 = vmatpush1.msra.mxu0 0.0
        %582 = vmatprep.subr.mxu0 0.0
        %583 = vmatpush1.msra.mxu0 0.0
        %584 = vmatprep.subr.mxu0 %v453
        %585 = vmatpush1.msra.mxu0 %v452
        %586 = vmatprep.subr.mxu0 %v451
        %587 = vmatpush1.msra.mxu0 %v450
        %588 = vmatprep.subr.mxu0 %v449
        %589 = vmatpush1.msra.mxu0 %v448
        %590 = vmatprep.subr.mxu0 %v447
        %591 = vmatpush1.msra.mxu0 %v446
        %592 = vmatprep.subr.mxu0 %v445
        %593 = vmatpush1.msra.mxu0 %v444
        %594 = vmatprep.subr.mxu0 %v443
        %595 = vmatpush1.msra.mxu0 %v442
        %596 = vmatprep.subr.mxu0 0.0
        %597 = vmatpush2.msra.mxu0 0.0
        %598 = vmatprep.subr.mxu0 0.0
        %599 = vmatpush2.msra.mxu0 0.0
        %600 = vmatprep.subr.mxu0 0.0
        %601 = vmatpush2.msra.mxu0 0.0
        %602 = vmatprep.subr.mxu0 0.0
        %603 = vmatpush2.msra.mxu0 0.0
        %604 = vmatprep.subr.mxu0 0.0
        %605 = vmatpush2.msra.mxu0 0.0
        %606 = vmatprep.subr.mxu0 0.0
        %607 = vmatpush2.msra.mxu0 0.0
        %608 = vmatprep.subr.mxu0 0.0
        %609 = vmatpush2.msra.mxu0 0.0
        %610 = vmatprep.subr.mxu0 0.0
        %611 = vmatpush2.msra.mxu0 0.0
        %612 = vmatprep.subr.mxu0 0.0
        %613 = vmatpush2.msra.mxu0 0.0
        %614 = vmatprep.subr.mxu0 0.0
        %615 = vmatpush2.msra.mxu0 0.0
        %616 = vmatprep.subr.mxu0 0.0
        %617 = vmatpush2.msra.mxu0 0.0
        %618 = vmatprep.subr.mxu0 0.0
        %619 = vmatpush2.msra.mxu0 0.0
        %620 = vmatprep.subr.mxu0 0.0
        %621 = vmatpush2.msra.mxu0 0.0
        %622 = vmatprep.subr.mxu0 0.0
        %623 = vmatpush2.msra.mxu0 0.0
        %624 = vmatprep.subr.mxu0 0.0
        %625 = vmatpush2.msra.mxu0 0.0
        %626 = vmatprep.subr.mxu0 0.0
        %627 = vmatpush2.msra.mxu0 0.0
        %628 = vmatprep.mubr.f32.mxu0 0.0
        %629 = vmatmul.mubr.f32.gmra.mxu0 %v560
        %v630 = vpop.f32.mrf.mxu0
        %v631 = vadd.f32 %v549, %v630
        %v632 = vpop.f32.mrf.mxu0
        %v633 = vadd.f32 %v551, %v632
        %634 = vmatprep.mubr.f32.mxu0 0.0
        %635 = vmatmul.mubr.f32.gmra.mxu0 %v562
        %v636 = vpop.f32.mrf.mxu0
        %v637 = vadd.f32 %v555, %v636
        %v638 = vpop.f32.mrf.mxu0
        %v639 = vadd.f32 %v557, %v638
        %640 = vdwg.mxu0
        %v641 = vld [vmem:[#allocation2] sm:$0xfc]
        %v642 = vld [vmem:[#allocation2 + $0x20] sm:$0x3]
        %s643 = scalar_lea.vmem %s1, 192
        %v644 = vld [vmem:[%s643] sm:$0xff]
        %v645 = vld [vmem:[%s643 + $0x8] sm:$0xff]
        %v646 = vld [vmem:[%s643 + $0x10] sm:$0xff]
        %v647 = vld [vmem:[%s643 + $0x18] sm:$0xff]
        %v648 = vld [vmem:[%s643 + $0x20] sm:$0xff]
        %v649 = vld [vmem:[%s643 + $0x28] sm:$0xff]
        %v650 = vld [vmem:[%s643 + $0x30] sm:$0xff]
        %v651 = vld [vmem:[%s643 + $0x38] sm:$0xff]
        %v652 = vld [vmem:[%s643 + $0x40] sm:$0xff]
        %v653 = vld [vmem:[%s643 + $0x48] sm:$0xff]
        %v654 = vld [vmem:[%s643 + $0x50] sm:$0xff]
        %v655 = vld [vmem:[%s643 + $0x58] sm:$0xff]
        %vm658 = vcmask 1045504
        %v659 = vrot.slane %v641, 2
        %v660 = vrot.slane %v441, 2
        %v661 = vsel %vm658, %v659, %v660
        %v662 = vrot.slane %v642, 2
        %v663 = vsel %vm658, %v660, %v662
        %v664 = vsel %vm436, %v661, 0
        %v666 = vsel %vm436, %v663, 0
        %668 = vmatprep.subr.mxu0 0.0
        %669 = vmatpush1.msra.mxu0 0.0
        %670 = vmatprep.subr.mxu0 0.0
        %671 = vmatpush1.msra.mxu0 0.0
        %672 = vmatprep.subr.mxu0 0.0
        %673 = vmatpush1.msra.mxu0 0.0
        %674 = vmatprep.subr.mxu0 0.0
        %675 = vmatpush1.msra.mxu0 0.0
        %676 = vmatprep.subr.mxu0 0.0
        %677 = vmatpush1.msra.mxu0 0.0
        %678 = vmatprep.subr.mxu0 0.0
        %679 = vmatpush1.msra.mxu0 0.0
        %680 = vmatprep.subr.mxu0 0.0
        %681 = vmatpush1.msra.mxu0 0.0
        %682 = vmatprep.subr.mxu0 0.0
        %683 = vmatpush1.msra.mxu0 0.0
        %684 = vmatprep.subr.mxu0 0.0
        %685 = vmatpush1.msra.mxu0 0.0
        %686 = vmatprep.subr.mxu0 0.0
        %687 = vmatpush1.msra.mxu0 0.0
        %688 = vmatprep.subr.mxu0 %v655
        %689 = vmatpush1.msra.mxu0 %v654
        %690 = vmatprep.subr.mxu0 %v653
        %691 = vmatpush1.msra.mxu0 %v652
        %692 = vmatprep.subr.mxu0 %v651
        %693 = vmatpush1.msra.mxu0 %v650
        %694 = vmatprep.subr.mxu0 %v649
        %695 = vmatpush1.msra.mxu0 %v648
        %696 = vmatprep.subr.mxu0 %v647
        %697 = vmatpush1.msra.mxu0 %v646
        %698 = vmatprep.subr.mxu0 %v645
        %699 = vmatpush1.msra.mxu0 %v644
        %700 = vmatprep.subr.mxu0 0.0
        %701 = vmatpush2.msra.mxu0 0.0
        %702 = vmatprep.subr.mxu0 0.0
        %703 = vmatpush2.msra.mxu0 0.0
        %704 = vmatprep.subr.mxu0 0.0
        %705 = vmatpush2.msra.mxu0 0.0
        %706 = vmatprep.subr.mxu0 0.0
        %707 = vmatpush2.msra.mxu0 0.0
        %708 = vmatprep.subr.mxu0 0.0
        %709 = vmatpush2.msra.mxu0 0.0
        %710 = vmatprep.subr.mxu0 0.0
        %711 = vmatpush2.msra.mxu0 0.0
        %712 = vmatprep.subr.mxu0 0.0
        %713 = vmatpush2.msra.mxu0 0.0
        %714 = vmatprep.subr.mxu0 0.0
        %715 = vmatpush2.msra.mxu0 0.0
        %716 = vmatprep.subr.mxu0 0.0
        %717 = vmatpush2.msra.mxu0 0.0
        %718 = vmatprep.subr.mxu0 0.0
        %719 = vmatpush2.msra.mxu0 0.0
        %720 = vmatprep.subr.mxu0 0.0
        %721 = vmatpush2.msra.mxu0 0.0
        %722 = vmatprep.subr.mxu0 0.0
        %723 = vmatpush2.msra.mxu0 0.0
        %724 = vmatprep.subr.mxu0 0.0
        %725 = vmatpush2.msra.mxu0 0.0
        %726 = vmatprep.subr.mxu0 0.0
        %727 = vmatpush2.msra.mxu0 0.0
        %728 = vmatprep.subr.mxu0 0.0
        %729 = vmatpush2.msra.mxu0 0.0
        %730 = vmatprep.subr.mxu0 0.0
        %731 = vmatpush2.msra.mxu0 0.0
        %732 = vmatprep.mubr.f32.mxu0 0.0
        %733 = vmatmul.mubr.f32.gmra.mxu0 %v664
        %v734 = vpop.f32.mrf.mxu0
        %v735 = vadd.f32 0.0, %v734
        %v736 = vpop.f32.mrf.mxu0
        %v737 = vadd.f32 0.0, %v736
        %738 = vmatprep.mubr.f32.mxu0 0.0
        %739 = vmatmul.mubr.f32.gmra.mxu0 %v666
        %v740 = vpop.f32.mrf.mxu0
        %v741 = vadd.f32 0.0, %v740
        %v742 = vpop.f32.mrf.mxu0
        %v743 = vadd.f32 0.0, %v742
        %744 = vdwg.mxu0
        %v745 = vadd.f32 %v631, %v735
        %v746 = vadd.f32 %v633, %v737
        %v747 = vadd.f32 %v637, %v741
        %v748 = vadd.f32 %v639, %v743
        %v749 = vld [vmem:[%s2] sm:$0x3]
        %v751 = vlaneseq
        %v752 = vshrl.u32 %v751, 7
        %v753 = vsub.s32 0, %v752
        %v754 = vrot.slane %v749, %v753
        %v755 = vlaneseq
        %v756 = vshrl.u32 %v755, 7
        %v757 = vsub.s32 1, %v756
        %v758 = vrot.slane %v749, %v757
        %v761 = vadd.f32 %v745, %v754
        %v762 = vadd.f32 %v746, %v758
        %v763 = vadd.f32 %v747, %v754
        %v764 = vadd.f32 %v748, %v758
        %v765 = vmax.f32 %v761, 0.0
        %v766 = vmax.f32 %v762, 0.0
        %v767 = vmax.f32 %v763, 0.0
        %v768 = vmax.f32 %v764, 0.0
        %v773 = vrot.slane %v765, 7
        %v774 = vrot.slane %v766, 7
        %v775 = vrot.slane %v767, 7
        %v776 = vsel %vm427, %v773, %v775
        %v777 = vrot.slane %v768, 7
        %v778 = vsel %vm427, %v774, %v777
        %785 = vst [vmem:[#allocation2] sm:$0xfe] %v773
        %786 = vst [vmem:[#allocation2 + $0x8] sm:$0xfe] %v774
        %787 = vst [vmem:[#allocation2 + $0x10] sm:$0xff] %v776
        %788 = vst [vmem:[#allocation2 + $0x18] sm:$0xff] %v778
        %789 = vst [vmem:[#allocation2 + $0x20] sm:$0x1] %v775
        %790 = vst [vmem:[#allocation2 + $0x28] sm:$0x1] %v777
        %v791 = vld [vmem:[#allocation2] sm:$0xff]
        %v792 = vld [vmem:[#allocation2 + $0x8] sm:$0xff]
        %v793 = vld [vmem:[#allocation2 + $0x10] sm:$0xff]
        %v794 = vld [vmem:[#allocation2 + $0x18] sm:$0xff]
        %v795 = vld [vmem:[#allocation3] sm:$0xff]
        %v796 = vld [vmem:[#allocation3 + $0x8] sm:$0xff]
        %v797 = vld [vmem:[#allocation3 + $0x10] sm:$0xff]
        %v798 = vld [vmem:[#allocation3 + $0x18] sm:$0xff]
        %v799 = vld [vmem:[#allocation3 + $0x20] sm:$0xff]
        %v800 = vld [vmem:[#allocation3 + $0x28] sm:$0xff]
        %v801 = vld [vmem:[#allocation3 + $0x30] sm:$0xff]
        %v802 = vld [vmem:[#allocation3 + $0x38] sm:$0xff]
        %v803 = vld [vmem:[#allocation3 + $0x40] sm:$0xff]
        %v804 = vld [vmem:[#allocation3 + $0x48] sm:$0xff]
        %v805 = vld [vmem:[#allocation3 + $0x50] sm:$0xff]
        %v806 = vld [vmem:[#allocation3 + $0x58] sm:$0xff]
        %v807 = vld [vmem:[#allocation3 + $0x60] sm:$0xff]
        %v808 = vld [vmem:[#allocation3 + $0x68] sm:$0xff]
        %v809 = vld [vmem:[#allocation3 + $0x70] sm:$0xff]
        %v810 = vld [vmem:[#allocation3 + $0x78] sm:$0xff]
        %v811 = vld [vmem:[#allocation3 + $0x80] sm:$0xff]
        %v812 = vld [vmem:[#allocation3 + $0x88] sm:$0xff]
        %v813 = vld [vmem:[#allocation3 + $0x90] sm:$0xff]
        %v814 = vld [vmem:[#allocation3 + $0x98] sm:$0xff]
        %v815 = vld [vmem:[#allocation3 + $0xa0] sm:$0xff]
        %v816 = vld [vmem:[#allocation3 + $0xa8] sm:$0xff]
        %v817 = vld [vmem:[#allocation3 + $0xb0] sm:$0xff]
        %v818 = vld [vmem:[#allocation3 + $0xb8] sm:$0xff]
        %v819 = vld [vmem:[#allocation3 + $0xc0] sm:$0xff]
        %v820 = vld [vmem:[#allocation3 + $0xc8] sm:$0xff]
        %v821 = vld [vmem:[#allocation3 + $0xd0] sm:$0xff]
        %v822 = vld [vmem:[#allocation3 + $0xd8] sm:$0xff]
        %v823 = vld [vmem:[#allocation3 + $0xe0] sm:$0xff]
        %v824 = vld [vmem:[#allocation3 + $0xe8] sm:$0xff]
        %v825 = vld [vmem:[#allocation3 + $0xf0] sm:$0xff]
        %v826 = vld [vmem:[#allocation3 + $0xf8] sm:$0xff]
        %v827 = vld [vmem:[#allocation3 + $0x100] sm:$0xff]
        %v828 = vld [vmem:[#allocation3 + $0x108] sm:$0xff]
        %v829 = vld [vmem:[#allocation3 + $0x110] sm:$0xff]
        %v830 = vld [vmem:[#allocation3 + $0x118] sm:$0xff]
        %v831 = vld [vmem:[#allocation3 + $0x120] sm:$0xff]
        %v832 = vld [vmem:[#allocation3 + $0x128] sm:$0xff]
        %v833 = vld [vmem:[#allocation3 + $0x130] sm:$0xff]
        %v834 = vld [vmem:[#allocation3 + $0x138] sm:$0xff]
        %v835 = vld [vmem:[#allocation3 + $0x140] sm:$0xff]
        %v836 = vld [vmem:[#allocation3 + $0x148] sm:$0xff]
        %v837 = vld [vmem:[#allocation3 + $0x150] sm:$0xff]
        %v838 = vld [vmem:[#allocation3 + $0x158] sm:$0xff]
        %v839 = vld [vmem:[#allocation3 + $0x160] sm:$0xff]
        %v840 = vld [vmem:[#allocation3 + $0x168] sm:$0xff]
        %v841 = vld [vmem:[#allocation3 + $0x170] sm:$0xff]
        %v842 = vld [vmem:[#allocation3 + $0x178] sm:$0xff]
        %v843 = vld [vmem:[#allocation3 + $0x180] sm:$0xff]
        %v844 = vld [vmem:[#allocation3 + $0x188] sm:$0xff]
        %v845 = vld [vmem:[#allocation3 + $0x190] sm:$0xff]
        %v846 = vld [vmem:[#allocation3 + $0x198] sm:$0xff]
        %v847 = vld [vmem:[#allocation3 + $0x1a0] sm:$0xff]
        %v848 = vld [vmem:[#allocation3 + $0x1a8] sm:$0xff]
        %v849 = vld [vmem:[#allocation3 + $0x1b0] sm:$0xff]
        %v850 = vld [vmem:[#allocation3 + $0x1b8] sm:$0xff]
        %v851 = vld [vmem:[#allocation3 + $0x1c0] sm:$0xff]
        %v852 = vld [vmem:[#allocation3 + $0x1c8] sm:$0xff]
        %v853 = vld [vmem:[#allocation3 + $0x1d0] sm:$0xff]
        %v854 = vld [vmem:[#allocation3 + $0x1d8] sm:$0xff]
        %v855 = vld [vmem:[#allocation3 + $0x1e0] sm:$0xff]
        %v856 = vld [vmem:[#allocation3 + $0x1e8] sm:$0xff]
        %v857 = vld [vmem:[#allocation3 + $0x1f0] sm:$0xff]
        %v858 = vld [vmem:[#allocation3 + $0x1f8] sm:$0xff]
        %v859 = vld [vmem:[#allocation2] sm:$0xfe]
        %v860 = vld [vmem:[#allocation2 + $0x8] sm:$0xfe]
        %v861 = vld [vmem:[#allocation2 + $0x20] sm:$0x1]
        %v862 = vld [vmem:[#allocation2 + $0x28] sm:$0x1]
        %s863 = scalar_lea.vmem [#allocation3], 512
        %v864 = vld [vmem:[%s863] sm:$0xff]
        %v865 = vld [vmem:[%s863 + $0x8] sm:$0xff]
        %v866 = vld [vmem:[%s863 + $0x10] sm:$0xff]
        %v867 = vld [vmem:[%s863 + $0x18] sm:$0xff]
        %v868 = vld [vmem:[%s863 + $0x20] sm:$0xff]
        %v869 = vld [vmem:[%s863 + $0x28] sm:$0xff]
        %v870 = vld [vmem:[%s863 + $0x30] sm:$0xff]
        %v871 = vld [vmem:[%s863 + $0x38] sm:$0xff]
        %v872 = vld [vmem:[%s863 + $0x40] sm:$0xff]
        %v873 = vld [vmem:[%s863 + $0x48] sm:$0xff]
        %v874 = vld [vmem:[%s863 + $0x50] sm:$0xff]
        %v875 = vld [vmem:[%s863 + $0x58] sm:$0xff]
        %v876 = vld [vmem:[%s863 + $0x60] sm:$0xff]
        %v877 = vld [vmem:[%s863 + $0x68] sm:$0xff]
        %v878 = vld [vmem:[%s863 + $0x70] sm:$0xff]
        %v879 = vld [vmem:[%s863 + $0x78] sm:$0xff]
        %v880 = vld [vmem:[%s863 + $0x80] sm:$0xff]
        %v881 = vld [vmem:[%s863 + $0x88] sm:$0xff]
        %v882 = vld [vmem:[%s863 + $0x90] sm:$0xff]
        %v883 = vld [vmem:[%s863 + $0x98] sm:$0xff]
        %v884 = vld [vmem:[%s863 + $0xa0] sm:$0xff]
        %v885 = vld [vmem:[%s863 + $0xa8] sm:$0xff]
        %v886 = vld [vmem:[%s863 + $0xb0] sm:$0xff]
        %v887 = vld [vmem:[%s863 + $0xb8] sm:$0xff]
        %v888 = vld [vmem:[%s863 + $0xc0] sm:$0xff]
        %v889 = vld [vmem:[%s863 + $0xc8] sm:$0xff]
        %v890 = vld [vmem:[%s863 + $0xd0] sm:$0xff]
        %v891 = vld [vmem:[%s863 + $0xd8] sm:$0xff]
        %v892 = vld [vmem:[%s863 + $0xe0] sm:$0xff]
        %v893 = vld [vmem:[%s863 + $0xe8] sm:$0xff]
        %v894 = vld [vmem:[%s863 + $0xf0] sm:$0xff]
        %v895 = vld [vmem:[%s863 + $0xf8] sm:$0xff]
        %v896 = vld [vmem:[%s863 + $0x100] sm:$0xff]
        %v897 = vld [vmem:[%s863 + $0x108] sm:$0xff]
        %v898 = vld [vmem:[%s863 + $0x110] sm:$0xff]
        %v899 = vld [vmem:[%s863 + $0x118] sm:$0xff]
        %v900 = vld [vmem:[%s863 + $0x120] sm:$0xff]
        %v901 = vld [vmem:[%s863 + $0x128] sm:$0xff]
        %v902 = vld [vmem:[%s863 + $0x130] sm:$0xff]
        %v903 = vld [vmem:[%s863 + $0x138] sm:$0xff]
        %v904 = vld [vmem:[%s863 + $0x140] sm:$0xff]
        %v905 = vld [vmem:[%s863 + $0x148] sm:$0xff]
        %v906 = vld [vmem:[%s863 + $0x150] sm:$0xff]
        %v907 = vld [vmem:[%s863 + $0x158] sm:$0xff]
        %v908 = vld [vmem:[%s863 + $0x160] sm:$0xff]
        %v909 = vld [vmem:[%s863 + $0x168] sm:$0xff]
        %v910 = vld [vmem:[%s863 + $0x170] sm:$0xff]
        %v911 = vld [vmem:[%s863 + $0x178] sm:$0xff]
        %v912 = vld [vmem:[%s863 + $0x180] sm:$0xff]
        %v913 = vld [vmem:[%s863 + $0x188] sm:$0xff]
        %v914 = vld [vmem:[%s863 + $0x190] sm:$0xff]
        %v915 = vld [vmem:[%s863 + $0x198] sm:$0xff]
        %v916 = vld [vmem:[%s863 + $0x1a0] sm:$0xff]
        %v917 = vld [vmem:[%s863 + $0x1a8] sm:$0xff]
        %v918 = vld [vmem:[%s863 + $0x1b0] sm:$0xff]
        %v919 = vld [vmem:[%s863 + $0x1b8] sm:$0xff]
        %v920 = vld [vmem:[%s863 + $0x1c0] sm:$0xff]
        %v921 = vld [vmem:[%s863 + $0x1c8] sm:$0xff]
        %v922 = vld [vmem:[%s863 + $0x1d0] sm:$0xff]
        %v923 = vld [vmem:[%s863 + $0x1d8] sm:$0xff]
        %v924 = vld [vmem:[%s863 + $0x1e0] sm:$0xff]
        %v925 = vld [vmem:[%s863 + $0x1e8] sm:$0xff]
        %v926 = vld [vmem:[%s863 + $0x1f0] sm:$0xff]
        %v927 = vld [vmem:[%s863 + $0x1f8] sm:$0xff]
        %v934 = vrot.slane %v859, 1
        %v935 = vrot.slane %v793, 1
        %v936 = vsel %vm472, %v934, %v935
        %v937 = vrot.slane %v860, 1
        %v938 = vrot.slane %v794, 1
        %v939 = vsel %vm472, %v937, %v938
        %v940 = vrot.slane %v861, 1
        %v941 = vsel %vm472, %v935, %v940
        %v942 = vrot.slane %v862, 1
        %v943 = vsel %vm472, %v938, %v942
        %948 = vmatprep.subr.mxu0 %v895
        %949 = vmatpush1.msra.mxu0 %v894
        %950 = vmatprep.subr.mxu0 %v893
        %951 = vmatpush1.msra.mxu0 %v892
        %952 = vmatprep.subr.mxu0 %v891
        %953 = vmatpush1.msra.mxu0 %v890
        %954 = vmatprep.subr.mxu0 %v889
        %955 = vmatpush1.msra.mxu0 %v888
        %956 = vmatprep.subr.mxu0 %v887
        %957 = vmatpush1.msra.mxu0 %v886
        %958 = vmatprep.subr.mxu0 %v885
        %959 = vmatpush1.msra.mxu0 %v884
        %960 = vmatprep.subr.mxu0 %v883
        %961 = vmatpush1.msra.mxu0 %v882
        %962 = vmatprep.subr.mxu0 %v881
        %963 = vmatpush1.msra.mxu0 %v880
        %964 = vmatprep.subr.mxu0 %v879
        %965 = vmatpush1.msra.mxu0 %v878
        %966 = vmatprep.subr.mxu0 %v877
        %967 = vmatpush1.msra.mxu0 %v876
        %968 = vmatprep.subr.mxu0 %v875
        %969 = vmatpush1.msra.mxu0 %v874
        %970 = vmatprep.subr.mxu0 %v873
        %971 = vmatpush1.msra.mxu0 %v872
        %972 = vmatprep.subr.mxu0 %v871
        %973 = vmatpush1.msra.mxu0 %v870
        %974 = vmatprep.subr.mxu0 %v869
        %975 = vmatpush1.msra.mxu0 %v868
        %976 = vmatprep.subr.mxu0 %v867
        %977 = vmatpush1.msra.mxu0 %v866
        %978 = vmatprep.subr.mxu0 %v865
        %979 = vmatpush1.msra.mxu0 %v864
        %980 = vmatprep.subr.mxu0 %v927
        %981 = vmatpush2.msra.mxu0 %v926
        %982 = vmatprep.subr.mxu0 %v925
        %983 = vmatpush2.msra.mxu0 %v924
        %984 = vmatprep.subr.mxu0 %v923
        %985 = vmatpush2.msra.mxu0 %v922
        %986 = vmatprep.subr.mxu0 %v921
        %987 = vmatpush2.msra.mxu0 %v920
        %988 = vmatprep.subr.mxu0 %v919
        %989 = vmatpush2.msra.mxu0 %v918
        %990 = vmatprep.subr.mxu0 %v917
        %991 = vmatpush2.msra.mxu0 %v916
        %992 = vmatprep.subr.mxu0 %v915
        %993 = vmatpush2.msra.mxu0 %v914
        %994 = vmatprep.subr.mxu0 %v913
        %995 = vmatpush2.msra.mxu0 %v912
        %996 = vmatprep.subr.mxu0 %v911
        %997 = vmatpush2.msra.mxu0 %v910
        %998 = vmatprep.subr.mxu0 %v909
        %999 = vmatpush2.msra.mxu0 %v908
        %1000 = vmatprep.subr.mxu0 %v907
        %1001 = vmatpush2.msra.mxu0 %v906
        %1002 = vmatprep.subr.mxu0 %v905
        %1003 = vmatpush2.msra.mxu0 %v904
        %1004 = vmatprep.subr.mxu0 %v903
        %1005 = vmatpush2.msra.mxu0 %v902
        %1006 = vmatprep.subr.mxu0 %v901
        %1007 = vmatpush2.msra.mxu0 %v900
        %1008 = vmatprep.subr.mxu0 %v899
        %1009 = vmatpush2.msra.mxu0 %v898
        %1010 = vmatprep.subr.mxu0 %v897
        %1011 = vmatpush2.msra.mxu0 %v896
        %1012 = vmatprep.mubr.f32.mxu0 %v939
        %1013 = vmatmul.mubr.f32.gmra.mxu0 %v936
        %v1014 = vpop.f32.mrf.mxu0
        %v1015 = vadd.f32 0.0, %v1014
        %v1016 = vpop.f32.mrf.mxu0
        %v1017 = vadd.f32 0.0, %v1016
        %1018 = vmatprep.mubr.f32.mxu0 %v943
        %1019 = vmatmul.mubr.f32.gmra.mxu0 %v941
        %v1020 = vpop.f32.mrf.mxu0
        %v1021 = vadd.f32 0.0, %v1020
        %v1022 = vpop.f32.mrf.mxu0
        %v1023 = vadd.f32 0.0, %v1022
        %1024 = vdwg.mxu0
        %1025 = vmatprep.subr.mxu0 %v826
        %1026 = vmatpush1.msra.mxu0 %v825
        %1027 = vmatprep.subr.mxu0 %v824
        %1028 = vmatpush1.msra.mxu0 %v823
        %1029 = vmatprep.subr.mxu0 %v822
        %1030 = vmatpush1.msra.mxu0 %v821
        %1031 = vmatprep.subr.mxu0 %v820
        %1032 = vmatpush1.msra.mxu0 %v819
        %1033 = vmatprep.subr.mxu0 %v818
        %1034 = vmatpush1.msra.mxu0 %v817
        %1035 = vmatprep.subr.mxu0 %v816
        %1036 = vmatpush1.msra.mxu0 %v815
        %1037 = vmatprep.subr.mxu0 %v814
        %1038 = vmatpush1.msra.mxu0 %v813
        %1039 = vmatprep.subr.mxu0 %v812
        %1040 = vmatpush1.msra.mxu0 %v811
        %1041 = vmatprep.subr.mxu0 %v810
        %1042 = vmatpush1.msra.mxu0 %v809
        %1043 = vmatprep.subr.mxu0 %v808
        %1044 = vmatpush1.msra.mxu0 %v807
        %1045 = vmatprep.subr.mxu0 %v806
        %1046 = vmatpush1.msra.mxu0 %v805
        %1047 = vmatprep.subr.mxu0 %v804
        %1048 = vmatpush1.msra.mxu0 %v803
        %1049 = vmatprep.subr.mxu0 %v802
        %1050 = vmatpush1.msra.mxu0 %v801
        %1051 = vmatprep.subr.mxu0 %v800
        %1052 = vmatpush1.msra.mxu0 %v799
        %1053 = vmatprep.subr.mxu0 %v798
        %1054 = vmatpush1.msra.mxu0 %v797
        %1055 = vmatprep.subr.mxu0 %v796
        %1056 = vmatpush1.msra.mxu0 %v795
        %1057 = vmatprep.subr.mxu0 %v858
        %1058 = vmatpush2.msra.mxu0 %v857
        %1059 = vmatprep.subr.mxu0 %v856
        %1060 = vmatpush2.msra.mxu0 %v855
        %1061 = vmatprep.subr.mxu0 %v854
        %1062 = vmatpush2.msra.mxu0 %v853
        %1063 = vmatprep.subr.mxu0 %v852
        %1064 = vmatpush2.msra.mxu0 %v851
        %1065 = vmatprep.subr.mxu0 %v850
        %1066 = vmatpush2.msra.mxu0 %v849
        %1067 = vmatprep.subr.mxu0 %v848
        %1068 = vmatpush2.msra.mxu0 %v847
        %1069 = vmatprep.subr.mxu0 %v846
        %1070 = vmatpush2.msra.mxu0 %v845
        %1071 = vmatprep.subr.mxu0 %v844
        %1072 = vmatpush2.msra.mxu0 %v843
        %1073 = vmatprep.subr.mxu0 %v842
        %1074 = vmatpush2.msra.mxu0 %v841
        %1075 = vmatprep.subr.mxu0 %v840
        %1076 = vmatpush2.msra.mxu0 %v839
        %1077 = vmatprep.subr.mxu0 %v838
        %1078 = vmatpush2.msra.mxu0 %v837
        %1079 = vmatprep.subr.mxu0 %v836
        %1080 = vmatpush2.msra.mxu0 %v835
        %1081 = vmatprep.subr.mxu0 %v834
        %1082 = vmatpush2.msra.mxu0 %v833
        %1083 = vmatprep.subr.mxu0 %v832
        %1084 = vmatpush2.msra.mxu0 %v831
        %1085 = vmatprep.subr.mxu0 %v830
        %1086 = vmatpush2.msra.mxu0 %v829
        %1087 = vmatprep.subr.mxu0 %v828
        %1088 = vmatpush2.msra.mxu0 %v827
        %1089 = vmatprep.mubr.f32.mxu0 %v792
        %1090 = vmatmul.mubr.f32.gmra.mxu0 %v791
        %v1091 = vpop.f32.mrf.mxu0
        %v1092 = vadd.f32 %v1015, %v1091
        %v1093 = vpop.f32.mrf.mxu0
        %v1094 = vadd.f32 %v1017, %v1093
        %1095 = vmatprep.mubr.f32.mxu0 %v794
        %1096 = vmatmul.mubr.f32.gmra.mxu0 %v793
        %v1097 = vpop.f32.mrf.mxu0
        %v1098 = vadd.f32 %v1021, %v1097
        %v1099 = vpop.f32.mrf.mxu0
        %v1100 = vadd.f32 %v1023, %v1099
        %1101 = vdwg.mxu0
        %v1102 = vld [vmem:[#allocation2] sm:$0xfc]
        %v1103 = vld [vmem:[#allocation2 + $0x8] sm:$0xfc]
        %v1104 = vld [vmem:[#allocation2 + $0x20] sm:$0x3]
        %v1105 = vld [vmem:[#allocation2 + $0x28] sm:$0x3]
        %s1106 = scalar_lea.vmem [#allocation3], 1024
        %v1107 = vld [vmem:[%s1106] sm:$0xff]
        %v1108 = vld [vmem:[%s1106 + $0x8] sm:$0xff]
        %v1109 = vld [vmem:[%s1106 + $0x10] sm:$0xff]
        %v1110 = vld [vmem:[%s1106 + $0x18] sm:$0xff]
        %v1111 = vld [vmem:[%s1106 + $0x20] sm:$0xff]
        %v1112 = vld [vmem:[%s1106 + $0x28] sm:$0xff]
        %v1113 = vld [vmem:[%s1106 + $0x30] sm:$0xff]
        %v1114 = vld [vmem:[%s1106 + $0x38] sm:$0xff]
        %v1115 = vld [vmem:[%s1106 + $0x40] sm:$0xff]
        %v1116 = vld [vmem:[%s1106 + $0x48] sm:$0xff]
        %v1117 = vld [vmem:[%s1106 + $0x50] sm:$0xff]
        %v1118 = vld [vmem:[%s1106 + $0x58] sm:$0xff]
        %v1119 = vld [vmem:[%s1106 + $0x60] sm:$0xff]
        %v1120 = vld [vmem:[%s1106 + $0x68] sm:$0xff]
        %v1121 = vld [vmem:[%s1106 + $0x70] sm:$0xff]
        %v1122 = vld [vmem:[%s1106 + $0x78] sm:$0xff]
        %v1123 = vld [vmem:[%s1106 + $0x80] sm:$0xff]
        %v1124 = vld [vmem:[%s1106 + $0x88] sm:$0xff]
        %v1125 = vld [vmem:[%s1106 + $0x90] sm:$0xff]
        %v1126 = vld [vmem:[%s1106 + $0x98] sm:$0xff]
        %v1127 = vld [vmem:[%s1106 + $0xa0] sm:$0xff]
        %v1128 = vld [vmem:[%s1106 + $0xa8] sm:$0xff]
        %v1129 = vld [vmem:[%s1106 + $0xb0] sm:$0xff]
        %v1130 = vld [vmem:[%s1106 + $0xb8] sm:$0xff]
        %v1131 = vld [vmem:[%s1106 + $0xc0] sm:$0xff]
        %v1132 = vld [vmem:[%s1106 + $0xc8] sm:$0xff]
        %v1133 = vld [vmem:[%s1106 + $0xd0] sm:$0xff]
        %v1134 = vld [vmem:[%s1106 + $0xd8] sm:$0xff]
        %v1135 = vld [vmem:[%s1106 + $0xe0] sm:$0xff]
        %v1136 = vld [vmem:[%s1106 + $0xe8] sm:$0xff]
        %v1137 = vld [vmem:[%s1106 + $0xf0] sm:$0xff]
        %v1138 = vld [vmem:[%s1106 + $0xf8] sm:$0xff]
        %v1139 = vld [vmem:[%s1106 + $0x100] sm:$0xff]
        %v1140 = vld [vmem:[%s1106 + $0x108] sm:$0xff]
        %v1141 = vld [vmem:[%s1106 + $0x110] sm:$0xff]
        %v1142 = vld [vmem:[%s1106 + $0x118] sm:$0xff]
        %v1143 = vld [vmem:[%s1106 + $0x120] sm:$0xff]
        %v1144 = vld [vmem:[%s1106 + $0x128] sm:$0xff]
        %v1145 = vld [vmem:[%s1106 + $0x130] sm:$0xff]
        %v1146 = vld [vmem:[%s1106 + $0x138] sm:$0xff]
        %v1147 = vld [vmem:[%s1106 + $0x140] sm:$0xff]
        %v1148 = vld [vmem:[%s1106 + $0x148] sm:$0xff]
        %v1149 = vld [vmem:[%s1106 + $0x150] sm:$0xff]
        %v1150 = vld [vmem:[%s1106 + $0x158] sm:$0xff]
        %v1151 = vld [vmem:[%s1106 + $0x160] sm:$0xff]
        %v1152 = vld [vmem:[%s1106 + $0x168] sm:$0xff]
        %v1153 = vld [vmem:[%s1106 + $0x170] sm:$0xff]
        %v1154 = vld [vmem:[%s1106 + $0x178] sm:$0xff]
        %v1155 = vld [vmem:[%s1106 + $0x180] sm:$0xff]
        %v1156 = vld [vmem:[%s1106 + $0x188] sm:$0xff]
        %v1157 = vld [vmem:[%s1106 + $0x190] sm:$0xff]
        %v1158 = vld [vmem:[%s1106 + $0x198] sm:$0xff]
        %v1159 = vld [vmem:[%s1106 + $0x1a0] sm:$0xff]
        %v1160 = vld [vmem:[%s1106 + $0x1a8] sm:$0xff]
        %v1161 = vld [vmem:[%s1106 + $0x1b0] sm:$0xff]
        %v1162 = vld [vmem:[%s1106 + $0x1b8] sm:$0xff]
        %v1163 = vld [vmem:[%s1106 + $0x1c0] sm:$0xff]
        %v1164 = vld [vmem:[%s1106 + $0x1c8] sm:$0xff]
        %v1165 = vld [vmem:[%s1106 + $0x1d0] sm:$0xff]
        %v1166 = vld [vmem:[%s1106 + $0x1d8] sm:$0xff]
        %v1167 = vld [vmem:[%s1106 + $0x1e0] sm:$0xff]
        %v1168 = vld [vmem:[%s1106 + $0x1e8] sm:$0xff]
        %v1169 = vld [vmem:[%s1106 + $0x1f0] sm:$0xff]
        %v1170 = vld [vmem:[%s1106 + $0x1f8] sm:$0xff]
        %v1175 = vrot.slane %v1102, 2
        %v1176 = vrot.slane %v793, 2
        %v1177 = vsel %vm658, %v1175, %v1176
        %v1178 = vrot.slane %v1103, 2
        %v1179 = vrot.slane %v794, 2
        %v1180 = vsel %vm658, %v1178, %v1179
        %v1181 = vrot.slane %v1104, 2
        %v1182 = vsel %vm658, %v1176, %v1181
        %v1183 = vrot.slane %v1105, 2
        %v1184 = vsel %vm658, %v1179, %v1183
        %1189 = vmatprep.subr.mxu0 %v1138
        %1190 = vmatpush1.msra.mxu0 %v1137
        %1191 = vmatprep.subr.mxu0 %v1136
        %1192 = vmatpush1.msra.mxu0 %v1135
        %1193 = vmatprep.subr.mxu0 %v1134
        %1194 = vmatpush1.msra.mxu0 %v1133
        %1195 = vmatprep.subr.mxu0 %v1132
        %1196 = vmatpush1.msra.mxu0 %v1131
        %1197 = vmatprep.subr.mxu0 %v1130
        %1198 = vmatpush1.msra.mxu0 %v1129
        %1199 = vmatprep.subr.mxu0 %v1128
        %1200 = vmatpush1.msra.mxu0 %v1127
        %1201 = vmatprep.subr.mxu0 %v1126
        %1202 = vmatpush1.msra.mxu0 %v1125
        %1203 = vmatprep.subr.mxu0 %v1124
        %1204 = vmatpush1.msra.mxu0 %v1123
        %1205 = vmatprep.subr.mxu0 %v1122
        %1206 = vmatpush1.msra.mxu0 %v1121
        %1207 = vmatprep.subr.mxu0 %v1120
        %1208 = vmatpush1.msra.mxu0 %v1119
        %1209 = vmatprep.subr.mxu0 %v1118
        %1210 = vmatpush1.msra.mxu0 %v1117
        %1211 = vmatprep.subr.mxu0 %v1116
        %1212 = vmatpush1.msra.mxu0 %v1115
        %1213 = vmatprep.subr.mxu0 %v1114
        %1214 = vmatpush1.msra.mxu0 %v1113
        %1215 = vmatprep.subr.mxu0 %v1112
        %1216 = vmatpush1.msra.mxu0 %v1111
        %1217 = vmatprep.subr.mxu0 %v1110
        %1218 = vmatpush1.msra.mxu0 %v1109
        %1219 = vmatprep.subr.mxu0 %v1108
        %1220 = vmatpush1.msra.mxu0 %v1107
        %1221 = vmatprep.subr.mxu0 %v1170
        %1222 = vmatpush2.msra.mxu0 %v1169
        %1223 = vmatprep.subr.mxu0 %v1168
        %1224 = vmatpush2.msra.mxu0 %v1167
        %1225 = vmatprep.subr.mxu0 %v1166
        %1226 = vmatpush2.msra.mxu0 %v1165
        %1227 = vmatprep.subr.mxu0 %v1164
        %1228 = vmatpush2.msra.mxu0 %v1163
        %1229 = vmatprep.subr.mxu0 %v1162
        %1230 = vmatpush2.msra.mxu0 %v1161
        %1231 = vmatprep.subr.mxu0 %v1160
        %1232 = vmatpush2.msra.mxu0 %v1159
        %1233 = vmatprep.subr.mxu0 %v1158
        %1234 = vmatpush2.msra.mxu0 %v1157
        %1235 = vmatprep.subr.mxu0 %v1156
        %1236 = vmatpush2.msra.mxu0 %v1155
        %1237 = vmatprep.subr.mxu0 %v1154
        %1238 = vmatpush2.msra.mxu0 %v1153
        %1239 = vmatprep.subr.mxu0 %v1152
        %1240 = vmatpush2.msra.mxu0 %v1151
        %1241 = vmatprep.subr.mxu0 %v1150
        %1242 = vmatpush2.msra.mxu0 %v1149
        %1243 = vmatprep.subr.mxu0 %v1148
        %1244 = vmatpush2.msra.mxu0 %v1147
        %1245 = vmatprep.subr.mxu0 %v1146
        %1246 = vmatpush2.msra.mxu0 %v1145
        %1247 = vmatprep.subr.mxu0 %v1144
        %1248 = vmatpush2.msra.mxu0 %v1143
        %1249 = vmatprep.subr.mxu0 %v1142
        %1250 = vmatpush2.msra.mxu0 %v1141
        %1251 = vmatprep.subr.mxu0 %v1140
        %1252 = vmatpush2.msra.mxu0 %v1139
        %1253 = vmatprep.mubr.f32.mxu0 %v1180
        %1254 = vmatmul.mubr.f32.gmra.mxu0 %v1177
        %v1255 = vpop.f32.mrf.mxu0
        %v1256 = vadd.f32 0.0, %v1255
        %v1257 = vpop.f32.mrf.mxu0
        %v1258 = vadd.f32 0.0, %v1257
        %1259 = vmatprep.mubr.f32.mxu0 %v1184
        %1260 = vmatmul.mubr.f32.gmra.mxu0 %v1182
        %v1261 = vpop.f32.mrf.mxu0
        %v1262 = vadd.f32 0.0, %v1261
        %v1263 = vpop.f32.mrf.mxu0
        %v1264 = vadd.f32 0.0, %v1263
        %1265 = vdwg.mxu0
        %v1266 = vadd.f32 %v1092, %v1256
        %v1267 = vadd.f32 %v1094, %v1258
        %v1268 = vadd.f32 %v1098, %v1262
        %v1269 = vadd.f32 %v1100, %v1264
        %v1270 = vld [vmem:[%s4] sm:$0x3]
        %v1272 = vlaneseq
        %v1273 = vshrl.u32 %v1272, 7
        %v1274 = vsub.s32 0, %v1273
        %v1275 = vrot.slane %v1270, %v1274
        %v1276 = vlaneseq
        %v1277 = vshrl.u32 %v1276, 7
        %v1278 = vsub.s32 1, %v1277
        %v1279 = vrot.slane %v1270, %v1278
        %v1282 = vadd.f32 %v1266, %v1275
        %v1283 = vadd.f32 %v1267, %v1279
        %v1284 = vadd.f32 %v1268, %v1275
        %v1285 = vadd.f32 %v1269, %v1279
        %v1286 = vmax.f32 %v1282, 0.0
        %v1287 = vmax.f32 %v1283, 0.0
        %v1288 = vmax.f32 %v1284, 0.0
        %v1289 = vmax.f32 %v1285, 0.0
        %1290 = vst [vmem:[%s411] sm:$0xff] %v1286
        %1291 = vst [vmem:[%s411 + $0x8] sm:$0xff] %v1287
        %1292 = vst [vmem:[%s411 + $0x10] sm:$0xff] %v1288
        %1293 = vst [vmem:[%s411 + $0x18] sm:$0xff] %v1289
        %v1298 = vrot.slane %v1286, 7
        %v1299 = vrot.slane %v1287, 7
        %v1300 = vrot.slane %v1288, 7
        %v1301 = vsel %vm427, %v1298, %v1300
        %v1302 = vrot.slane %v1289, 7
        %v1303 = vsel %vm427, %v1299, %v1302
        %1310 = vst [vmem:[#allocation2] sm:$0xfe] %v1298
        %1311 = vst [vmem:[#allocation2 + $0x8] sm:$0xfe] %v1299
        %1312 = vst [vmem:[#allocation2 + $0x10] sm:$0xff] %v1301
        %1313 = vst [vmem:[#allocation2 + $0x18] sm:$0xff] %v1303
        %1314 = vst [vmem:[#allocation2 + $0x20] sm:$0x1] %v1300
        %1315 = vst [vmem:[#allocation2 + $0x28] sm:$0x1] %v1302
        %v1316 = vld [vmem:[#allocation2] sm:$0xff]
        %v1317 = vld [vmem:[#allocation2 + $0x8] sm:$0xff]
        %v1318 = vld [vmem:[#allocation2 + $0x10] sm:$0xff]
        %v1319 = vld [vmem:[#allocation2 + $0x18] sm:$0xff]
        %v1320 = vld [vmem:[#allocation5] sm:$0xff]
        %v1321 = vld [vmem:[#allocation5 + $0x8] sm:$0xff]
        %v1322 = vld [vmem:[#allocation5 + $0x10] sm:$0xff]
        %v1323 = vld [vmem:[#allocation5 + $0x18] sm:$0xff]
        %v1324 = vld [vmem:[#allocation5 + $0x20] sm:$0xff]
        %v1325 = vld [vmem:[#allocation5 + $0x28] sm:$0xff]
        %v1326 = vld [vmem:[#allocation5 + $0x30] sm:$0xff]
        %v1327 = vld [vmem:[#allocation5 + $0x38] sm:$0xff]
        %v1328 = vld [vmem:[#allocation5 + $0x40] sm:$0xff]
        %v1329 = vld [vmem:[#allocation5 + $0x48] sm:$0xff]
        %v1330 = vld [vmem:[#allocation5 + $0x50] sm:$0xff]
        %v1331 = vld [vmem:[#allocation5 + $0x58] sm:$0xff]
        %v1332 = vld [vmem:[#allocation5 + $0x60] sm:$0xff]
        %v1333 = vld [vmem:[#allocation5 + $0x68] sm:$0xff]
        %v1334 = vld [vmem:[#allocation5 + $0x70] sm:$0xff]
        %v1335 = vld [vmem:[#allocation5 + $0x78] sm:$0xff]
        %v1336 = vld [vmem:[#allocation5 + $0x80] sm:$0xff]
        %v1337 = vld [vmem:[#allocation5 + $0x88] sm:$0xff]
        %v1338 = vld [vmem:[#allocation5 + $0x90] sm:$0xff]
        %v1339 = vld [vmem:[#allocation5 + $0x98] sm:$0xff]
        %v1340 = vld [vmem:[#allocation5 + $0xa0] sm:$0xff]
        %v1341 = vld [vmem:[#allocation5 + $0xa8] sm:$0xff]
        %v1342 = vld [vmem:[#allocation5 + $0xb0] sm:$0xff]
        %v1343 = vld [vmem:[#allocation5 + $0xb8] sm:$0xff]
        %v1344 = vld [vmem:[#allocation5 + $0xc0] sm:$0xff]
        %v1345 = vld [vmem:[#allocation5 + $0xc8] sm:$0xff]
        %v1346 = vld [vmem:[#allocation5 + $0xd0] sm:$0xff]
        %v1347 = vld [vmem:[#allocation5 + $0xd8] sm:$0xff]
        %v1348 = vld [vmem:[#allocation5 + $0xe0] sm:$0xff]
        %v1349 = vld [vmem:[#allocation5 + $0xe8] sm:$0xff]
        %v1350 = vld [vmem:[#allocation5 + $0xf0] sm:$0xff]
        %v1351 = vld [vmem:[#allocation5 + $0xf8] sm:$0xff]
        %v1352 = vld [vmem:[#allocation5 + $0x100] sm:$0xff]
        %v1353 = vld [vmem:[#allocation5 + $0x108] sm:$0xff]
        %v1354 = vld [vmem:[#allocation5 + $0x110] sm:$0xff]
        %v1355 = vld [vmem:[#allocation5 + $0x118] sm:$0xff]
        %v1356 = vld [vmem:[#allocation5 + $0x120] sm:$0xff]
        %v1357 = vld [vmem:[#allocation5 + $0x128] sm:$0xff]
        %v1358 = vld [vmem:[#allocation5 + $0x130] sm:$0xff]
        %v1359 = vld [vmem:[#allocation5 + $0x138] sm:$0xff]
        %v1360 = vld [vmem:[#allocation5 + $0x140] sm:$0xff]
        %v1361 = vld [vmem:[#allocation5 + $0x148] sm:$0xff]
        %v1362 = vld [vmem:[#allocation5 + $0x150] sm:$0xff]
        %v1363 = vld [vmem:[#allocation5 + $0x158] sm:$0xff]
        %v1364 = vld [vmem:[#allocation5 + $0x160] sm:$0xff]
        %v1365 = vld [vmem:[#allocation5 + $0x168] sm:$0xff]
        %v1366 = vld [vmem:[#allocation5 + $0x170] sm:$0xff]
        %v1367 = vld [vmem:[#allocation5 + $0x178] sm:$0xff]
        %v1368 = vld [vmem:[#allocation5 + $0x180] sm:$0xff]
        %v1369 = vld [vmem:[#allocation5 + $0x188] sm:$0xff]
        %v1370 = vld [vmem:[#allocation5 + $0x190] sm:$0xff]
        %v1371 = vld [vmem:[#allocation5 + $0x198] sm:$0xff]
        %v1372 = vld [vmem:[#allocation5 + $0x1a0] sm:$0xff]
        %v1373 = vld [vmem:[#allocation5 + $0x1a8] sm:$0xff]
        %v1374 = vld [vmem:[#allocation5 + $0x1b0] sm:$0xff]
        %v1375 = vld [vmem:[#allocation5 + $0x1b8] sm:$0xff]
        %v1376 = vld [vmem:[#allocation5 + $0x1c0] sm:$0xff]
        %v1377 = vld [vmem:[#allocation5 + $0x1c8] sm:$0xff]
        %v1378 = vld [vmem:[#allocation5 + $0x1d0] sm:$0xff]
        %v1379 = vld [vmem:[#allocation5 + $0x1d8] sm:$0xff]
        %v1380 = vld [vmem:[#allocation5 + $0x1e0] sm:$0xff]
        %v1381 = vld [vmem:[#allocation5 + $0x1e8] sm:$0xff]
        %v1382 = vld [vmem:[#allocation5 + $0x1f0] sm:$0xff]
        %v1383 = vld [vmem:[#allocation5 + $0x1f8] sm:$0xff]
        %v1384 = vld [vmem:[#allocation2] sm:$0xfe]
        %v1385 = vld [vmem:[#allocation2 + $0x8] sm:$0xfe]
        %v1386 = vld [vmem:[#allocation2 + $0x20] sm:$0x1]
        %v1387 = vld [vmem:[#allocation2 + $0x28] sm:$0x1]
        %s1388 = scalar_lea.vmem [#allocation5], 512
        %v1389 = vld [vmem:[%s1388] sm:$0xff]
        %v1390 = vld [vmem:[%s1388 + $0x8] sm:$0xff]
        %v1391 = vld [vmem:[%s1388 + $0x10] sm:$0xff]
        %v1392 = vld [vmem:[%s1388 + $0x18] sm:$0xff]
        %v1393 = vld [vmem:[%s1388 + $0x20] sm:$0xff]
        %v1394 = vld [vmem:[%s1388 + $0x28] sm:$0xff]
        %v1395 = vld [vmem:[%s1388 + $0x30] sm:$0xff]
        %v1396 = vld [vmem:[%s1388 + $0x38] sm:$0xff]
        %v1397 = vld [vmem:[%s1388 + $0x40] sm:$0xff]
        %v1398 = vld [vmem:[%s1388 + $0x48] sm:$0xff]
        %v1399 = vld [vmem:[%s1388 + $0x50] sm:$0xff]
        %v1400 = vld [vmem:[%s1388 + $0x58] sm:$0xff]
        %v1401 = vld [vmem:[%s1388 + $0x60] sm:$0xff]
        %v1402 = vld [vmem:[%s1388 + $0x68] sm:$0xff]
        %v1403 = vld [vmem:[%s1388 + $0x70] sm:$0xff]
        %v1404 = vld [vmem:[%s1388 + $0x78] sm:$0xff]
        %v1405 = vld [vmem:[%s1388 + $0x80] sm:$0xff]
        %v1406 = vld [vmem:[%s1388 + $0x88] sm:$0xff]
        %v1407 = vld [vmem:[%s1388 + $0x90] sm:$0xff]
        %v1408 = vld [vmem:[%s1388 + $0x98] sm:$0xff]
        %v1409 = vld [vmem:[%s1388 + $0xa0] sm:$0xff]
        %v1410 = vld [vmem:[%s1388 + $0xa8] sm:$0xff]
        %v1411 = vld [vmem:[%s1388 + $0xb0] sm:$0xff]
        %v1412 = vld [vmem:[%s1388 + $0xb8] sm:$0xff]
        %v1413 = vld [vmem:[%s1388 + $0xc0] sm:$0xff]
        %v1414 = vld [vmem:[%s1388 + $0xc8] sm:$0xff]
        %v1415 = vld [vmem:[%s1388 + $0xd0] sm:$0xff]
        %v1416 = vld [vmem:[%s1388 + $0xd8] sm:$0xff]
        %v1417 = vld [vmem:[%s1388 + $0xe0] sm:$0xff]
        %v1418 = vld [vmem:[%s1388 + $0xe8] sm:$0xff]
        %v1419 = vld [vmem:[%s1388 + $0xf0] sm:$0xff]
        %v1420 = vld [vmem:[%s1388 + $0xf8] sm:$0xff]
        %v1421 = vld [vmem:[%s1388 + $0x100] sm:$0xff]
        %v1422 = vld [vmem:[%s1388 + $0x108] sm:$0xff]
        %v1423 = vld [vmem:[%s1388 + $0x110] sm:$0xff]
        %v1424 = vld [vmem:[%s1388 + $0x118] sm:$0xff]
        %v1425 = vld [vmem:[%s1388 + $0x120] sm:$0xff]
        %v1426 = vld [vmem:[%s1388 + $0x128] sm:$0xff]
        %v1427 = vld [vmem:[%s1388 + $0x130] sm:$0xff]
        %v1428 = vld [vmem:[%s1388 + $0x138] sm:$0xff]
        %v1429 = vld [vmem:[%s1388 + $0x140] sm:$0xff]
        %v1430 = vld [vmem:[%s1388 + $0x148] sm:$0xff]
        %v1431 = vld [vmem:[%s1388 + $0x150] sm:$0xff]
        %v1432 = vld [vmem:[%s1388 + $0x158] sm:$0xff]
        %v1433 = vld [vmem:[%s1388 + $0x160] sm:$0xff]
        %v1434 = vld [vmem:[%s1388 + $0x168] sm:$0xff]
        %v1435 = vld [vmem:[%s1388 + $0x170] sm:$0xff]
        %v1436 = vld [vmem:[%s1388 + $0x178] sm:$0xff]
        %v1437 = vld [vmem:[%s1388 + $0x180] sm:$0xff]
        %v1438 = vld [vmem:[%s1388 + $0x188] sm:$0xff]
        %v1439 = vld [vmem:[%s1388 + $0x190] sm:$0xff]
        %v1440 = vld [vmem:[%s1388 + $0x198] sm:$0xff]
        %v1441 = vld [vmem:[%s1388 + $0x1a0] sm:$0xff]
        %v1442 = vld [vmem:[%s1388 + $0x1a8] sm:$0xff]
        %v1443 = vld [vmem:[%s1388 + $0x1b0] sm:$0xff]
        %v1444 = vld [vmem:[%s1388 + $0x1b8] sm:$0xff]
        %v1445 = vld [vmem:[%s1388 + $0x1c0] sm:$0xff]
        %v1446 = vld [vmem:[%s1388 + $0x1c8] sm:$0xff]
        %v1447 = vld [vmem:[%s1388 + $0x1d0] sm:$0xff]
        %v1448 = vld [vmem:[%s1388 + $0x1d8] sm:$0xff]
        %v1449 = vld [vmem:[%s1388 + $0x1e0] sm:$0xff]
        %v1450 = vld [vmem:[%s1388 + $0x1e8] sm:$0xff]
        %v1451 = vld [vmem:[%s1388 + $0x1f0] sm:$0xff]
        %v1452 = vld [vmem:[%s1388 + $0x1f8] sm:$0xff]
        %v1459 = vrot.slane %v1384, 1
        %v1460 = vrot.slane %v1318, 1
        %v1461 = vsel %vm472, %v1459, %v1460
        %v1462 = vrot.slane %v1385, 1
        %v1463 = vrot.slane %v1319, 1
        %v1464 = vsel %vm472, %v1462, %v1463
        %v1465 = vrot.slane %v1386, 1
        %v1466 = vsel %vm472, %v1460, %v1465
        %v1467 = vrot.slane %v1387, 1
        %v1468 = vsel %vm472, %v1463, %v1467
        %1473 = vmatprep.subr.mxu0 %v1420
        %1474 = vmatpush1.msra.mxu0 %v1419
        %1475 = vmatprep.subr.mxu0 %v1418
        %1476 = vmatpush1.msra.mxu0 %v1417
        %1477 = vmatprep.subr.mxu0 %v1416
        %1478 = vmatpush1.msra.mxu0 %v1415
        %1479 = vmatprep.subr.mxu0 %v1414
        %1480 = vmatpush1.msra.mxu0 %v1413
        %1481 = vmatprep.subr.mxu0 %v1412
        %1482 = vmatpush1.msra.mxu0 %v1411
        %1483 = vmatprep.subr.mxu0 %v1410
        %1484 = vmatpush1.msra.mxu0 %v1409
        %1485 = vmatprep.subr.mxu0 %v1408
        %1486 = vmatpush1.msra.mxu0 %v1407
        %1487 = vmatprep.subr.mxu0 %v1406
        %1488 = vmatpush1.msra.mxu0 %v1405
        %1489 = vmatprep.subr.mxu0 %v1404
        %1490 = vmatpush1.msra.mxu0 %v1403
        %1491 = vmatprep.subr.mxu0 %v1402
        %1492 = vmatpush1.msra.mxu0 %v1401
        %1493 = vmatprep.subr.mxu0 %v1400
        %1494 = vmatpush1.msra.mxu0 %v1399
        %1495 = vmatprep.subr.mxu0 %v1398
        %1496 = vmatpush1.msra.mxu0 %v1397
        %1497 = vmatprep.subr.mxu0 %v1396
        %1498 = vmatpush1.msra.mxu0 %v1395
        %1499 = vmatprep.subr.mxu0 %v1394
        %1500 = vmatpush1.msra.mxu0 %v1393
        %1501 = vmatprep.subr.mxu0 %v1392
        %1502 = vmatpush1.msra.mxu0 %v1391
        %1503 = vmatprep.subr.mxu0 %v1390
        %1504 = vmatpush1.msra.mxu0 %v1389
        %1505 = vmatprep.subr.mxu0 %v1452
        %1506 = vmatpush2.msra.mxu0 %v1451
        %1507 = vmatprep.subr.mxu0 %v1450
        %1508 = vmatpush2.msra.mxu0 %v1449
        %1509 = vmatprep.subr.mxu0 %v1448
        %1510 = vmatpush2.msra.mxu0 %v1447
        %1511 = vmatprep.subr.mxu0 %v1446
        %1512 = vmatpush2.msra.mxu0 %v1445
        %1513 = vmatprep.subr.mxu0 %v1444
        %1514 = vmatpush2.msra.mxu0 %v1443
        %1515 = vmatprep.subr.mxu0 %v1442
        %1516 = vmatpush2.msra.mxu0 %v1441
        %1517 = vmatprep.subr.mxu0 %v1440
        %1518 = vmatpush2.msra.mxu0 %v1439
        %1519 = vmatprep.subr.mxu0 %v1438
        %1520 = vmatpush2.msra.mxu0 %v1437
        %1521 = vmatprep.subr.mxu0 %v1436
        %1522 = vmatpush2.msra.mxu0 %v1435
        %1523 = vmatprep.subr.mxu0 %v1434
        %1524 = vmatpush2.msra.mxu0 %v1433
        %1525 = vmatprep.subr.mxu0 %v1432
        %1526 = vmatpush2.msra.mxu0 %v1431
        %1527 = vmatprep.subr.mxu0 %v1430
        %1528 = vmatpush2.msra.mxu0 %v1429
        %1529 = vmatprep.subr.mxu0 %v1428
        %1530 = vmatpush2.msra.mxu0 %v1427
        %1531 = vmatprep.subr.mxu0 %v1426
        %1532 = vmatpush2.msra.mxu0 %v1425
        %1533 = vmatprep.subr.mxu0 %v1424
        %1534 = vmatpush2.msra.mxu0 %v1423
        %1535 = vmatprep.subr.mxu0 %v1422
        %1536 = vmatpush2.msra.mxu0 %v1421
        %1537 = vmatprep.mubr.f32.mxu0 %v1464
        %1538 = vmatmul.mubr.f32.gmra.mxu0 %v1461
        %v1539 = vpop.f32.mrf.mxu0
        %v1540 = vadd.f32 0.0, %v1539
        %v1541 = vpop.f32.mrf.mxu0
        %v1542 = vadd.f32 0.0, %v1541
        %1543 = vmatprep.mubr.f32.mxu0 %v1468
        %1544 = vmatmul.mubr.f32.gmra.mxu0 %v1466
        %v1545 = vpop.f32.mrf.mxu0
        %v1546 = vadd.f32 0.0, %v1545
        %v1547 = vpop.f32.mrf.mxu0
        %v1548 = vadd.f32 0.0, %v1547
        %1549 = vdwg.mxu0
        %1550 = vmatprep.subr.mxu0 %v1351
        %1551 = vmatpush1.msra.mxu0 %v1350
        %1552 = vmatprep.subr.mxu0 %v1349
        %1553 = vmatpush1.msra.mxu0 %v1348
        %1554 = vmatprep.subr.mxu0 %v1347
        %1555 = vmatpush1.msra.mxu0 %v1346
        %1556 = vmatprep.subr.mxu0 %v1345
        %1557 = vmatpush1.msra.mxu0 %v1344
        %1558 = vmatprep.subr.mxu0 %v1343
        %1559 = vmatpush1.msra.mxu0 %v1342
        %1560 = vmatprep.subr.mxu0 %v1341
        %1561 = vmatpush1.msra.mxu0 %v1340
        %1562 = vmatprep.subr.mxu0 %v1339
        %1563 = vmatpush1.msra.mxu0 %v1338
        %1564 = vmatprep.subr.mxu0 %v1337
        %1565 = vmatpush1.msra.mxu0 %v1336
        %1566 = vmatprep.subr.mxu0 %v1335
        %1567 = vmatpush1.msra.mxu0 %v1334
        %1568 = vmatprep.subr.mxu0 %v1333
        %1569 = vmatpush1.msra.mxu0 %v1332
        %1570 = vmatprep.subr.mxu0 %v1331
        %1571 = vmatpush1.msra.mxu0 %v1330
        %1572 = vmatprep.subr.mxu0 %v1329
        %1573 = vmatpush1.msra.mxu0 %v1328
        %1574 = vmatprep.subr.mxu0 %v1327
        %1575 = vmatpush1.msra.mxu0 %v1326
        %1576 = vmatprep.subr.mxu0 %v1325
        %1577 = vmatpush1.msra.mxu0 %v1324
        %1578 = vmatprep.subr.mxu0 %v1323
        %1579 = vmatpush1.msra.mxu0 %v1322
        %1580 = vmatprep.subr.mxu0 %v1321
        %1581 = vmatpush1.msra.mxu0 %v1320
        %1582 = vmatprep.subr.mxu0 %v1383
        %1583 = vmatpush2.msra.mxu0 %v1382
        %1584 = vmatprep.subr.mxu0 %v1381
        %1585 = vmatpush2.msra.mxu0 %v1380
        %1586 = vmatprep.subr.mxu0 %v1379
        %1587 = vmatpush2.msra.mxu0 %v1378
        %1588 = vmatprep.subr.mxu0 %v1377
        %1589 = vmatpush2.msra.mxu0 %v1376
        %1590 = vmatprep.subr.mxu0 %v1375
        %1591 = vmatpush2.msra.mxu0 %v1374
        %1592 = vmatprep.subr.mxu0 %v1373
        %1593 = vmatpush2.msra.mxu0 %v1372
        %1594 = vmatprep.subr.mxu0 %v1371
        %1595 = vmatpush2.msra.mxu0 %v1370
        %1596 = vmatprep.subr.mxu0 %v1369
        %1597 = vmatpush2.msra.mxu0 %v1368
        %1598 = vmatprep.subr.mxu0 %v1367
        %1599 = vmatpush2.msra.mxu0 %v1366
        %1600 = vmatprep.subr.mxu0 %v1365
        %1601 = vmatpush2.msra.mxu0 %v1364
        %1602 = vmatprep.subr.mxu0 %v1363
        %1603 = vmatpush2.msra.mxu0 %v1362
        %1604 = vmatprep.subr.mxu0 %v1361
        %1605 = vmatpush2.msra.mxu0 %v1360
        %1606 = vmatprep.subr.mxu0 %v1359
        %1607 = vmatpush2.msra.mxu0 %v1358
        %1608 = vmatprep.subr.mxu0 %v1357
        %1609 = vmatpush2.msra.mxu0 %v1356
        %1610 = vmatprep.subr.mxu0 %v1355
        %1611 = vmatpush2.msra.mxu0 %v1354
        %1612 = vmatprep.subr.mxu0 %v1353
        %1613 = vmatpush2.msra.mxu0 %v1352
        %1614 = vmatprep.mubr.f32.mxu0 %v1317
        %1615 = vmatmul.mubr.f32.gmra.mxu0 %v1316
        %v1616 = vpop.f32.mrf.mxu0
        %v1617 = vadd.f32 %v1540, %v1616
        %v1618 = vpop.f32.mrf.mxu0
        %v1619 = vadd.f32 %v1542, %v1618
        %1620 = vmatprep.mubr.f32.mxu0 %v1319
        %1621 = vmatmul.mubr.f32.gmra.mxu0 %v1318
        %v1622 = vpop.f32.mrf.mxu0
        %v1623 = vadd.f32 %v1546, %v1622
        %v1624 = vpop.f32.mrf.mxu0
        %v1625 = vadd.f32 %v1548, %v1624
        %1626 = vdwg.mxu0
        %v1627 = vld [vmem:[#allocation2] sm:$0xfc]
        %v1628 = vld [vmem:[#allocation2 + $0x8] sm:$0xfc]
        %v1629 = vld [vmem:[#allocation2 + $0x20] sm:$0x3]
        %v1630 = vld [vmem:[#allocation2 + $0x28] sm:$0x3]
        %s1631 = scalar_lea.vmem [#allocation5], 1024
        %v1632 = vld [vmem:[%s1631] sm:$0xff]
        %v1633 = vld [vmem:[%s1631 + $0x8] sm:$0xff]
        %v1634 = vld [vmem:[%s1631 + $0x10] sm:$0xff]
        %v1635 = vld [vmem:[%s1631 + $0x18] sm:$0xff]
        %v1636 = vld [vmem:[%s1631 + $0x20] sm:$0xff]
        %v1637 = vld [vmem:[%s1631 + $0x28] sm:$0xff]
        %v1638 = vld [vmem:[%s1631 + $0x30] sm:$0xff]
        %v1639 = vld [vmem:[%s1631 + $0x38] sm:$0xff]
        %v1640 = vld [vmem:[%s1631 + $0x40] sm:$0xff]
        %v1641 = vld [vmem:[%s1631 + $0x48] sm:$0xff]
        %v1642 = vld [vmem:[%s1631 + $0x50] sm:$0xff]
        %v1643 = vld [vmem:[%s1631 + $0x58] sm:$0xff]
        %v1644 = vld [vmem:[%s1631 + $0x60] sm:$0xff]
        %v1645 = vld [vmem:[%s1631 + $0x68] sm:$0xff]
        %v1646 = vld [vmem:[%s1631 + $0x70] sm:$0xff]
        %v1647 = vld [vmem:[%s1631 + $0x78] sm:$0xff]
        %v1648 = vld [vmem:[%s1631 + $0x80] sm:$0xff]
        %v1649 = vld [vmem:[%s1631 + $0x88] sm:$0xff]
        %v1650 = vld [vmem:[%s1631 + $0x90] sm:$0xff]
        %v1651 = vld [vmem:[%s1631 + $0x98] sm:$0xff]
        %v1652 = vld [vmem:[%s1631 + $0xa0] sm:$0xff]
        %v1653 = vld [vmem:[%s1631 + $0xa8] sm:$0xff]
        %v1654 = vld [vmem:[%s1631 + $0xb0] sm:$0xff]
        %v1655 = vld [vmem:[%s1631 + $0xb8] sm:$0xff]
        %v1656 = vld [vmem:[%s1631 + $0xc0] sm:$0xff]
        %v1657 = vld [vmem:[%s1631 + $0xc8] sm:$0xff]
        %v1658 = vld [vmem:[%s1631 + $0xd0] sm:$0xff]
        %v1659 = vld [vmem:[%s1631 + $0xd8] sm:$0xff]
        %v1660 = vld [vmem:[%s1631 + $0xe0] sm:$0xff]
        %v1661 = vld [vmem:[%s1631 + $0xe8] sm:$0xff]
        %v1662 = vld [vmem:[%s1631 + $0xf0] sm:$0xff]
        %v1663 = vld [vmem:[%s1631 + $0xf8] sm:$0xff]
        %v1664 = vld [vmem:[%s1631 + $0x100] sm:$0xff]
        %v1665 = vld [vmem:[%s1631 + $0x108] sm:$0xff]
        %v1666 = vld [vmem:[%s1631 + $0x110] sm:$0xff]
        %v1667 = vld [vmem:[%s1631 + $0x118] sm:$0xff]
        %v1668 = vld [vmem:[%s1631 + $0x120] sm:$0xff]
        %v1669 = vld [vmem:[%s1631 + $0x128] sm:$0xff]
        %v1670 = vld [vmem:[%s1631 + $0x130] sm:$0xff]
        %v1671 = vld [vmem:[%s1631 + $0x138] sm:$0xff]
        %v1672 = vld [vmem:[%s1631 + $0x140] sm:$0xff]
        %v1673 = vld [vmem:[%s1631 + $0x148] sm:$0xff]
        %v1674 = vld [vmem:[%s1631 + $0x150] sm:$0xff]
        %v1675 = vld [vmem:[%s1631 + $0x158] sm:$0xff]
        %v1676 = vld [vmem:[%s1631 + $0x160] sm:$0xff]
        %v1677 = vld [vmem:[%s1631 + $0x168] sm:$0xff]
        %v1678 = vld [vmem:[%s1631 + $0x170] sm:$0xff]
        %v1679 = vld [vmem:[%s1631 + $0x178] sm:$0xff]
        %v1680 = vld [vmem:[%s1631 + $0x180] sm:$0xff]
        %v1681 = vld [vmem:[%s1631 + $0x188] sm:$0xff]
        %v1682 = vld [vmem:[%s1631 + $0x190] sm:$0xff]
        %v1683 = vld [vmem:[%s1631 + $0x198] sm:$0xff]
        %v1684 = vld [vmem:[%s1631 + $0x1a0] sm:$0xff]
        %v1685 = vld [vmem:[%s1631 + $0x1a8] sm:$0xff]
        %v1686 = vld [vmem:[%s1631 + $0x1b0] sm:$0xff]
        %v1687 = vld [vmem:[%s1631 + $0x1b8] sm:$0xff]
        %v1688 = vld [vmem:[%s1631 + $0x1c0] sm:$0xff]
        %v1689 = vld [vmem:[%s1631 + $0x1c8] sm:$0xff]
        %v1690 = vld [vmem:[%s1631 + $0x1d0] sm:$0xff]
        %v1691 = vld [vmem:[%s1631 + $0x1d8] sm:$0xff]
        %v1692 = vld [vmem:[%s1631 + $0x1e0] sm:$0xff]
        %v1693 = vld [vmem:[%s1631 + $0x1e8] sm:$0xff]
        %v1694 = vld [vmem:[%s1631 + $0x1f0] sm:$0xff]
        %v1695 = vld [vmem:[%s1631 + $0x1f8] sm:$0xff]
        %v1700 = vrot.slane %v1627, 2
        %v1701 = vrot.slane %v1318, 2
        %v1702 = vsel %vm658, %v1700, %v1701
        %v1703 = vrot.slane %v1628, 2
        %v1704 = vrot.slane %v1319, 2
        %v1705 = vsel %vm658, %v1703, %v1704
        %v1706 = vrot.slane %v1629, 2
        %v1707 = vsel %vm658, %v1701, %v1706
        %v1708 = vrot.slane %v1630, 2
        %v1709 = vsel %vm658, %v1704, %v1708
        %1714 = vmatprep.subr.mxu0 %v1663
        %1715 = vmatpush1.msra.mxu0 %v1662
        %1716 = vmatprep.subr.mxu0 %v1661
        %1717 = vmatpush1.msra.mxu0 %v1660
        %1718 = vmatprep.subr.mxu0 %v1659
        %1719 = vmatpush1.msra.mxu0 %v1658
        %1720 = vmatprep.subr.mxu0 %v1657
        %1721 = vmatpush1.msra.mxu0 %v1656
        %1722 = vmatprep.subr.mxu0 %v1655
        %1723 = vmatpush1.msra.mxu0 %v1654
        %1724 = vmatprep.subr.mxu0 %v1653
        %1725 = vmatpush1.msra.mxu0 %v1652
        %1726 = vmatprep.subr.mxu0 %v1651
        %1727 = vmatpush1.msra.mxu0 %v1650
        %1728 = vmatprep.subr.mxu0 %v1649
        %1729 = vmatpush1.msra.mxu0 %v1648
        %1730 = vmatprep.subr.mxu0 %v1647
        %1731 = vmatpush1.msra.mxu0 %v1646
        %1732 = vmatprep.subr.mxu0 %v1645
        %1733 = vmatpush1.msra.mxu0 %v1644
        %1734 = vmatprep.subr.mxu0 %v1643
        %1735 = vmatpush1.msra.mxu0 %v1642
        %1736 = vmatprep.subr.mxu0 %v1641
        %1737 = vmatpush1.msra.mxu0 %v1640
        %1738 = vmatprep.subr.mxu0 %v1639
        %1739 = vmatpush1.msra.mxu0 %v1638
        %1740 = vmatprep.subr.mxu0 %v1637
        %1741 = vmatpush1.msra.mxu0 %v1636
        %1742 = vmatprep.subr.mxu0 %v1635
        %1743 = vmatpush1.msra.mxu0 %v1634
        %1744 = vmatprep.subr.mxu0 %v1633
        %1745 = vmatpush1.msra.mxu0 %v1632
        %1746 = vmatprep.subr.mxu0 %v1695
        %1747 = vmatpush2.msra.mxu0 %v1694
        %1748 = vmatprep.subr.mxu0 %v1693
        %1749 = vmatpush2.msra.mxu0 %v1692
        %1750 = vmatprep.subr.mxu0 %v1691
        %1751 = vmatpush2.msra.mxu0 %v1690
        %1752 = vmatprep.subr.mxu0 %v1689
        %1753 = vmatpush2.msra.mxu0 %v1688
        %1754 = vmatprep.subr.mxu0 %v1687
        %1755 = vmatpush2.msra.mxu0 %v1686
        %1756 = vmatprep.subr.mxu0 %v1685
        %1757 = vmatpush2.msra.mxu0 %v1684
        %1758 = vmatprep.subr.mxu0 %v1683
        %1759 = vmatpush2.msra.mxu0 %v1682
        %1760 = vmatprep.subr.mxu0 %v1681
        %1761 = vmatpush2.msra.mxu0 %v1680
        %1762 = vmatprep.subr.mxu0 %v1679
        %1763 = vmatpush2.msra.mxu0 %v1678
        %1764 = vmatprep.subr.mxu0 %v1677
        %1765 = vmatpush2.msra.mxu0 %v1676
        %1766 = vmatprep.subr.mxu0 %v1675
        %1767 = vmatpush2.msra.mxu0 %v1674
        %1768 = vmatprep.subr.mxu0 %v1673
        %1769 = vmatpush2.msra.mxu0 %v1672
        %1770 = vmatprep.subr.mxu0 %v1671
        %1771 = vmatpush2.msra.mxu0 %v1670
        %1772 = vmatprep.subr.mxu0 %v1669
        %1773 = vmatpush2.msra.mxu0 %v1668
        %1774 = vmatprep.subr.mxu0 %v1667
        %1775 = vmatpush2.msra.mxu0 %v1666
        %1776 = vmatprep.subr.mxu0 %v1665
        %1777 = vmatpush2.msra.mxu0 %v1664
        %1778 = vmatprep.mubr.f32.mxu0 %v1705
        %1779 = vmatmul.mubr.f32.gmra.mxu0 %v1702
        %v1780 = vpop.f32.mrf.mxu0
        %v1781 = vadd.f32 0.0, %v1780
        %v1782 = vpop.f32.mrf.mxu0
        %v1783 = vadd.f32 0.0, %v1782
        %1784 = vmatprep.mubr.f32.mxu0 %v1709
        %1785 = vmatmul.mubr.f32.gmra.mxu0 %v1707
        %v1786 = vpop.f32.mrf.mxu0
        %v1787 = vadd.f32 0.0, %v1786
        %v1788 = vpop.f32.mrf.mxu0
        %v1789 = vadd.f32 0.0, %v1788
        %1790 = vdwg.mxu0
        %v1791 = vadd.f32 %v1617, %v1781
        %v1792 = vadd.f32 %v1619, %v1783
        %v1793 = vadd.f32 %v1623, %v1787
        %v1794 = vadd.f32 %v1625, %v1789
        %v1795 = vld [vmem:[%s6] sm:$0x3]
        %v1797 = vlaneseq
        %v1798 = vshrl.u32 %v1797, 7
        %v1799 = vsub.s32 0, %v1798
        %v1800 = vrot.slane %v1795, %v1799
        %v1801 = vlaneseq
        %v1802 = vshrl.u32 %v1801, 7
        %v1803 = vsub.s32 1, %v1802
        %v1804 = vrot.slane %v1795, %v1803
        %v1807 = vadd.f32 %v1791, %v1800
        %v1808 = vadd.f32 %v1792, %v1804
        %v1809 = vadd.f32 %v1793, %v1800
        %v1810 = vadd.f32 %v1794, %v1804
        %v1811 = vmax.f32 %v1807, 0.0
        %v1812 = vmax.f32 %v1808, 0.0
        %v1813 = vmax.f32 %v1809, 0.0
        %v1814 = vmax.f32 %v1810, 0.0
        %v1815 = vld [vmem:[#allocation7] sm:$0xff]
        %v1816 = vld [vmem:[#allocation7 + $0x8] sm:$0xff]
        %v1817 = vld [vmem:[#allocation7 + $0x10] sm:$0xff]
        %v1818 = vld [vmem:[#allocation7 + $0x18] sm:$0xff]
        %v1819 = vld [vmem:[#allocation7 + $0x20] sm:$0xff]
        %v1820 = vld [vmem:[#allocation7 + $0x28] sm:$0xff]
        %v1821 = vld [vmem:[#allocation7 + $0x30] sm:$0xff]
        %v1822 = vld [vmem:[#allocation7 + $0x38] sm:$0xff]
        %v1823 = vld [vmem:[#allocation7 + $0x40] sm:$0xff]
        %v1824 = vld [vmem:[#allocation7 + $0x48] sm:$0xff]
        %v1825 = vld [vmem:[#allocation7 + $0x50] sm:$0xff]
        %v1826 = vld [vmem:[#allocation7 + $0x58] sm:$0xff]
        %v1827 = vld [vmem:[#allocation7 + $0x60] sm:$0xff]
        %v1828 = vld [vmem:[#allocation7 + $0x68] sm:$0xff]
        %v1829 = vld [vmem:[#allocation7 + $0x70] sm:$0xff]
        %v1830 = vld [vmem:[#allocation7 + $0x78] sm:$0xff]
        %v1831 = vld [vmem:[#allocation7 + $0x80] sm:$0xff]
        %v1832 = vld [vmem:[#allocation7 + $0x88] sm:$0xff]
        %v1833 = vld [vmem:[#allocation7 + $0x90] sm:$0xff]
        %v1834 = vld [vmem:[#allocation7 + $0x98] sm:$0xff]
        %v1835 = vld [vmem:[#allocation7 + $0xa0] sm:$0xff]
        %v1836 = vld [vmem:[#allocation7 + $0xa8] sm:$0xff]
        %v1837 = vld [vmem:[#allocation7 + $0xb0] sm:$0xff]
        %v1838 = vld [vmem:[#allocation7 + $0xb8] sm:$0xff]
        %v1839 = vld [vmem:[#allocation7 + $0xc0] sm:$0xff]
        %v1840 = vld [vmem:[#allocation7 + $0xc8] sm:$0xff]
        %v1841 = vld [vmem:[#allocation7 + $0xd0] sm:$0xff]
        %v1842 = vld [vmem:[#allocation7 + $0xd8] sm:$0xff]
        %v1843 = vld [vmem:[#allocation7 + $0xe0] sm:$0xff]
        %v1844 = vld [vmem:[#allocation7 + $0xe8] sm:$0xff]
        %v1845 = vld [vmem:[#allocation7 + $0xf0] sm:$0xff]
        %v1846 = vld [vmem:[#allocation7 + $0xf8] sm:$0xff]
        %v1847 = vld [vmem:[#allocation7 + $0x100] sm:$0xff]
        %v1848 = vld [vmem:[#allocation7 + $0x108] sm:$0xff]
        %v1849 = vld [vmem:[#allocation7 + $0x110] sm:$0xff]
        %v1850 = vld [vmem:[#allocation7 + $0x118] sm:$0xff]
        %v1851 = vld [vmem:[#allocation7 + $0x120] sm:$0xff]
        %v1852 = vld [vmem:[#allocation7 + $0x128] sm:$0xff]
        %v1853 = vld [vmem:[#allocation7 + $0x130] sm:$0xff]
        %v1854 = vld [vmem:[#allocation7 + $0x138] sm:$0xff]
        %v1855 = vld [vmem:[#allocation7 + $0x140] sm:$0xff]
        %v1856 = vld [vmem:[#allocation7 + $0x148] sm:$0xff]
        %v1857 = vld [vmem:[#allocation7 + $0x150] sm:$0xff]
        %v1858 = vld [vmem:[#allocation7 + $0x158] sm:$0xff]
        %v1859 = vld [vmem:[#allocation7 + $0x160] sm:$0xff]
        %v1860 = vld [vmem:[#allocation7 + $0x168] sm:$0xff]
        %v1861 = vld [vmem:[#allocation7 + $0x170] sm:$0xff]
        %v1862 = vld [vmem:[#allocation7 + $0x178] sm:$0xff]
        %v1863 = vld [vmem:[#allocation7 + $0x180] sm:$0xff]
        %v1864 = vld [vmem:[#allocation7 + $0x188] sm:$0xff]
        %v1865 = vld [vmem:[#allocation7 + $0x190] sm:$0xff]
        %v1866 = vld [vmem:[#allocation7 + $0x198] sm:$0xff]
        %v1867 = vld [vmem:[#allocation7 + $0x1a0] sm:$0xff]
        %v1868 = vld [vmem:[#allocation7 + $0x1a8] sm:$0xff]
        %v1869 = vld [vmem:[#allocation7 + $0x1b0] sm:$0xff]
        %v1870 = vld [vmem:[#allocation7 + $0x1b8] sm:$0xff]
        %v1871 = vld [vmem:[#allocation7 + $0x1c0] sm:$0xff]
        %v1872 = vld [vmem:[#allocation7 + $0x1c8] sm:$0xff]
        %v1873 = vld [vmem:[#allocation7 + $0x1d0] sm:$0xff]
        %v1874 = vld [vmem:[#allocation7 + $0x1d8] sm:$0xff]
        %v1875 = vld [vmem:[#allocation7 + $0x1e0] sm:$0xff]
        %v1876 = vld [vmem:[#allocation7 + $0x1e8] sm:$0xff]
        %v1877 = vld [vmem:[#allocation7 + $0x1f0] sm:$0xff]
        %v1878 = vld [vmem:[#allocation7 + $0x1f8] sm:$0xff]
        %v1879 = vld [vmem:[%s8] sm:$0x3]
        %v1881 = vlaneseq
        %v1882 = vshrl.u32 %v1881, 7
        %v1883 = vsub.s32 0, %v1882
        %v1884 = vrot.slane %v1879, %v1883
        %v1885 = vlaneseq
        %v1886 = vshrl.u32 %v1885, 7
        %v1887 = vsub.s32 1, %v1886
        %v1888 = vrot.slane %v1879, %v1887
        %1891 = vmatprep.subr.mxu0 %v1846
        %1892 = vmatpush1.msra.mxu0 %v1845
        %1893 = vmatprep.subr.mxu0 %v1844
        %1894 = vmatpush1.msra.mxu0 %v1843
        %1895 = vmatprep.subr.mxu0 %v1842
        %1896 = vmatpush1.msra.mxu0 %v1841
        %1897 = vmatprep.subr.mxu0 %v1840
        %1898 = vmatpush1.msra.mxu0 %v1839
        %1899 = vmatprep.subr.mxu0 %v1838
        %1900 = vmatpush1.msra.mxu0 %v1837
        %1901 = vmatprep.subr.mxu0 %v1836
        %1902 = vmatpush1.msra.mxu0 %v1835
        %1903 = vmatprep.subr.mxu0 %v1834
        %1904 = vmatpush1.msra.mxu0 %v1833
        %1905 = vmatprep.subr.mxu0 %v1832
        %1906 = vmatpush1.msra.mxu0 %v1831
        %1907 = vmatprep.subr.mxu0 %v1830
        %1908 = vmatpush1.msra.mxu0 %v1829
        %1909 = vmatprep.subr.mxu0 %v1828
        %1910 = vmatpush1.msra.mxu0 %v1827
        %1911 = vmatprep.subr.mxu0 %v1826
        %1912 = vmatpush1.msra.mxu0 %v1825
        %1913 = vmatprep.subr.mxu0 %v1824
        %1914 = vmatpush1.msra.mxu0 %v1823
        %1915 = vmatprep.subr.mxu0 %v1822
        %1916 = vmatpush1.msra.mxu0 %v1821
        %1917 = vmatprep.subr.mxu0 %v1820
        %1918 = vmatpush1.msra.mxu0 %v1819
        %1919 = vmatprep.subr.mxu0 %v1818
        %1920 = vmatpush1.msra.mxu0 %v1817
        %1921 = vmatprep.subr.mxu0 %v1816
        %1922 = vmatpush1.msra.mxu0 %v1815
        %1923 = vmatprep.subr.mxu0 %v1878
        %1924 = vmatpush2.msra.mxu0 %v1877
        %1925 = vmatprep.subr.mxu0 %v1876
        %1926 = vmatpush2.msra.mxu0 %v1875
        %1927 = vmatprep.subr.mxu0 %v1874
        %1928 = vmatpush2.msra.mxu0 %v1873
        %1929 = vmatprep.subr.mxu0 %v1872
        %1930 = vmatpush2.msra.mxu0 %v1871
        %1931 = vmatprep.subr.mxu0 %v1870
        %1932 = vmatpush2.msra.mxu0 %v1869
        %1933 = vmatprep.subr.mxu0 %v1868
        %1934 = vmatpush2.msra.mxu0 %v1867
        %1935 = vmatprep.subr.mxu0 %v1866
        %1936 = vmatpush2.msra.mxu0 %v1865
        %1937 = vmatprep.subr.mxu0 %v1864
        %1938 = vmatpush2.msra.mxu0 %v1863
        %1939 = vmatprep.subr.mxu0 %v1862
        %1940 = vmatpush2.msra.mxu0 %v1861
        %1941 = vmatprep.subr.mxu0 %v1860
        %1942 = vmatpush2.msra.mxu0 %v1859
        %1943 = vmatprep.subr.mxu0 %v1858
        %1944 = vmatpush2.msra.mxu0 %v1857
        %1945 = vmatprep.subr.mxu0 %v1856
        %1946 = vmatpush2.msra.mxu0 %v1855
        %1947 = vmatprep.subr.mxu0 %v1854
        %1948 = vmatpush2.msra.mxu0 %v1853
        %1949 = vmatprep.subr.mxu0 %v1852
        %1950 = vmatpush2.msra.mxu0 %v1851
        %1951 = vmatprep.subr.mxu0 %v1850
        %1952 = vmatpush2.msra.mxu0 %v1849
        %1953 = vmatprep.subr.mxu0 %v1848
        %1954 = vmatpush2.msra.mxu0 %v1847
        %1955 = vmatprep.mubr.f32.mxu0 %v1812
        %1956 = vmatmul.mubr.f32.gmra.mxu0 %v1811
        %v1957 = vpop.f32.mrf.mxu0
        %v1958 = vadd.f32 %v1884, %v1957
        %v1959 = vpop.f32.mrf.mxu0
        %v1960 = vadd.f32 %v1888, %v1959
        %1961 = vmatprep.mubr.f32.mxu0 %v1814
        %1962 = vmatmul.mubr.f32.gmra.mxu0 %v1813
        %v1963 = vpop.f32.mrf.mxu0
        %v1964 = vadd.f32 %v1884, %v1963
        %v1965 = vpop.f32.mrf.mxu0
        %v1966 = vadd.f32 %v1888, %v1965
        %1967 = vdwg.mxu0
        %1968 = vst [vmem:[%s416] sm:$0xff] %v1958
        %1969 = vst [vmem:[%s416 + $0x8] sm:$0xff] %v1960
        %1970 = vst [vmem:[%s416 + $0x10] sm:$0xff] %v1964
        %1971 = vst [vmem:[%s416 + $0x18] sm:$0xff] %v1966
        %p1972 = scmp.lt.s32.totalorder %s24, 1
        %s1973 = scalar_select %p1972, %s24, 1
        %s1974 = smul.addr %s1973, 4
        %s1975 = smul.addr %s1974, 8
        %s1976 = scalar_lea.vmem %s9, %s1975
        %p1977 = scmp.lt.s32.totalorder %s24, 1
        %s1978 = scalar_select %p1977, %s24, 1
        %s1979 = smul.addr %s1978, 4
        %s1980 = smul.addr %s1979, 8
        %s1981 = scalar_lea.vmem %s10, %s1980
        // Predicated region
        $region69: #{forward.1} parent=55 // pred_check
          %p1982 = pneg %p236
        $region70: #{forward.1} parent=55 // pred_check_branch
          %1984 = sbr.rel (%p1982) target = $region72
        $region71: #{forward.1} parent=55 // pred_region
          _
        $region72: #{forward.1} parent=55 // pred_fallthru
          _
        // Predicated region
        $region73: #{forward.1} parent=55 // pred_check
          %p1985 = pneg %p262
        $region74: #{forward.1} parent=55 // pred_check_branch
          %1987 = sbr.rel (%p1985) target = $region76
        $region75: #{forward.1} parent=55 // pred_region
          _
        $region76: #{forward.1} parent=55 // pred_fallthru
          _
      $region56: #{forward.1} parent=5 // pred_fallthru
        _
      %p1988 = scmp.le.s32.totalorder 2, %s19
      // Predicated region
      $region77: #{forward.1} parent=5 // pred_check
        %p1989 = pneg %p1988
      $region78: #{forward.1} parent=5 // pred_check_branch
        %1991 = sbr.rel (%p1989) target = $region80
      $region79: #{forward.1} parent=5 // pred_region
        %s1992 = ssub.s32 %s19, 2
        // Predicated region
        $region81: #{forward.1} parent=79 // pred_check
          %p1993 = pneg %p242
        $region82: #{forward.1} parent=79 // pred_check_branch
          %1995 = sbr.rel (%p1993) target = $region84
        $region83: #{forward.1} parent=79 // pred_region
          %p1996 = scmp.lt.s32.totalorder %s25, 1
          %s1997 = scalar_select %p1996, %s25, 1
          %s1998 = smul.addr %s1997, 4
          %s1999 = smul.addr %s1998, 8
          %s2000 = scalar_lea.vmem %s9, %s1999
        $region84: #{forward.1} parent=79 // pred_fallthru
          _
        // Predicated region
        $region85: #{forward.1} parent=79 // pred_check
          %p2001 = pneg %p268
        $region86: #{forward.1} parent=79 // pred_check_branch
          %2003 = sbr.rel (%p2001) target = $region88
        $region87: #{forward.1} parent=79 // pred_region
          %p2004 = scmp.lt.s32.totalorder %s25, 1
          %s2005 = scalar_select %p2004, %s25, 1
          %s2006 = smul.addr %s2005, 4
          %s2007 = smul.addr %s2006, 8
          %s2008 = scalar_lea.vmem %s10, %s2007
        $region88: #{forward.1} parent=79 // pred_fallthru
          _
      $region80: #{forward.1} parent=5 // pred_fallthru
        _
    $region6: #{forward.1} parent=1 // loop_footer
      %s23 = sadd.s32 1, %s19
    $region7: #{forward.1} parent=1 // loop_footer_branch
      %18 = sbr.rel target = $region3
    $region8: #{forward.1} parent=1 // loop_exit
      _
    %2009 = vsyncpa [#allocation4], 1
    %s2010 = scalar_lea.sflag [#allocation4], 1
    %2011 = vsyncpa %s2010, 1
    %2012 = vsyncpa [#allocation6], 1

</llo_original>
